<compile_context>
chip_gen: v6e
topology: v6e:2x2x1
jax: 0.10.0
libtpu: 0.0.40
codegen_flags: <defaults>
</compile_context>

<pallas_src>
import math
import jax
import jax.numpy as jnp
from jax.experimental import pallas as pl
from jax.experimental.pallas import tpu as pltpu

# ----- model hyper-parameters (small, consistent with a tiny T5 encoder) -----
B, S, D = 2, 8, 32          # batch, seq_len, d_model
H, DK = 4, 8                # num_heads, d_kv  (H*DK == inner dim == 32)
DFF = 64                    # d_ff
VOCAB = 64                  # vocab size
NUM_LAYERS = 2
NUM_BUCKETS = 32
MAX_DISTANCE = 128
EPS = 1e-6                  # T5LayerNorm epsilon
BS = B * S
HDK = H * DK
QKV3 = 3 * HDK              # fused q|k|v output width (96)

# lane-dense padded feature dims (multiples of the 128-wide lane axis)
D_P = 128                   # d_model padded
DFF_P = 128                 # d_ff padded


# --------------------------- fused Pallas kernel ------------------------------
def _rms(x, w):
    # T5LayerNorm: no mean subtraction, no bias.  x: (N, D_P) with zeros in the
    # padded lanes, so sum(x*x)/D equals the true mean over the real D columns.
    var = jnp.sum(x * x, axis=-1, keepdims=True) * (1.0 / D)
    return x * jax.lax.rsqrt(var + EPS) * w


def _t5_stack_kernel(x_ref, bias_ref, ln_ref, wqkv_ref, wo_ref, wi_ref, wff_ref,
                     o_ref):
    # One batch element per grid step (parallel across TCs on v7x).
    x = x_ref[...]                       # (S, D_P) activation slab, lane-dense
    bias = bias_ref[0]                   # (H, S, S) rel-pos bias + key-pad mask
    ln = ln_ref[...]                     # (2L+1, D_P) all layernorm weights

    for l in range(NUM_LAYERS):          # static unroll, L = 2
        # ------------------- self-attention sublayer -------------------
        hn = _rms(x, ln[l:l + 1, :])
        # Fused QKV projection: one (S, D_P) @ (D_P, 96) MXU matmul.
        qkv = jnp.dot(hn, wqkv_ref[l], preferred_element_type=jnp.float32)
        q = qkv[:, 0 * HDK:1 * HDK].reshape(S, H, DK)
        k = qkv[:, 1 * HDK:2 * HDK].reshape(S, H, DK)
        v = qkv[:, 2 * HDK:3 * HDK].reshape(S, H, DK)
        # T5 self-attention: NO 1/sqrt(d_kv) scaling.  Batched over heads.
        sc = jnp.einsum('qhd,khd->hqk', q, k,
                        preferred_element_type=jnp.float32)        # (H, S, S)
        sc = sc + bias                                             # single add
        m = jnp.max(sc, axis=-1, keepdims=True)
        p = jnp.exp(sc - m)
        p = p * pl.reciprocal(jnp.sum(p, axis=-1, keepdims=True), approx=False)
        ctx = jnp.einsum('hqk,khd->qhd', p, v,
                         preferred_element_type=jnp.float32)       # (S, H, DK)
        x = x + jnp.dot(ctx.reshape(S, HDK), wo_ref[l],
                        preferred_element_type=jnp.float32)

        # ---------------------- feed-forward sublayer ------------------
        hn = _rms(x, ln[NUM_LAYERS + l:NUM_LAYERS + l + 1, :])
        ff = jnp.maximum(
            jnp.dot(hn, wi_ref[l], preferred_element_type=jnp.float32), 0.0)
        x = x + jnp.dot(ff, wff_ref[l], preferred_element_type=jnp.float32)

    # final T5LayerNorm over the whole stack output (lane-dense store)
    o_ref[...] = _rms(x, ln[2 * NUM_LAYERS:, :])


def t5_encoder_stack(x_flat, bias, packed):
    L = NUM_LAYERS
    grid_spec = pltpu.PrefetchScalarGridSpec(
        num_scalar_prefetch=0,
        grid=(B,),
        in_specs=[
            pl.BlockSpec((S, D_P), lambda b: (b, 0)),              # activations
            pl.BlockSpec((1, H, S, S), lambda b: (b, 0, 0, 0)),    # combined bias
            pl.BlockSpec((2 * L + 1, D_P), lambda b: (0, 0)),      # all LN weights
            pl.BlockSpec((L, D_P, QKV3), lambda b: (0, 0, 0)),     # fused QKV
            pl.BlockSpec((L, HDK, D_P), lambda b: (0, 0, 0)),      # attn out proj
            pl.BlockSpec((L, D_P, DFF_P), lambda b: (0, 0, 0)),    # FFN wi
            pl.BlockSpec((L, DFF_P, D_P), lambda b: (0, 0, 0)),    # FFN wo
        ],
        out_specs=pl.BlockSpec((S, D_P), lambda b: (b, 0)),
    )
    return pl.pallas_call(
        _t5_stack_kernel,
        out_shape=jax.ShapeDtypeStruct((BS, D_P), jnp.float32),
        grid_spec=grid_spec,
        compiler_params=pltpu.CompilerParams(
            dimension_semantics=("parallel",)),      # use both TCs on v7x
    )(x_flat, bias, packed["ln_all"], packed["wqkv"], packed["wo"],
      packed["wi"], packed["wo_ff"])


# -------------------- relative position bias (plain JAX glue) ----------------
def _relative_position_bucket(relative_position):
    # bidirectional (encoder) bucketing, matches HF T5
    num_buckets = NUM_BUCKETS // 2
    relative_buckets = (relative_position > 0).astype(jnp.int32) * num_buckets
    relative_position = jnp.abs(relative_position)
    max_exact = num_buckets // 2
    is_small = relative_position < max_exact
    rp_f = jnp.maximum(relative_position, 1).astype(jnp.float32)
    rp_if_large = max_exact + (
        jnp.log(rp_f / max_exact)
        / math.log(MAX_DISTANCE / max_exact)
        * (num_buckets - max_exact)
    ).astype(jnp.int32)
    rp_if_large = jnp.minimum(rp_if_large, num_buckets - 1)
    relative_buckets = relative_buckets + jnp.where(is_small, relative_position, rp_if_large)
    return relative_buckets


def compute_position_bias(rel_bias_table, seq_len):
    ctx = jnp.arange(seq_len)[:, None]
    mem = jnp.arange(seq_len)[None, :]
    buckets = _relative_position_bucket(mem - ctx)          # (S, S)
    values = rel_bias_table[buckets]                        # (S, S, H)
    return jnp.transpose(values, (2, 0, 1))                 # (H, S, S)


# ------------------- one-time packing / lane-dense padding -------------------
def _pad2(w, rows, cols):
    return jnp.pad(w, ((0, rows - w.shape[0]), (0, cols - w.shape[1])))


def prepare_params(params):
    layers = params["layers"]
    wqkv = jnp.stack([
        _pad2(jnp.concatenate([lp["wq"], lp["wk"], lp["wv"]], axis=1), D_P, QKV3)
        for lp in layers])                                       # (L, D_P, 96)
    wo = jnp.stack([_pad2(lp["wo"], HDK, D_P) for lp in layers])      # (L, 32, D_P)
    wi = jnp.stack([_pad2(lp["wi"], D_P, DFF_P) for lp in layers])    # (L, D_P, DFF_P)
    wo_ff = jnp.stack([_pad2(lp["wo_ff"], DFF_P, D_P) for lp in layers])
    ln_rows = ([lp["ln1"] for lp in layers]
               + [lp["ln2"] for lp in layers]
               + [params["final_ln"]])
    ln_all = jnp.pad(jnp.stack(ln_rows), ((0, 0), (0, D_P - D)))      # (2L+1, D_P)
    embed_p = jnp.pad(params["embed"], ((0, 0), (0, D_P - D)))        # (V, D_P)
    pos_bias = compute_position_bias(params["rel_bias"], S)           # (H, S, S)
    return {"wqkv": wqkv, "wo": wo, "wi": wi, "wo_ff": wo_ff,
            "ln_all": ln_all, "embed_p": embed_p, "pos_bias": pos_bias}


# ------------------------------- forward --------------------------------------
def t5_encoder_forward(packed, input_ids, attention_mask):
    # Embedding gather stays in plain JAX (integer gather glue).
    x_flat = packed["embed_p"][input_ids].reshape(BS, D_P)       # zero in padded lanes
    neg = (1.0 - attention_mask.astype(jnp.float32)) * -1e9      # (B, S) key-pad bias
    bias = packed["pos_bias"][None, :, :, :] + neg[:, None, None, :]  # (B, H, S, S)
    hidden = t5_encoder_stack(x_flat, bias, packed)              # (B*S, D_P)
    return hidden.reshape(B, S, D_P)[:, 0, :D]                   # last_hidden_state[:, 0, :]


# --------------------------- deterministic params ------------------------------
def init_params(key):
    n_per_layer = 6
    keys = jax.random.split(key, 2 + NUM_LAYERS * n_per_layer)
    scale = 0.05
    params = {
        "embed": scale * jax.random.normal(keys[0], (VOCAB, D), jnp.float32),
        "rel_bias": scale * jax.random.normal(keys[1], (NUM_BUCKETS, H), jnp.float32),
        "final_ln": jnp.ones((D,), jnp.float32),
        "layers": [],
    }
    for l in range(NUM_LAYERS):
        k = keys[2 + l * n_per_layer: 2 + (l + 1) * n_per_layer]
        params["layers"].append({
            "ln1": jnp.ones((D,), jnp.float32),
            "wq": scale * jax.random.normal(k[0], (D, HDK), jnp.float32),
            "wk": scale * jax.random.normal(k[1], (D, HDK), jnp.float32),
            "wv": scale * jax.random.normal(k[2], (D, HDK), jnp.float32),
            "wo": scale * jax.random.normal(k[3], (HDK, D), jnp.float32),
            "ln2": jnp.ones((D,), jnp.float32),
            "wi": scale * jax.random.normal(k[4], (D, DFF), jnp.float32),
            "wo_ff": scale * jax.random.normal(k[5], (DFF, D), jnp.float32),
        })
    return params


if __name__ == "__main__":
    key = jax.random.PRNGKey(0)
    pkey, ikey = jax.random.split(key)
    params = init_params(pkey)
    packed = prepare_params(params)      # one-time packing / padding, outside hot path

    input_ids = jax.random.randint(ikey, (B, S), 0, VOCAB, dtype=jnp.int32)
    attention_mask = jnp.ones((B, S), dtype=jnp.int32)
    attention_mask = attention_mask.at[1, -2:].set(0)       # pad tail of 2nd sequence

    out = jax.jit(t5_encoder_forward)(packed, input_ids, attention_mask)
    out = jax.block_until_ready(out)
    assert out.shape == (B, D) and out.dtype == jnp.float32
    print("KERNEL_OK")
</pallas_src>

<mosaic_0001>
module attributes {stable_mosaic.version = 11 : i64} {
  func.func @_t5_stack_kernel(%arg0: i32, %arg1: memref<8x128xf32, #tpu.memory_space<vmem>>, %arg2: memref<1x4x8x8xf32, #tpu.memory_space<vmem>>, %arg3: memref<5x128xf32, #tpu.memory_space<vmem>>, %arg4: memref<2x128x96xf32, #tpu.memory_space<vmem>>, %arg5: memref<2x32x128xf32, #tpu.memory_space<vmem>>, %arg6: memref<2x128x128xf32, #tpu.memory_space<vmem>>, %arg7: memref<2x128x128xf32, #tpu.memory_space<vmem>>, %arg8: memref<8x128xf32, #tpu.memory_space<vmem>>) attributes {dimension_semantics = [#tpu.dimension_semantics<parallel>], iteration_bounds = array<i64: 2>, scalar_prefetch = 0 : i64, scratch_operands = 0 : i64, tpu.core_type = #tpu.core_type<tc>, window_params = [{transform_indices = @transform_0, window_bounds = array<i64: 8, 128>}, {transform_indices = @transform_1, window_bounds = array<i64: 1, 4, 8, 8>}, {pipeline_mode = #tpu.pipeline_mode<synchronous>, transform_indices = @transform_2, window_bounds = array<i64: 5, 128>}, {pipeline_mode = #tpu.pipeline_mode<synchronous>, transform_indices = @transform_3, window_bounds = array<i64: 2, 128, 96>}, {pipeline_mode = #tpu.pipeline_mode<synchronous>, transform_indices = @transform_4, window_bounds = array<i64: 2, 32, 128>}, {pipeline_mode = #tpu.pipeline_mode<synchronous>, transform_indices = @transform_5, window_bounds = array<i64: 2, 128, 128>}, {pipeline_mode = #tpu.pipeline_mode<synchronous>, transform_indices = @transform_6, window_bounds = array<i64: 2, 128, 128>}, {transform_indices = @transform_7, window_bounds = array<i64: 8, 128>}]} {
    %c0 = arith.constant 0 : index
    %c0_0 = arith.constant 0 : index
    %0 = vector.load %arg1[%c0, %c0_0] : memref<8x128xf32, #tpu.memory_space<vmem>>, vector<8x128xf32>
    %c0_1 = arith.constant 0 : index
    %c0_2 = arith.constant 0 : index
    %c0_3 = arith.constant 0 : index
    %c0_4 = arith.constant 0 : index
    %1 = vector.load %arg2[%c0_1, %c0_2, %c0_3, %c0_4] : memref<1x4x8x8xf32, #tpu.memory_space<vmem>>, vector<1x4x8x8xf32>
    %2 = vector.shape_cast %1 : vector<1x4x8x8xf32> to vector<4x8x8xf32>
    %c0_5 = arith.constant 0 : index
    %c0_6 = arith.constant 0 : index
    %3 = vector.load %arg3[%c0_5, %c0_6] : memref<5x128xf32, #tpu.memory_space<vmem>>, vector<5x128xf32>
    %4 = vector.extract_strided_slice %3 {offsets = [0, 0], sizes = [1, 128], strides = [1, 1]} : vector<5x128xf32> to vector<1x128xf32>
    %5 = arith.mulf %0, %0 : vector<8x128xf32>
    %cst = arith.constant dense<0.000000e+00> : vector<8xf32>
    %6 = vector.multi_reduction <add>, %5, %cst [1] : vector<8x128xf32> to vector<8xf32>
    %7 = vector.shape_cast %6 : vector<8xf32> to vector<8x1xf32>
    %cst_7 = arith.constant 3.125000e-02 : f32
    %8 = vector.broadcast %cst_7 : f32 to vector<8x1xf32>
    %9 = arith.mulf %7, %8 : vector<8x1xf32>
    %cst_8 = arith.constant 9.99999997E-7 : f32
    %10 = vector.broadcast %cst_8 : f32 to vector<8x1xf32>
    %11 = arith.addf %9, %10 : vector<8x1xf32>
    %12 = math.rsqrt %11 : vector<8x1xf32>
    %13 = vector.broadcast %12 : vector<8x1xf32> to vector<8x128xf32>
    %14 = arith.mulf %0, %13 : vector<8x128xf32>
    %15 = vector.broadcast %4 : vector<1x128xf32> to vector<8x128xf32>
    %16 = arith.mulf %14, %15 : vector<8x128xf32>
    %c0_9 = arith.constant 0 : index
    %c0_10 = arith.constant 0 : index
    %c0_11 = arith.constant 0 : index
    %17 = vector.load %arg4[%c0_9, %c0_10, %c0_11] : memref<2x128x96xf32, #tpu.memory_space<vmem>>, vector<1x128x96xf32>
    %18 = vector.shape_cast %17 : vector<1x128x96xf32> to vector<128x96xf32>
    %cst_12 = arith.constant dense<0.000000e+00> : vector<8x96xf32>
    %19 = tpu.matmul %16, %18, %cst_12 {dimension_numbers = #tpu.dot_dimension_numbers<[1], [0], [0], [1], [0, 0, 1, 1], [], []>} : vector<8x128xf32>, vector<128x96xf32>, vector<8x96xf32> -> vector<8x96xf32>
    %20 = vector.extract_strided_slice %19 {offsets = [0, 0], sizes = [8, 32], strides = [1, 1]} : vector<8x96xf32> to vector<8x32xf32>
    %21 = vector.shape_cast %20 : vector<8x32xf32> to vector<8x4x8xf32>
    %22 = vector.extract_strided_slice %19 {offsets = [0, 32], sizes = [8, 32], strides = [1, 1]} : vector<8x96xf32> to vector<8x32xf32>
    %23 = vector.shape_cast %22 : vector<8x32xf32> to vector<8x4x8xf32>
    %24 = vector.extract_strided_slice %19 {offsets = [0, 64], sizes = [8, 32], strides = [1, 1]} : vector<8x96xf32> to vector<8x32xf32>
    %25 = vector.shape_cast %24 : vector<8x32xf32> to vector<8x4x8xf32>
    "tpu.trace_start"() <{level = 10 : i32, message = "qhd,khd->hqk"}> : () -> ()
    %cst_13 = arith.constant dense<0.000000e+00> : vector<4x8x8xf32>
    %26 = tpu.matmul %21, %23, %cst_13 {dimension_numbers = #tpu.dot_dimension_numbers<[2], [2], [0], [0], [0, 1, 0, 0, 1, 0], [1], [1]>} : vector<8x4x8xf32>, vector<8x4x8xf32>, vector<4x8x8xf32> -> vector<4x8x8xf32>
    "tpu.trace_stop"() : () -> ()
    %27 = arith.addf %26, %2 : vector<4x8x8xf32>
    %cst_14 = arith.constant dense<0xFF800000> : vector<4x8xf32>
    %28 = vector.multi_reduction <maximumf>, %27, %cst_14 [2] : vector<4x8x8xf32> to vector<4x8xf32>
    %29 = vector.shape_cast %28 : vector<4x8xf32> to vector<4x8x1xf32>
    %30 = vector.broadcast %29 : vector<4x8x1xf32> to vector<4x8x8xf32>
    %31 = arith.subf %27, %30 : vector<4x8x8xf32>
    %32 = math.exp %31 : vector<4x8x8xf32>
    %cst_15 = arith.constant dense<0.000000e+00> : vector<4x8xf32>
    %33 = vector.multi_reduction <add>, %32, %cst_15 [2] : vector<4x8x8xf32> to vector<4x8xf32>
    %34 = vector.shape_cast %33 : vector<4x8xf32> to vector<4x8x1xf32>
    %35 = tpu.reciprocal %34 : vector<4x8x1xf32> -> vector<4x8x1xf32>
    %36 = vector.broadcast %35 : vector<4x8x1xf32> to vector<4x8x8xf32>
    %37 = arith.mulf %32, %36 : vector<4x8x8xf32>
    "tpu.trace_start"() <{level = 10 : i32, message = "hqk,khd->qhd"}> : () -> ()
    %cst_16 = arith.constant dense<0.000000e+00> : vector<4x8x8xf32>
    %38 = tpu.matmul %25, %37, %cst_16 {dimension_numbers = #tpu.dot_dimension_numbers<[0], [2], [2], [1], [0, 1, 0, 2, 1, 1], [1], [0]>} : vector<8x4x8xf32>, vector<4x8x8xf32>, vector<4x8x8xf32> -> vector<4x8x8xf32>
    %39 = tpu.transpose %38, [2, 0, 1] : vector<4x8x8xf32> -> vector<8x4x8xf32>
    "tpu.trace_stop"() : () -> ()
    %40 = vector.shape_cast %39 : vector<8x4x8xf32> to vector<8x32xf32>
    %c0_17 = arith.constant 0 : index
    %c0_18 = arith.constant 0 : index
    %c0_19 = arith.constant 0 : index
    %41 = vector.load %arg5[%c0_17, %c0_18, %c0_19] : memref<2x32x128xf32, #tpu.memory_space<vmem>>, vector<1x32x128xf32>
    %42 = vector.shape_cast %41 : vector<1x32x128xf32> to vector<32x128xf32>
    %cst_20 = arith.constant dense<0.000000e+00> : vector<8x128xf32>
    %43 = tpu.matmul %40, %42, %cst_20 {dimension_numbers = #tpu.dot_dimension_numbers<[1], [0], [0], [1], [0, 0, 1, 1], [], []>} : vector<8x32xf32>, vector<32x128xf32>, vector<8x128xf32> -> vector<8x128xf32>
    %44 = arith.addf %0, %43 : vector<8x128xf32>
    %45 = vector.extract_strided_slice %3 {offsets = [2, 0], sizes = [1, 128], strides = [1, 1]} : vector<5x128xf32> to vector<1x128xf32>
    %46 = arith.mulf %44, %44 : vector<8x128xf32>
    %cst_21 = arith.constant dense<0.000000e+00> : vector<8xf32>
    %47 = vector.multi_reduction <add>, %46, %cst_21 [1] : vector<8x128xf32> to vector<8xf32>
    %48 = vector.shape_cast %47 : vector<8xf32> to vector<8x1xf32>
    %cst_22 = arith.constant 3.125000e-02 : f32
    %49 = vector.broadcast %cst_22 : f32 to vector<8x1xf32>
    %50 = arith.mulf %48, %49 : vector<8x1xf32>
    %cst_23 = arith.constant 9.99999997E-7 : f32
    %51 = vector.broadcast %cst_23 : f32 to vector<8x1xf32>
    %52 = arith.addf %50, %51 : vector<8x1xf32>
    %53 = math.rsqrt %52 : vector<8x1xf32>
    %54 = vector.broadcast %53 : vector<8x1xf32> to vector<8x128xf32>
    %55 = arith.mulf %44, %54 : vector<8x128xf32>
    %56 = vector.broadcast %45 : vector<1x128xf32> to vector<8x128xf32>
    %57 = arith.mulf %55, %56 : vector<8x128xf32>
    %c0_24 = arith.constant 0 : index
    %c0_25 = arith.constant 0 : index
    %c0_26 = arith.constant 0 : index
    %58 = vector.load %arg6[%c0_24, %c0_25, %c0_26] : memref<2x128x128xf32, #tpu.memory_space<vmem>>, vector<1x128x128xf32>
    %59 = vector.shape_cast %58 : vector<1x128x128xf32> to vector<128x128xf32>
    %cst_27 = arith.constant dense<0.000000e+00> : vector<8x128xf32>
    %60 = tpu.matmul %57, %59, %cst_27 {dimension_numbers = #tpu.dot_dimension_numbers<[1], [0], [0], [1], [0, 0, 1, 1], [], []>} : vector<8x128xf32>, vector<128x128xf32>, vector<8x128xf32> -> vector<8x128xf32>
    %cst_28 = arith.constant 0.000000e+00 : f32
    %61 = vector.broadcast %cst_28 : f32 to vector<8x128xf32>
    %62 = arith.maximumf %60, %61 : vector<8x128xf32>
    %c0_29 = arith.constant 0 : index
    %c0_30 = arith.constant 0 : index
    %c0_31 = arith.constant 0 : index
    %63 = vector.load %arg7[%c0_29, %c0_30, %c0_31] : memref<2x128x128xf32, #tpu.memory_space<vmem>>, vector<1x128x128xf32>
    %64 = vector.shape_cast %63 : vector<1x128x128xf32> to vector<128x128xf32>
    %cst_32 = arith.constant dense<0.000000e+00> : vector<8x128xf32>
    %65 = tpu.matmul %62, %64, %cst_32 {dimension_numbers = #tpu.dot_dimension_numbers<[1], [0], [0], [1], [0, 0, 1, 1], [], []>} : vector<8x128xf32>, vector<128x128xf32>, vector<8x128xf32> -> vector<8x128xf32>
    %66 = arith.addf %44, %65 : vector<8x128xf32>
    %67 = vector.extract_strided_slice %3 {offsets = [1, 0], sizes = [1, 128], strides = [1, 1]} : vector<5x128xf32> to vector<1x128xf32>
    %68 = arith.mulf %66, %66 : vector<8x128xf32>
    %cst_33 = arith.constant dense<0.000000e+00> : vector<8xf32>
    %69 = vector.multi_reduction <add>, %68, %cst_33 [1] : vector<8x128xf32> to vector<8xf32>
    %70 = vector.shape_cast %69 : vector<8xf32> to vector<8x1xf32>
    %cst_34 = arith.constant 3.125000e-02 : f32
    %71 = vector.broadcast %cst_34 : f32 to vector<8x1xf32>
    %72 = arith.mulf %70, %71 : vector<8x1xf32>
    %cst_35 = arith.constant 9.99999997E-7 : f32
    %73 = vector.broadcast %cst_35 : f32 to vector<8x1xf32>
    %74 = arith.addf %72, %73 : vector<8x1xf32>
    %75 = math.rsqrt %74 : vector<8x1xf32>
    %76 = vector.broadcast %75 : vector<8x1xf32> to vector<8x128xf32>
    %77 = arith.mulf %66, %76 : vector<8x128xf32>
    %78 = vector.broadcast %67 : vector<1x128xf32> to vector<8x128xf32>
    %79 = arith.mulf %77, %78 : vector<8x128xf32>
    %c1 = arith.constant 1 : index
    %c0_36 = arith.constant 0 : index
    %c0_37 = arith.constant 0 : index
    %80 = vector.load %arg4[%c1, %c0_36, %c0_37] : memref<2x128x96xf32, #tpu.memory_space<vmem>>, vector<1x128x96xf32>
    %81 = vector.shape_cast %80 : vector<1x128x96xf32> to vector<128x96xf32>
    %cst_38 = arith.constant dense<0.000000e+00> : vector<8x96xf32>
    %82 = tpu.matmul %79, %81, %cst_38 {dimension_numbers = #tpu.dot_dimension_numbers<[1], [0], [0], [1], [0, 0, 1, 1], [], []>} : vector<8x128xf32>, vector<128x96xf32>, vector<8x96xf32> -> vector<8x96xf32>
    %83 = vector.extract_strided_slice %82 {offsets = [0, 0], sizes = [8, 32], strides = [1, 1]} : vector<8x96xf32> to vector<8x32xf32>
    %84 = vector.shape_cast %83 : vector<8x32xf32> to vector<8x4x8xf32>
    %85 = vector.extract_strided_slice %82 {offsets = [0, 32], sizes = [8, 32], strides = [1, 1]} : vector<8x96xf32> to vector<8x32xf32>
    %86 = vector.shape_cast %85 : vector<8x32xf32> to vector<8x4x8xf32>
    %87 = vector.extract_strided_slice %82 {offsets = [0, 64], sizes = [8, 32], strides = [1, 1]} : vector<8x96xf32> to vector<8x32xf32>
    %88 = vector.shape_cast %87 : vector<8x32xf32> to vector<8x4x8xf32>
    "tpu.trace_start"() <{level = 10 : i32, message = "qhd,khd->hqk"}> : () -> ()
    %cst_39 = arith.constant dense<0.000000e+00> : vector<4x8x8xf32>
    %89 = tpu.matmul %84, %86, %cst_39 {dimension_numbers = #tpu.dot_dimension_numbers<[2], [2], [0], [0], [0, 1, 0, 0, 1, 0], [1], [1]>} : vector<8x4x8xf32>, vector<8x4x8xf32>, vector<4x8x8xf32> -> vector<4x8x8xf32>
    "tpu.trace_stop"() : () -> ()
    %90 = arith.addf %89, %2 : vector<4x8x8xf32>
    %cst_40 = arith.constant dense<0xFF800000> : vector<4x8xf32>
    %91 = vector.multi_reduction <maximumf>, %90, %cst_40 [2] : vector<4x8x8xf32> to vector<4x8xf32>
    %92 = vector.shape_cast %91 : vector<4x8xf32> to vector<4x8x1xf32>
    %93 = vector.broadcast %92 : vector<4x8x1xf32> to vector<4x8x8xf32>
    %94 = arith.subf %90, %93 : vector<4x8x8xf32>
    %95 = math.exp %94 : vector<4x8x8xf32>
    %cst_41 = arith.constant dense<0.000000e+00> : vector<4x8xf32>
    %96 = vector.multi_reduction <add>, %95, %cst_41 [2] : vector<4x8x8xf32> to vector<4x8xf32>
    %97 = vector.shape_cast %96 : vector<4x8xf32> to vector<4x8x1xf32>
    %98 = tpu.reciprocal %97 : vector<4x8x1xf32> -> vector<4x8x1xf32>
    %99 = vector.broadcast %98 : vector<4x8x1xf32> to vector<4x8x8xf32>
    %100 = arith.mulf %95, %99 : vector<4x8x8xf32>
    "tpu.trace_start"() <{level = 10 : i32, message = "hqk,khd->qhd"}> : () -> ()
    %cst_42 = arith.constant dense<0.000000e+00> : vector<4x8x8xf32>
    %101 = tpu.matmul %88, %100, %cst_42 {dimension_numbers = #tpu.dot_dimension_numbers<[0], [2], [2], [1], [0, 1, 0, 2, 1, 1], [1], [0]>} : vector<8x4x8xf32>, vector<4x8x8xf32>, vector<4x8x8xf32> -> vector<4x8x8xf32>
    %102 = tpu.transpose %101, [2, 0, 1] : vector<4x8x8xf32> -> vector<8x4x8xf32>
    "tpu.trace_stop"() : () -> ()
    %103 = vector.shape_cast %102 : vector<8x4x8xf32> to vector<8x32xf32>
    %c1_43 = arith.constant 1 : index
    %c0_44 = arith.constant 0 : index
    %c0_45 = arith.constant 0 : index
    %104 = vector.load %arg5[%c1_43, %c0_44, %c0_45] : memref<2x32x128xf32, #tpu.memory_space<vmem>>, vector<1x32x128xf32>
    %105 = vector.shape_cast %104 : vector<1x32x128xf32> to vector<32x128xf32>
    %cst_46 = arith.constant dense<0.000000e+00> : vector<8x128xf32>
    %106 = tpu.matmul %103, %105, %cst_46 {dimension_numbers = #tpu.dot_dimension_numbers<[1], [0], [0], [1], [0, 0, 1, 1], [], []>} : vector<8x32xf32>, vector<32x128xf32>, vector<8x128xf32> -> vector<8x128xf32>
    %107 = arith.addf %66, %106 : vector<8x128xf32>
    %108 = vector.extract_strided_slice %3 {offsets = [3, 0], sizes = [1, 128], strides = [1, 1]} : vector<5x128xf32> to vector<1x128xf32>
    %109 = arith.mulf %107, %107 : vector<8x128xf32>
    %cst_47 = arith.constant dense<0.000000e+00> : vector<8xf32>
    %110 = vector.multi_reduction <add>, %109, %cst_47 [1] : vector<8x128xf32> to vector<8xf32>
    %111 = vector.shape_cast %110 : vector<8xf32> to vector<8x1xf32>
    %cst_48 = arith.constant 3.125000e-02 : f32
    %112 = vector.broadcast %cst_48 : f32 to vector<8x1xf32>
    %113 = arith.mulf %111, %112 : vector<8x1xf32>
    %cst_49 = arith.constant 9.99999997E-7 : f32
    %114 = vector.broadcast %cst_49 : f32 to vector<8x1xf32>
    %115 = arith.addf %113, %114 : vector<8x1xf32>
    %116 = math.rsqrt %115 : vector<8x1xf32>
    %117 = vector.broadcast %116 : vector<8x1xf32> to vector<8x128xf32>
    %118 = arith.mulf %107, %117 : vector<8x128xf32>
    %119 = vector.broadcast %108 : vector<1x128xf32> to vector<8x128xf32>
    %120 = arith.mulf %118, %119 : vector<8x128xf32>
    %c1_50 = arith.constant 1 : index
    %c0_51 = arith.constant 0 : index
    %c0_52 = arith.constant 0 : index
    %121 = vector.load %arg6[%c1_50, %c0_51, %c0_52] : memref<2x128x128xf32, #tpu.memory_space<vmem>>, vector<1x128x128xf32>
    %122 = vector.shape_cast %121 : vector<1x128x128xf32> to vector<128x128xf32>
    %cst_53 = arith.constant dense<0.000000e+00> : vector<8x128xf32>
    %123 = tpu.matmul %120, %122, %cst_53 {dimension_numbers = #tpu.dot_dimension_numbers<[1], [0], [0], [1], [0, 0, 1, 1], [], []>} : vector<8x128xf32>, vector<128x128xf32>, vector<8x128xf32> -> vector<8x128xf32>
    %cst_54 = arith.constant 0.000000e+00 : f32
    %124 = vector.broadcast %cst_54 : f32 to vector<8x128xf32>
    %125 = arith.maximumf %123, %124 : vector<8x128xf32>
    %c1_55 = arith.constant 1 : index
    %c0_56 = arith.constant 0 : index
    %c0_57 = arith.constant 0 : index
    %126 = vector.load %arg7[%c1_55, %c0_56, %c0_57] : memref<2x128x128xf32, #tpu.memory_space<vmem>>, vector<1x128x128xf32>
    %127 = vector.shape_cast %126 : vector<1x128x128xf32> to vector<128x128xf32>
    %cst_58 = arith.constant dense<0.000000e+00> : vector<8x128xf32>
    %128 = tpu.matmul %125, %127, %cst_58 {dimension_numbers = #tpu.dot_dimension_numbers<[1], [0], [0], [1], [0, 0, 1, 1], [], []>} : vector<8x128xf32>, vector<128x128xf32>, vector<8x128xf32> -> vector<8x128xf32>
    %129 = arith.addf %107, %128 : vector<8x128xf32>
    %130 = vector.extract_strided_slice %3 {offsets = [4, 0], sizes = [1, 128], strides = [1, 1]} : vector<5x128xf32> to vector<1x128xf32>
    %131 = arith.mulf %129, %129 : vector<8x128xf32>
    %cst_59 = arith.constant dense<0.000000e+00> : vector<8xf32>
    %132 = vector.multi_reduction <add>, %131, %cst_59 [1] : vector<8x128xf32> to vector<8xf32>
    %133 = vector.shape_cast %132 : vector<8xf32> to vector<8x1xf32>
    %cst_60 = arith.constant 3.125000e-02 : f32
    %134 = vector.broadcast %cst_60 : f32 to vector<8x1xf32>
    %135 = arith.mulf %133, %134 : vector<8x1xf32>
    %cst_61 = arith.constant 9.99999997E-7 : f32
    %136 = vector.broadcast %cst_61 : f32 to vector<8x1xf32>
    %137 = arith.addf %135, %136 : vector<8x1xf32>
    %138 = math.rsqrt %137 : vector<8x1xf32>
    %139 = vector.broadcast %138 : vector<8x1xf32> to vector<8x128xf32>
    %140 = arith.mulf %129, %139 : vector<8x128xf32>
    %141 = vector.broadcast %130 : vector<1x128xf32> to vector<8x128xf32>
    %142 = arith.mulf %140, %141 : vector<8x128xf32>
    %c0_62 = arith.constant 0 : index
    %c0_63 = arith.constant 0 : index
    %143 = vector.load %arg8[%c0_62, %c0_63] : memref<8x128xf32, #tpu.memory_space<vmem>>, vector<8x128xf32>
    tpu.vector_store %arg8[%c0_62, %c0_63], %142 {strides = array<i32>} : memref<8x128xf32, #tpu.memory_space<vmem>>, vector<8x128xf32>,
    return
  }
  func.func @transform_0(%arg0: i32) -> (i32, i32) {
    %c0_i32 = arith.constant 0 : i32
    %c0_i32_0 = arith.constant 0 : i32
    return %arg0, %c0_i32 : i32, i32
  }
  func.func @transform_1(%arg0: i32) -> (i32, i32, i32, i32) {
    %c0_i32 = arith.constant 0 : i32
    %c0_i32_0 = arith.constant 0 : i32
    %c0_i32_1 = arith.constant 0 : i32
    %c0_i32_2 = arith.constant 0 : i32
    return %arg0, %c0_i32, %c0_i32_0, %c0_i32_1 : i32, i32, i32, i32
  }
  func.func @transform_2(%arg0: i32) -> (i32, i32) {
    %c0_i32 = arith.constant 0 : i32
    %c0_i32_0 = arith.constant 0 : i32
    %c0_i32_1 = arith.constant 0 : i32
    return %c0_i32, %c0_i32_0 : i32, i32
  }
  func.func @transform_3(%arg0: i32) -> (i32, i32, i32) {
    %c0_i32 = arith.constant 0 : i32
    %c0_i32_0 = arith.constant 0 : i32
    %c0_i32_1 = arith.constant 0 : i32
    %c0_i32_2 = arith.constant 0 : i32
    return %c0_i32, %c0_i32_0, %c0_i32_1 : i32, i32, i32
  }
  func.func @transform_4(%arg0: i32) -> (i32, i32, i32) {
    %c0_i32 = arith.constant 0 : i32
    %c0_i32_0 = arith.constant 0 : i32
    %c0_i32_1 = arith.constant 0 : i32
    %c0_i32_2 = arith.constant 0 : i32
    return %c0_i32, %c0_i32_0, %c0_i32_1 : i32, i32, i32
  }
  func.func @transform_5(%arg0: i32) -> (i32, i32, i32) {
    %c0_i32 = arith.constant 0 : i32
    %c0_i32_0 = arith.constant 0 : i32
    %c0_i32_1 = arith.constant 0 : i32
    %c0_i32_2 = arith.constant 0 : i32
    return %c0_i32, %c0_i32_0, %c0_i32_1 : i32, i32, i32
  }
  func.func @transform_6(%arg0: i32) -> (i32, i32, i32) {
    %c0_i32 = arith.constant 0 : i32
    %c0_i32_0 = arith.constant 0 : i32
    %c0_i32_1 = arith.constant 0 : i32
    %c0_i32_2 = arith.constant 0 : i32
    return %c0_i32, %c0_i32_0, %c0_i32_1 : i32, i32, i32
  }
  func.func @transform_7(%arg0: i32) -> (i32, i32) {
    %c0_i32 = arith.constant 0 : i32
    %c0_i32_0 = arith.constant 0 : i32
    return %arg0, %c0_i32 : i32, i32
  }
}

</mosaic_0001>

<llo_original>
// kernel: t5_encoder_forward.1
$region0: #{t5_encoder_forward.1}
  #allocation0 [shape = 'u32[]', space=smem, size = 0x4, offset = 0x4, fixed_abs, tag = 'smem constant byte address 0x4 - core index']
  #allocation1 [shape = 'u32[144,128]{1,0:T(1,128)}', space=vmem, size = 0x12000, scoped, tag = 'internal scratch']
  %s0 = inlined_call_operand.vmem [shape: f32[16,128], index: 0, kind: input, shape index: {}]
  %s1 = inlined_call_operand.vmem [shape: f32[2,4,8,8], index: 1, kind: input, shape index: {}]
  %s2 = inlined_call_operand.vmem [shape: f32[5,128], index: 2, kind: input, shape index: {}]
  %s3 = inlined_call_operand.vmem [shape: f32[2,128,96], index: 3, kind: input, shape index: {}]
  %s4 = inlined_call_operand.hbm [shape: f32[2,32,128], index: 4, kind: input, shape index: {}]
  %s5 = inlined_call_operand.vmem [shape: f32[2,128,128], index: 5, kind: input, shape index: {}]
  %s6 = inlined_call_operand.vmem [shape: f32[2,128,128], index: 6, kind: input, shape index: {}]
  %s7 = inlined_call_operand.vmem [shape: f32[16,128], index: 7, kind: output, shape index: {}]
  %s8 = sld [smem:[#allocation0]]
  $region65: #{t5_encoder_forward.1} parent=0
    _
  %s10 = ssub.s32 1, %s8
  %s11 = scalar_select 0, %s10, %s8
  $region1: #{t5_encoder_forward.1} parent=0
    #allocation2 [shape = 'u8[32768]{0}', space=vmem, size = 0x8000, scoped, tag = 'input window, operand 4, single buffered']
    #allocation3 [shape = 's32[2]{0}', space=sflag, size = 0x8, scoped, tag = 'scoped memory for t5_encoder_forward.1']
    %12 = vsyncpa [#allocation3], 0
    loop: start=0, step=1, limit=4
    $region2: #{t5_encoder_forward.1} parent=1 // loop_pre_header
      _
    $region3: #{t5_encoder_forward.1} parent=1 // loop_header
      %s14 = sphi 0, %s18
      %p15 = scmp.ge.s32.totalorder %s14, 4
      %s24 = sphi 0, %s26
      %s27 = sphi 0, %s24
      %s28 = sphi 0, %s27
      %s44 = sphi 0, %s28
      %s50 = sphi 0, %s52
      %s53 = sphi 0, %s50
      %s54 = sphi 0, %s53
      %s70 = sphi 0, %s54
      %s74 = sphi 0, %s74
      %s76 = sphi 0, %s74
      %s77 = sphi 0, %s76
      %s91 = sphi 0, %s77
      %s95 = sphi 0, %s95
      %s97 = sphi 0, %s95
      %s98 = sphi 0, %s97
      %s112 = sphi 0, %s98
      %s116 = sphi 0, %s116
      %s118 = sphi 0, %s116
      %s119 = sphi 0, %s118
      %s133 = sphi 0, %s119
      %s137 = sphi 0, %s137
      %s139 = sphi 0, %s137
      %s140 = sphi 0, %s139
      %s154 = sphi 0, %s140
      %s158 = sphi 0, %s158
      %s160 = sphi 0, %s158
      %s161 = sphi 0, %s160
      %s175 = sphi 0, %s161
      %s181 = sphi 0, %s183
      %s184 = sphi 0, %s181
      %s185 = sphi 0, %s184
      %s201 = sphi 0, %s185
    $region4: #{t5_encoder_forward.1} parent=1 // loop_header_branch
      %17 = sbr.rel (%p15) target = $region8
    $region5: #{t5_encoder_forward.1} parent=1 // loop_body
      %s19 = ssub.s32 %s14, 1
      %s20 = ssub.s32 %s14, 2
      %s21 = sadd.s32 %s14, 1
      %s22 = ssub.s32 %s14, %s21
      %p23 = scmp.eq.s32.totalorder %s22, 0
      %s25 = sadd.s32 %s24, 1
      %s26 = scalar_select %p23, %s24, %s25
      %p29 = pneg %p23
      %p30 = scmp.eq.s32.totalorder %s14, 1
      %p31 = por %p29, %p30
      %p32 = scmp.ne.s32.totalorder %s24, %s27
      %p33 = scmp.eq.s32.totalorder %s14, 0
      %p34 = por %p32, %p33
      %p35 = scmp.ne.s32.totalorder %s24, %s27
      %p36 = scmp.eq.s32.totalorder %s19, 1
      %p37 = por %p35, %p36
      %p38 = scmp.ne.s32.totalorder %s27, %s28
      %p39 = scmp.eq.s32.totalorder %s19, 0
      %p40 = por %p38, %p39
      %p41 = scmp.ne.s32.totalorder %s27, %s28
      %p42 = scmp.eq.s32.totalorder %s20, 1
      %p43 = por %p41, %p42
      %p45 = scmp.ne.s32.totalorder %s28, %s44
      %p46 = scmp.eq.s32.totalorder %s20, 0
      %p47 = por %p45, %p46
      %s48 = ssub.s32 %s14, %s21
      %p49 = scmp.eq.s32.totalorder %s48, 0
      %s51 = sadd.s32 %s50, 1
      %s52 = scalar_select %p49, %s50, %s51
      %p55 = pneg %p49
      %p56 = scmp.eq.s32.totalorder %s14, 1
      %p57 = por %p55, %p56
      %p58 = scmp.ne.s32.totalorder %s50, %s53
      %p59 = scmp.eq.s32.totalorder %s14, 0
      %p60 = por %p58, %p59
      %p61 = scmp.ne.s32.totalorder %s50, %s53
      %p62 = scmp.eq.s32.totalorder %s19, 1
      %p63 = por %p61, %p62
      %p64 = scmp.ne.s32.totalorder %s53, %s54
      %p65 = scmp.eq.s32.totalorder %s19, 0
      %p66 = por %p64, %p65
      %p67 = scmp.ne.s32.totalorder %s53, %s54
      %p68 = scmp.eq.s32.totalorder %s20, 1
      %p69 = por %p67, %p68
      %p71 = scmp.ne.s32.totalorder %s54, %s70
      %p72 = scmp.eq.s32.totalorder %s20, 0
      %p73 = por %p71, %p72
      %s75 = sadd.s32 %s74, 1
      %p78 = scmp.eq.s32.totalorder %s14, 1
      %p79 = scmp.ne.s32.totalorder %s74, %s76
      %p80 = scmp.eq.s32.totalorder %s14, 0
      %p81 = por %p79, %p80
      %p82 = scmp.ne.s32.totalorder %s74, %s76
      %p83 = scmp.eq.s32.totalorder %s19, 1
      %p84 = por %p82, %p83
      %p85 = scmp.ne.s32.totalorder %s76, %s77
      %p86 = scmp.eq.s32.totalorder %s19, 0
      %p87 = por %p85, %p86
      %p88 = scmp.ne.s32.totalorder %s76, %s77
      %p89 = scmp.eq.s32.totalorder %s20, 1
      %p90 = por %p88, %p89
      %p92 = scmp.ne.s32.totalorder %s77, %s91
      %p93 = scmp.eq.s32.totalorder %s20, 0
      %p94 = por %p92, %p93
      %s96 = sadd.s32 %s95, 1
      %p99 = scmp.eq.s32.totalorder %s14, 1
      %p100 = scmp.ne.s32.totalorder %s95, %s97
      %p101 = scmp.eq.s32.totalorder %s14, 0
      %p102 = por %p100, %p101
      %p103 = scmp.ne.s32.totalorder %s95, %s97
      %p104 = scmp.eq.s32.totalorder %s19, 1
      %p105 = por %p103, %p104
      %p106 = scmp.ne.s32.totalorder %s97, %s98
      %p107 = scmp.eq.s32.totalorder %s19, 0
      %p108 = por %p106, %p107
      %p109 = scmp.ne.s32.totalorder %s97, %s98
      %p110 = scmp.eq.s32.totalorder %s20, 1
      %p111 = por %p109, %p110
      %p113 = scmp.ne.s32.totalorder %s98, %s112
      %p114 = scmp.eq.s32.totalorder %s20, 0
      %p115 = por %p113, %p114
      %s117 = sadd.s32 %s116, 1
      %p120 = scmp.eq.s32.totalorder %s14, 1
      %p121 = scmp.ne.s32.totalorder %s116, %s118
      %p122 = scmp.eq.s32.totalorder %s14, 0
      %p123 = por %p121, %p122
      %p124 = scmp.ne.s32.totalorder %s116, %s118
      %p125 = scmp.eq.s32.totalorder %s19, 1
      %p126 = por %p124, %p125
      %p127 = scmp.ne.s32.totalorder %s118, %s119
      %p128 = scmp.eq.s32.totalorder %s19, 0
      %p129 = por %p127, %p128
      %p130 = scmp.ne.s32.totalorder %s118, %s119
      %p131 = scmp.eq.s32.totalorder %s20, 1
      %p132 = por %p130, %p131
      %p134 = scmp.ne.s32.totalorder %s119, %s133
      %p135 = scmp.eq.s32.totalorder %s20, 0
      %p136 = por %p134, %p135
      %s138 = sadd.s32 %s137, 1
      %p141 = scmp.eq.s32.totalorder %s14, 1
      %p142 = scmp.ne.s32.totalorder %s137, %s139
      %p143 = scmp.eq.s32.totalorder %s14, 0
      %p144 = por %p142, %p143
      %p145 = scmp.ne.s32.totalorder %s137, %s139
      %p146 = scmp.eq.s32.totalorder %s19, 1
      %p147 = por %p145, %p146
      %p148 = scmp.ne.s32.totalorder %s139, %s140
      %p149 = scmp.eq.s32.totalorder %s19, 0
      %p150 = por %p148, %p149
      %p151 = scmp.ne.s32.totalorder %s139, %s140
      %p152 = scmp.eq.s32.totalorder %s20, 1
      %p153 = por %p151, %p152
      %p155 = scmp.ne.s32.totalorder %s140, %s154
      %p156 = scmp.eq.s32.totalorder %s20, 0
      %p157 = por %p155, %p156
      %s159 = sadd.s32 %s158, 1
      %p162 = scmp.eq.s32.totalorder %s14, 1
      %p163 = scmp.ne.s32.totalorder %s158, %s160
      %p164 = scmp.eq.s32.totalorder %s14, 0
      %p165 = por %p163, %p164
      %p166 = scmp.ne.s32.totalorder %s158, %s160
      %p167 = scmp.eq.s32.totalorder %s19, 1
      %p168 = por %p166, %p167
      %p169 = scmp.ne.s32.totalorder %s160, %s161
      %p170 = scmp.eq.s32.totalorder %s19, 0
      %p171 = por %p169, %p170
      %p172 = scmp.ne.s32.totalorder %s160, %s161
      %p173 = scmp.eq.s32.totalorder %s20, 1
      %p174 = por %p172, %p173
      %p176 = scmp.ne.s32.totalorder %s161, %s175
      %p177 = scmp.eq.s32.totalorder %s20, 0
      %p178 = por %p176, %p177
      %s179 = ssub.s32 %s14, %s21
      %p180 = scmp.eq.s32.totalorder %s179, 0
      %s182 = sadd.s32 %s181, 1
      %s183 = scalar_select %p180, %s181, %s182
      %p186 = pneg %p180
      %p187 = scmp.eq.s32.totalorder %s14, 1
      %p188 = por %p186, %p187
      %p189 = scmp.ne.s32.totalorder %s181, %s184
      %p190 = scmp.eq.s32.totalorder %s14, 0
      %p191 = por %p189, %p190
      %p192 = scmp.ne.s32.totalorder %s181, %s184
      %p193 = scmp.eq.s32.totalorder %s19, 1
      %p194 = por %p192, %p193
      %p195 = scmp.ne.s32.totalorder %s184, %s185
      %p196 = scmp.eq.s32.totalorder %s19, 0
      %p197 = por %p195, %p196
      %p198 = scmp.ne.s32.totalorder %s184, %s185
      %p199 = scmp.eq.s32.totalorder %s20, 1
      %p200 = por %p198, %p199
      %p202 = scmp.ne.s32.totalorder %s185, %s201
      %p203 = scmp.eq.s32.totalorder %s20, 0
      %p204 = por %p202, %p203
      %p205 = scmp.le.s32.totalorder 1, %s14
      %p206 = scmp.lt.s32.totalorder %s14, 3
      %p207 = pnand %p205, %p206
      %p208 = pneg %p207
      // Predicated region
      $region9: #{t5_encoder_forward.1} parent=5 // pred_check
        _
      $region10: #{t5_encoder_forward.1} parent=5 // pred_check_branch
        %210 = sbr.rel (%p207) target = $region12
      $region11: #{t5_encoder_forward.1} parent=5 // pred_region
        %s211 = ssub.s32 %s14, 1
        // Predicated region
        $region13: #{t5_encoder_forward.1} parent=11 // pred_check
          %p212 = pneg %p87
        $region14: #{t5_encoder_forward.1} parent=11 // pred_check_branch
          %214 = sbr.rel (%p212) target = $region16
        $region15: #{t5_encoder_forward.1} parent=11 // pred_region
          _
        $region16: #{t5_encoder_forward.1} parent=11 // pred_fallthru
          _
        // Predicated region
        $region17: #{t5_encoder_forward.1} parent=11 // pred_check
          %p215 = pneg %p108
        $region18: #{t5_encoder_forward.1} parent=11 // pred_check_branch
          %217 = sbr.rel (%p215) target = $region20
        $region19: #{t5_encoder_forward.1} parent=11 // pred_region
          _
        $region20: #{t5_encoder_forward.1} parent=11 // pred_fallthru
          _
        // Predicated region
        $region21: #{t5_encoder_forward.1} parent=11 // pred_check
          %p218 = pneg %p129
        $region22: #{t5_encoder_forward.1} parent=11 // pred_check_branch
          %220 = sbr.rel (%p218) target = $region24
        $region23: #{t5_encoder_forward.1} parent=11 // pred_region
          %s222 = ssub.s32 1024, 1024
          %223 = vsyncadd [#allocation3], %s222
          %s224 = sshll.u32 [#allocation2], 4
          %s225 = int_to_ptr.vmem [resolvable:$true] %s224
          %230 = dma.hbm_to_vmem [thread:$0]  %s4, 1024, %s225, [#allocation3], 128, 128, 8
        $region24: #{t5_encoder_forward.1} parent=11 // pred_fallthru
          _
        // Predicated region
        $region25: #{t5_encoder_forward.1} parent=11 // pred_check
          %p231 = pneg %p150
        $region26: #{t5_encoder_forward.1} parent=11 // pred_check_branch
          %233 = sbr.rel (%p231) target = $region28
        $region27: #{t5_encoder_forward.1} parent=11 // pred_region
          _
        $region28: #{t5_encoder_forward.1} parent=11 // pred_fallthru
          _
        // Predicated region
        $region29: #{t5_encoder_forward.1} parent=11 // pred_check
          %p234 = pneg %p171
        $region30: #{t5_encoder_forward.1} parent=11 // pred_check_branch
          %236 = sbr.rel (%p234) target = $region32
        $region31: #{t5_encoder_forward.1} parent=11 // pred_region
          _
        $region32: #{t5_encoder_forward.1} parent=11 // pred_fallthru
          _
      $region12: #{t5_encoder_forward.1} parent=5 // pred_fallthru
        _
      %p237 = scmp.lt.s32.totalorder %s14, 2
      // Predicated region
      $region33: #{t5_encoder_forward.1} parent=5 // pred_check
        %p238 = pneg %p237
      $region34: #{t5_encoder_forward.1} parent=5 // pred_check_branch
        %240 = sbr.rel (%p238) target = $region36
      $region35: #{t5_encoder_forward.1} parent=5 // pred_region
        // Predicated region
        $region37: #{t5_encoder_forward.1} parent=35 // pred_check
          %p241 = pneg %p34
        $region38: #{t5_encoder_forward.1} parent=35 // pred_check_branch
          %243 = sbr.rel (%p241) target = $region40
        $region39: #{t5_encoder_forward.1} parent=35 // pred_region
          %p244 = scmp.lt.s32.totalorder %s14, 1
          %s245 = scalar_select %p244, %s14, 1
          %s246 = smul.addr %s245, 8
          %s247 = scalar_lea.vmem %s0, %s246
        $region40: #{t5_encoder_forward.1} parent=35 // pred_fallthru
          _
        // Predicated region
        $region41: #{t5_encoder_forward.1} parent=35 // pred_check
          %p248 = pneg %p60
        $region42: #{t5_encoder_forward.1} parent=35 // pred_check_branch
          %250 = sbr.rel (%p248) target = $region44
        $region43: #{t5_encoder_forward.1} parent=35 // pred_region
          %p251 = scmp.lt.s32.totalorder %s14, 1
          %s252 = scalar_select %p251, %s14, 1
          %s253 = smul.addr %s252, 4
          %s254 = smul.addr %s253, 8
          %s255 = scalar_lea.vmem %s1, %s254
        $region44: #{t5_encoder_forward.1} parent=35 // pred_fallthru
          _
      $region36: #{t5_encoder_forward.1} parent=5 // pred_fallthru
        _
      %p256 = scmp.le.s32.totalorder 1, %s14
      %p257 = scmp.lt.s32.totalorder %s14, 3
      %p258 = pnand %p256, %p257
      %p259 = pneg %p258
      // Predicated region
      $region45: #{t5_encoder_forward.1} parent=5 // pred_check
        _
      $region46: #{t5_encoder_forward.1} parent=5 // pred_check_branch
        %261 = sbr.rel (%p258) target = $region48
      $region47: #{t5_encoder_forward.1} parent=5 // pred_region
        %s262 = ssub.s32 %s14, 1
        // Predicated region
        $region49: #{t5_encoder_forward.1} parent=47 // pred_check
          %p263 = pneg %p129
        $region50: #{t5_encoder_forward.1} parent=47 // pred_check_branch
          %265 = sbr.rel (%p263) target = $region52
        $region51: #{t5_encoder_forward.1} parent=47 // pred_region
          %266 = dma.done [#allocation3], 1024
        $region52: #{t5_encoder_forward.1} parent=47 // pred_fallthru
          _
        %p267 = scmp.lt.s32.totalorder %s19, 1
        %s268 = scalar_select %p267, %s19, 1
        %s269 = smul.addr %s268, 8
        %s270 = scalar_lea.vmem %s0, %s269
        %p271 = pneg %p40
        %p272 = pneg %p37
        %p273 = scmp.lt.s32.totalorder %s19, 1
        %s274 = scalar_select %p273, %s19, 1
        %s275 = smul.addr %s274, 4
        %s276 = smul.addr %s275, 8
        %s277 = scalar_lea.vmem %s1, %s276
        %p278 = pneg %p66
        %p279 = pneg %p63
        %p280 = pneg %p87
        %p281 = pneg %p84
        %p282 = pneg %p108
        %p283 = pneg %p105
        %p284 = pneg %p129
        %p285 = pneg %p126
        %p286 = pneg %p150
        %p287 = pneg %p147
        %p288 = pneg %p171
        %p289 = pneg %p168
        %p290 = pneg %p197
        %p291 = pneg %p194
        %p292 = scmp.lt.s32.totalorder %s19, 1
        %s293 = scalar_select %p292, %s19, 1
        %s294 = smul.addr %s293, 8
        %s295 = scalar_lea.vmem %s7, %s294
        %p296 = scmp.lt.s32.totalorder %s19, 1
        %s297 = scalar_select %p296, %s19, 1
        %s298 = smul.addr %s297, 8
        %s299 = scalar_lea.vmem %s0, %s298
        %p300 = scmp.lt.s32.totalorder %s19, 1
        %s301 = scalar_select %p300, %s19, 1
        %s302 = smul.addr %s301, 4
        %s303 = smul.addr %s302, 8
        %s304 = scalar_lea.vmem %s1, %s303
        %p305 = scmp.lt.s32.totalorder %s19, 1
        %s306 = scalar_select %p305, %s19, 1
        %s307 = smul.addr %s306, 8
        %s308 = scalar_lea.vmem %s7, %s307
        %v309 = vld [vmem:[%s299] sm:$0xff]
        %v310 = vld [vmem:[%s304] sm:$0xff]
        %v311 = vld [vmem:[%s304 + $0x8] sm:$0xff]
        %v312 = vld [vmem:[%s304 + $0x10] sm:$0xff]
        %v313 = vld [vmem:[%s304 + $0x18] sm:$0xff]
        %v314 = vld [vmem:[%s2] sm:$0x1f]
        %v315 = vmul.f32 %v309, %v309
        %316 = vadd.xlane.f32.xlu0 %v315
        %v317 = vpop.xlane.xlu0 %316
        %v318 = vmul.f32 %v317, 0.03125
        %v319 = vadd.f32 %v318, 1e-06
        %v320 = vrsqrt.pop %v319
        %v321 = vmul.f32 %v309, %v320
        %v322 = vlaneseq
        %v323 = vshrl.u32 %v322, 7
        %v324 = vsub.s32 0, %v323
        %v325 = vrot.slane %v314, %v324
        %v326 = vmul.f32 %v321, %v325
        %v327 = vld [vmem:[%s3] sm:$0xff]
        %v328 = vld [vmem:[%s3 + $0x8] sm:$0xff]
        %v329 = vld [vmem:[%s3 + $0x10] sm:$0xff]
        %v330 = vld [vmem:[%s3 + $0x18] sm:$0xff]
        %v331 = vld [vmem:[%s3 + $0x20] sm:$0xff]
        %v332 = vld [vmem:[%s3 + $0x28] sm:$0xff]
        %v333 = vld [vmem:[%s3 + $0x30] sm:$0xff]
        %v334 = vld [vmem:[%s3 + $0x38] sm:$0xff]
        %v335 = vld [vmem:[%s3 + $0x40] sm:$0xff]
        %v336 = vld [vmem:[%s3 + $0x48] sm:$0xff]
        %v337 = vld [vmem:[%s3 + $0x50] sm:$0xff]
        %v338 = vld [vmem:[%s3 + $0x58] sm:$0xff]
        %v339 = vld [vmem:[%s3 + $0x60] sm:$0xff]
        %v340 = vld [vmem:[%s3 + $0x68] sm:$0xff]
        %v341 = vld [vmem:[%s3 + $0x70] sm:$0xff]
        %v342 = vld [vmem:[%s3 + $0x78] sm:$0xff]
        %343 = vmatprep.subr.mxu0 0.0
        %344 = vmatpush1.msra.mxu0 %v342
        %345 = vmatprep.subr.mxu0 0.0
        %346 = vmatpush1.msra.mxu0 %v341
        %347 = vmatprep.subr.mxu0 0.0
        %348 = vmatpush1.msra.mxu0 %v340
        %349 = vmatprep.subr.mxu0 0.0
        %350 = vmatpush1.msra.mxu0 %v339
        %351 = vmatprep.subr.mxu0 0.0
        %352 = vmatpush1.msra.mxu0 %v338
        %353 = vmatprep.subr.mxu0 0.0
        %354 = vmatpush1.msra.mxu0 %v337
        %355 = vmatprep.subr.mxu0 0.0
        %356 = vmatpush1.msra.mxu0 %v336
        %357 = vmatprep.subr.mxu0 0.0
        %358 = vmatpush1.msra.mxu0 %v335
        %359 = vmatprep.subr.mxu0 0.0
        %360 = vmatpush1.msra.mxu0 %v334
        %361 = vmatprep.subr.mxu0 0.0
        %362 = vmatpush1.msra.mxu0 %v333
        %363 = vmatprep.subr.mxu0 0.0
        %364 = vmatpush1.msra.mxu0 %v332
        %365 = vmatprep.subr.mxu0 0.0
        %366 = vmatpush1.msra.mxu0 %v331
        %367 = vmatprep.subr.mxu0 0.0
        %368 = vmatpush1.msra.mxu0 %v330
        %369 = vmatprep.subr.mxu0 0.0
        %370 = vmatpush1.msra.mxu0 %v329
        %371 = vmatprep.subr.mxu0 0.0
        %372 = vmatpush1.msra.mxu0 %v328
        %373 = vmatprep.subr.mxu0 0.0
        %374 = vmatpush1.msra.mxu0 %v327
        %375 = vmatprep.subr.mxu0 0.0
        %376 = vmatpush2.msra.mxu0 0.0
        %377 = vmatprep.subr.mxu0 0.0
        %378 = vmatpush2.msra.mxu0 0.0
        %379 = vmatprep.subr.mxu0 0.0
        %380 = vmatpush2.msra.mxu0 0.0
        %381 = vmatprep.subr.mxu0 0.0
        %382 = vmatpush2.msra.mxu0 0.0
        %383 = vmatprep.subr.mxu0 0.0
        %384 = vmatpush2.msra.mxu0 0.0
        %385 = vmatprep.subr.mxu0 0.0
        %386 = vmatpush2.msra.mxu0 0.0
        %387 = vmatprep.subr.mxu0 0.0
        %388 = vmatpush2.msra.mxu0 0.0
        %389 = vmatprep.subr.mxu0 0.0
        %390 = vmatpush2.msra.mxu0 0.0
        %391 = vmatprep.subr.mxu0 0.0
        %392 = vmatpush2.msra.mxu0 0.0
        %393 = vmatprep.subr.mxu0 0.0
        %394 = vmatpush2.msra.mxu0 0.0
        %395 = vmatprep.subr.mxu0 0.0
        %396 = vmatpush2.msra.mxu0 0.0
        %397 = vmatprep.subr.mxu0 0.0
        %398 = vmatpush2.msra.mxu0 0.0
        %399 = vmatprep.subr.mxu0 0.0
        %400 = vmatpush2.msra.mxu0 0.0
        %401 = vmatprep.subr.mxu0 0.0
        %402 = vmatpush2.msra.mxu0 0.0
        %403 = vmatprep.subr.mxu0 0.0
        %404 = vmatpush2.msra.mxu0 0.0
        %405 = vmatprep.subr.mxu0 0.0
        %406 = vmatpush2.msra.mxu0 0.0
        %407 = vmatprep.mubr.f32.mxu0 0.0
        %408 = vmatmul.mubr.f32.gmra.mxu0 %v326
        %v409 = vpop.f32.mrf.mxu0
        %v410 = vadd.f32 0.0, %v409
        %v411 = vpop.f32.mrf.mxu0
        %412 = vdwg.mxu0
        %414 = vrot.lane.b32.xlu0 %v410, 120
        %v415 = vpop.permute.xlu0 %414
        %416 = vrot.lane.b32.xlu0 %v410, 112
        %v417 = vpop.permute.xlu0 %416
        %418 = vrot.lane.b32.xlu0 %v410, 104
        %v419 = vpop.permute.xlu0 %418
        %420 = vrot.lane.b32.xlu0 %v410, 96
        %v421 = vpop.permute.xlu0 %420
        %422 = vrot.lane.b32.xlu0 %v415, 96
        %v423 = vpop.permute.xlu0 %422
        %424 = vrot.lane.b32.xlu0 %v417, 96
        %v425 = vpop.permute.xlu0 %424
        %426 = vrot.lane.b32.xlu0 %v419, 96
        %v427 = vpop.permute.xlu0 %426
        %432 = vxpose.xlu0.b32.start [1/16] %v421, 128
        %433 = vxpose.xlu0.b32.cont [2/16] 0.0, 128
        %434 = vxpose.xlu0.b32.cont [3/16] 0.0, 128
        %435 = vxpose.xlu0.b32.cont [4/16] 0.0, 128
        %436 = vxpose.xlu0.b32.cont [5/16] 0.0, 128
        %437 = vxpose.xlu0.b32.cont [6/16] 0.0, 128
        %438 = vxpose.xlu0.b32.cont [7/16] 0.0, 128
        %439 = vxpose.xlu0.b32.cont [8/16] 0.0, 128
        %440 = vxpose.xlu0.b32.cont [9/16] 0.0, 128
        %441 = vxpose.xlu0.b32.cont [10/16] 0.0, 128
        %442 = vxpose.xlu0.b32.cont [11/16] 0.0, 128
        %443 = vxpose.xlu0.b32.cont [12/16] 0.0, 128
        %444 = vxpose.xlu0.b32.cont [13/16] 0.0, 128
        %445 = vxpose.xlu0.b32.cont [14/16] 0.0, 128
        %446 = vxpose.xlu0.b32.cont [15/16] 0.0, 128
        %447 = vxpose.xlu0.b32.end [16/16] 0.0, 128
        %v448 = vpop.trf.xlu0
        %v449 = vpop.trf.xlu0
        %v450 = vpop.trf.xlu0
        %v451 = vpop.trf.xlu0
        %v452 = vpop.trf.xlu0
        %v453 = vpop.trf.xlu0
        %v454 = vpop.trf.xlu0
        %v455 = vpop.trf.xlu0
        %v456 = vpop.trf.xlu0
        %v457 = vpop.trf.xlu0
        %v458 = vpop.trf.xlu0
        %v459 = vpop.trf.xlu0
        %v460 = vpop.trf.xlu0
        %v461 = vpop.trf.xlu0
        %v462 = vpop.trf.xlu0
        %v463 = vpop.trf.xlu0
        %464 = vxpose.xlu0.b32.start [1/16] %v423, 128
        %465 = vxpose.xlu0.b32.cont [2/16] 0.0, 128
        %466 = vxpose.xlu0.b32.cont [3/16] 0.0, 128
        %467 = vxpose.xlu0.b32.cont [4/16] 0.0, 128
        %468 = vxpose.xlu0.b32.cont [5/16] 0.0, 128
        %469 = vxpose.xlu0.b32.cont [6/16] 0.0, 128
        %470 = vxpose.xlu0.b32.cont [7/16] 0.0, 128
        %471 = vxpose.xlu0.b32.cont [8/16] 0.0, 128
        %472 = vxpose.xlu0.b32.cont [9/16] 0.0, 128
        %473 = vxpose.xlu0.b32.cont [10/16] 0.0, 128
        %474 = vxpose.xlu0.b32.cont [11/16] 0.0, 128
        %475 = vxpose.xlu0.b32.cont [12/16] 0.0, 128
        %476 = vxpose.xlu0.b32.cont [13/16] 0.0, 128
        %477 = vxpose.xlu0.b32.cont [14/16] 0.0, 128
        %478 = vxpose.xlu0.b32.cont [15/16] 0.0, 128
        %479 = vxpose.xlu0.b32.end [16/16] 0.0, 128
        %v480 = vpop.trf.xlu0
        %v481 = vpop.trf.xlu0
        %v482 = vpop.trf.xlu0
        %v483 = vpop.trf.xlu0
        %v484 = vpop.trf.xlu0
        %v485 = vpop.trf.xlu0
        %v486 = vpop.trf.xlu0
        %v487 = vpop.trf.xlu0
        %v488 = vpop.trf.xlu0
        %v489 = vpop.trf.xlu0
        %v490 = vpop.trf.xlu0
        %v491 = vpop.trf.xlu0
        %v492 = vpop.trf.xlu0
        %v493 = vpop.trf.xlu0
        %v494 = vpop.trf.xlu0
        %v495 = vpop.trf.xlu0
        %496 = vxpose.xlu0.b32.start [1/16] %v425, 128
        %497 = vxpose.xlu0.b32.cont [2/16] 0.0, 128
        %498 = vxpose.xlu0.b32.cont [3/16] 0.0, 128
        %499 = vxpose.xlu0.b32.cont [4/16] 0.0, 128
        %500 = vxpose.xlu0.b32.cont [5/16] 0.0, 128
        %501 = vxpose.xlu0.b32.cont [6/16] 0.0, 128
        %502 = vxpose.xlu0.b32.cont [7/16] 0.0, 128
        %503 = vxpose.xlu0.b32.cont [8/16] 0.0, 128
        %504 = vxpose.xlu0.b32.cont [9/16] 0.0, 128
        %505 = vxpose.xlu0.b32.cont [10/16] 0.0, 128
        %506 = vxpose.xlu0.b32.cont [11/16] 0.0, 128
        %507 = vxpose.xlu0.b32.cont [12/16] 0.0, 128
        %508 = vxpose.xlu0.b32.cont [13/16] 0.0, 128
        %509 = vxpose.xlu0.b32.cont [14/16] 0.0, 128
        %510 = vxpose.xlu0.b32.cont [15/16] 0.0, 128
        %511 = vxpose.xlu0.b32.end [16/16] 0.0, 128
        %v512 = vpop.trf.xlu0
        %v513 = vpop.trf.xlu0
        %v514 = vpop.trf.xlu0
        %v515 = vpop.trf.xlu0
        %v516 = vpop.trf.xlu0
        %v517 = vpop.trf.xlu0
        %v518 = vpop.trf.xlu0
        %v519 = vpop.trf.xlu0
        %v520 = vpop.trf.xlu0
        %v521 = vpop.trf.xlu0
        %v522 = vpop.trf.xlu0
        %v523 = vpop.trf.xlu0
        %v524 = vpop.trf.xlu0
        %v525 = vpop.trf.xlu0
        %v526 = vpop.trf.xlu0
        %v527 = vpop.trf.xlu0
        %528 = vxpose.xlu0.b32.start [1/16] %v427, 128
        %529 = vxpose.xlu0.b32.cont [2/16] 0.0, 128
        %530 = vxpose.xlu0.b32.cont [3/16] 0.0, 128
        %531 = vxpose.xlu0.b32.cont [4/16] 0.0, 128
        %532 = vxpose.xlu0.b32.cont [5/16] 0.0, 128
        %533 = vxpose.xlu0.b32.cont [6/16] 0.0, 128
        %534 = vxpose.xlu0.b32.cont [7/16] 0.0, 128
        %535 = vxpose.xlu0.b32.cont [8/16] 0.0, 128
        %536 = vxpose.xlu0.b32.cont [9/16] 0.0, 128
        %537 = vxpose.xlu0.b32.cont [10/16] 0.0, 128
        %538 = vxpose.xlu0.b32.cont [11/16] 0.0, 128
        %539 = vxpose.xlu0.b32.cont [12/16] 0.0, 128
        %540 = vxpose.xlu0.b32.cont [13/16] 0.0, 128
        %541 = vxpose.xlu0.b32.cont [14/16] 0.0, 128
        %542 = vxpose.xlu0.b32.cont [15/16] 0.0, 128
        %543 = vxpose.xlu0.b32.end [16/16] 0.0, 128
        %v544 = vpop.trf.xlu0
        %v545 = vpop.trf.xlu0
        %v546 = vpop.trf.xlu0
        %v547 = vpop.trf.xlu0
        %v548 = vpop.trf.xlu0
        %v549 = vpop.trf.xlu0
        %v550 = vpop.trf.xlu0
        %v551 = vpop.trf.xlu0
        %v552 = vpop.trf.xlu0
        %v553 = vpop.trf.xlu0
        %v554 = vpop.trf.xlu0
        %v555 = vpop.trf.xlu0
        %v556 = vpop.trf.xlu0
        %v557 = vpop.trf.xlu0
        %v558 = vpop.trf.xlu0
        %v559 = vpop.trf.xlu0
        %vm560 = vcmask 64512
        %v561 = vsel %vm560, %v410, 0
        %563 = vmatprep.subr.mxu0 0.0
        %564 = vmatpush1.msra.mxu0 0.0
        %565 = vmatprep.subr.mxu0 0.0
        %566 = vmatpush1.msra.mxu0 0.0
        %567 = vmatprep.subr.mxu0 0.0
        %568 = vmatpush1.msra.mxu0 0.0
        %569 = vmatprep.subr.mxu0 0.0
        %570 = vmatpush1.msra.mxu0 0.0
        %571 = vmatprep.subr.mxu0 0.0
        %572 = vmatpush1.msra.mxu0 0.0
        %573 = vmatprep.subr.mxu0 0.0
        %574 = vmatpush1.msra.mxu0 0.0
        %575 = vmatprep.subr.mxu0 0.0
        %576 = vmatpush1.msra.mxu0 0.0
        %577 = vmatprep.subr.mxu0 0.0
        %578 = vmatpush1.msra.mxu0 0.0
        %579 = vmatprep.subr.mxu0 0.0
        %580 = vmatpush1.msra.mxu0 0.0
        %581 = vmatprep.subr.mxu0 0.0
        %582 = vmatpush1.msra.mxu0 0.0
        %583 = vmatprep.subr.mxu0 0.0
        %584 = vmatpush1.msra.mxu0 0.0
        %585 = vmatprep.subr.mxu0 0.0
        %586 = vmatpush1.msra.mxu0 0.0
        %587 = vmatprep.subr.mxu0 0.0
        %588 = vmatpush1.msra.mxu0 0.0
        %589 = vmatprep.subr.mxu0 0.0
        %590 = vmatpush1.msra.mxu0 0.0
        %591 = vmatprep.subr.mxu0 0.0
        %592 = vmatpush1.msra.mxu0 0.0
        %593 = vmatprep.subr.mxu0 0.0
        %594 = vmatpush1.msra.mxu0 %v448
        %595 = vmatprep.subr.mxu0 0.0
        %596 = vmatpush2.msra.mxu0 0.0
        %597 = vmatprep.subr.mxu0 0.0
        %598 = vmatpush2.msra.mxu0 0.0
        %599 = vmatprep.subr.mxu0 0.0
        %600 = vmatpush2.msra.mxu0 0.0
        %601 = vmatprep.subr.mxu0 0.0
        %602 = vmatpush2.msra.mxu0 0.0
        %603 = vmatprep.subr.mxu0 0.0
        %604 = vmatpush2.msra.mxu0 0.0
        %605 = vmatprep.subr.mxu0 0.0
        %606 = vmatpush2.msra.mxu0 0.0
        %607 = vmatprep.subr.mxu0 0.0
        %608 = vmatpush2.msra.mxu0 0.0
        %609 = vmatprep.subr.mxu0 0.0
        %610 = vmatpush2.msra.mxu0 0.0
        %611 = vmatprep.subr.mxu0 0.0
        %612 = vmatpush2.msra.mxu0 0.0
        %613 = vmatprep.subr.mxu0 0.0
        %614 = vmatpush2.msra.mxu0 0.0
        %615 = vmatprep.subr.mxu0 0.0
        %616 = vmatpush2.msra.mxu0 0.0
        %617 = vmatprep.subr.mxu0 0.0
        %618 = vmatpush2.msra.mxu0 0.0
        %619 = vmatprep.subr.mxu0 0.0
        %620 = vmatpush2.msra.mxu0 0.0
        %621 = vmatprep.subr.mxu0 0.0
        %622 = vmatpush2.msra.mxu0 0.0
        %623 = vmatprep.subr.mxu0 0.0
        %624 = vmatpush2.msra.mxu0 0.0
        %625 = vmatprep.subr.mxu0 0.0
        %626 = vmatpush2.msra.mxu0 0.0
        %627 = vmatprep.mubr.f32.mxu0 0.0
        %628 = vmatmul.mubr.f32.gmra.mxu0 %v561
        %v629 = vpop.f32.mrf.mxu0
        %v630 = vadd.f32 %v310, %v629
        %v631 = vpop.f32.mrf.mxu0
        %632 = vdwg.mxu0
        %v633 = vsel %vm560, %v415, 0
        %635 = vmatprep.subr.mxu0 0.0
        %636 = vmatpush1.msra.mxu0 0.0
        %637 = vmatprep.subr.mxu0 0.0
        %638 = vmatpush1.msra.mxu0 0.0
        %639 = vmatprep.subr.mxu0 0.0
        %640 = vmatpush1.msra.mxu0 0.0
        %641 = vmatprep.subr.mxu0 0.0
        %642 = vmatpush1.msra.mxu0 0.0
        %643 = vmatprep.subr.mxu0 0.0
        %644 = vmatpush1.msra.mxu0 0.0
        %645 = vmatprep.subr.mxu0 0.0
        %646 = vmatpush1.msra.mxu0 0.0
        %647 = vmatprep.subr.mxu0 0.0
        %648 = vmatpush1.msra.mxu0 0.0
        %649 = vmatprep.subr.mxu0 0.0
        %650 = vmatpush1.msra.mxu0 0.0
        %651 = vmatprep.subr.mxu0 0.0
        %652 = vmatpush1.msra.mxu0 0.0
        %653 = vmatprep.subr.mxu0 0.0
        %654 = vmatpush1.msra.mxu0 0.0
        %655 = vmatprep.subr.mxu0 0.0
        %656 = vmatpush1.msra.mxu0 0.0
        %657 = vmatprep.subr.mxu0 0.0
        %658 = vmatpush1.msra.mxu0 0.0
        %659 = vmatprep.subr.mxu0 0.0
        %660 = vmatpush1.msra.mxu0 0.0
        %661 = vmatprep.subr.mxu0 0.0
        %662 = vmatpush1.msra.mxu0 0.0
        %663 = vmatprep.subr.mxu0 0.0
        %664 = vmatpush1.msra.mxu0 0.0
        %665 = vmatprep.subr.mxu0 0.0
        %666 = vmatpush1.msra.mxu0 %v480
        %667 = vmatprep.subr.mxu0 0.0
        %668 = vmatpush2.msra.mxu0 0.0
        %669 = vmatprep.subr.mxu0 0.0
        %670 = vmatpush2.msra.mxu0 0.0
        %671 = vmatprep.subr.mxu0 0.0
        %672 = vmatpush2.msra.mxu0 0.0
        %673 = vmatprep.subr.mxu0 0.0
        %674 = vmatpush2.msra.mxu0 0.0
        %675 = vmatprep.subr.mxu0 0.0
        %676 = vmatpush2.msra.mxu0 0.0
        %677 = vmatprep.subr.mxu0 0.0
        %678 = vmatpush2.msra.mxu0 0.0
        %679 = vmatprep.subr.mxu0 0.0
        %680 = vmatpush2.msra.mxu0 0.0
        %681 = vmatprep.subr.mxu0 0.0
        %682 = vmatpush2.msra.mxu0 0.0
        %683 = vmatprep.subr.mxu0 0.0
        %684 = vmatpush2.msra.mxu0 0.0
        %685 = vmatprep.subr.mxu0 0.0
        %686 = vmatpush2.msra.mxu0 0.0
        %687 = vmatprep.subr.mxu0 0.0
        %688 = vmatpush2.msra.mxu0 0.0
        %689 = vmatprep.subr.mxu0 0.0
        %690 = vmatpush2.msra.mxu0 0.0
        %691 = vmatprep.subr.mxu0 0.0
        %692 = vmatpush2.msra.mxu0 0.0
        %693 = vmatprep.subr.mxu0 0.0
        %694 = vmatpush2.msra.mxu0 0.0
        %695 = vmatprep.subr.mxu0 0.0
        %696 = vmatpush2.msra.mxu0 0.0
        %697 = vmatprep.subr.mxu0 0.0
        %698 = vmatpush2.msra.mxu0 0.0
        %699 = vmatprep.mubr.f32.mxu0 0.0
        %700 = vmatmul.mubr.f32.gmra.mxu0 %v633
        %v701 = vpop.f32.mrf.mxu0
        %v702 = vadd.f32 %v311, %v701
        %v703 = vpop.f32.mrf.mxu0
        %704 = vdwg.mxu0
        %v705 = vsel %vm560, %v417, 0
        %707 = vmatprep.subr.mxu0 0.0
        %708 = vmatpush1.msra.mxu0 0.0
        %709 = vmatprep.subr.mxu0 0.0
        %710 = vmatpush1.msra.mxu0 0.0
        %711 = vmatprep.subr.mxu0 0.0
        %712 = vmatpush1.msra.mxu0 0.0
        %713 = vmatprep.subr.mxu0 0.0
        %714 = vmatpush1.msra.mxu0 0.0
        %715 = vmatprep.subr.mxu0 0.0
        %716 = vmatpush1.msra.mxu0 0.0
        %717 = vmatprep.subr.mxu0 0.0
        %718 = vmatpush1.msra.mxu0 0.0
        %719 = vmatprep.subr.mxu0 0.0
        %720 = vmatpush1.msra.mxu0 0.0
        %721 = vmatprep.subr.mxu0 0.0
        %722 = vmatpush1.msra.mxu0 0.0
        %723 = vmatprep.subr.mxu0 0.0
        %724 = vmatpush1.msra.mxu0 0.0
        %725 = vmatprep.subr.mxu0 0.0
        %726 = vmatpush1.msra.mxu0 0.0
        %727 = vmatprep.subr.mxu0 0.0
        %728 = vmatpush1.msra.mxu0 0.0
        %729 = vmatprep.subr.mxu0 0.0
        %730 = vmatpush1.msra.mxu0 0.0
        %731 = vmatprep.subr.mxu0 0.0
        %732 = vmatpush1.msra.mxu0 0.0
        %733 = vmatprep.subr.mxu0 0.0
        %734 = vmatpush1.msra.mxu0 0.0
        %735 = vmatprep.subr.mxu0 0.0
        %736 = vmatpush1.msra.mxu0 0.0
        %737 = vmatprep.subr.mxu0 0.0
        %738 = vmatpush1.msra.mxu0 %v512
        %739 = vmatprep.subr.mxu0 0.0
        %740 = vmatpush2.msra.mxu0 0.0
        %741 = vmatprep.subr.mxu0 0.0
        %742 = vmatpush2.msra.mxu0 0.0
        %743 = vmatprep.subr.mxu0 0.0
        %744 = vmatpush2.msra.mxu0 0.0
        %745 = vmatprep.subr.mxu0 0.0
        %746 = vmatpush2.msra.mxu0 0.0
        %747 = vmatprep.subr.mxu0 0.0
        %748 = vmatpush2.msra.mxu0 0.0
        %749 = vmatprep.subr.mxu0 0.0
        %750 = vmatpush2.msra.mxu0 0.0
        %751 = vmatprep.subr.mxu0 0.0
        %752 = vmatpush2.msra.mxu0 0.0
        %753 = vmatprep.subr.mxu0 0.0
        %754 = vmatpush2.msra.mxu0 0.0
        %755 = vmatprep.subr.mxu0 0.0
        %756 = vmatpush2.msra.mxu0 0.0
        %757 = vmatprep.subr.mxu0 0.0
        %758 = vmatpush2.msra.mxu0 0.0
        %759 = vmatprep.subr.mxu0 0.0
        %760 = vmatpush2.msra.mxu0 0.0
        %761 = vmatprep.subr.mxu0 0.0
        %762 = vmatpush2.msra.mxu0 0.0
        %763 = vmatprep.subr.mxu0 0.0
        %764 = vmatpush2.msra.mxu0 0.0
        %765 = vmatprep.subr.mxu0 0.0
        %766 = vmatpush2.msra.mxu0 0.0
        %767 = vmatprep.subr.mxu0 0.0
        %768 = vmatpush2.msra.mxu0 0.0
        %769 = vmatprep.subr.mxu0 0.0
        %770 = vmatpush2.msra.mxu0 0.0
        %771 = vmatprep.mubr.f32.mxu0 0.0
        %772 = vmatmul.mubr.f32.gmra.mxu0 %v705
        %v773 = vpop.f32.mrf.mxu0
        %v774 = vadd.f32 %v312, %v773
        %v775 = vpop.f32.mrf.mxu0
        %776 = vdwg.mxu0
        %v777 = vsel %vm560, %v419, 0
        %779 = vmatprep.subr.mxu0 0.0
        %780 = vmatpush1.msra.mxu0 0.0
        %781 = vmatprep.subr.mxu0 0.0
        %782 = vmatpush1.msra.mxu0 0.0
        %783 = vmatprep.subr.mxu0 0.0
        %784 = vmatpush1.msra.mxu0 0.0
        %785 = vmatprep.subr.mxu0 0.0
        %786 = vmatpush1.msra.mxu0 0.0
        %787 = vmatprep.subr.mxu0 0.0
        %788 = vmatpush1.msra.mxu0 0.0
        %789 = vmatprep.subr.mxu0 0.0
        %790 = vmatpush1.msra.mxu0 0.0
        %791 = vmatprep.subr.mxu0 0.0
        %792 = vmatpush1.msra.mxu0 0.0
        %793 = vmatprep.subr.mxu0 0.0
        %794 = vmatpush1.msra.mxu0 0.0
        %795 = vmatprep.subr.mxu0 0.0
        %796 = vmatpush1.msra.mxu0 0.0
        %797 = vmatprep.subr.mxu0 0.0
        %798 = vmatpush1.msra.mxu0 0.0
        %799 = vmatprep.subr.mxu0 0.0
        %800 = vmatpush1.msra.mxu0 0.0
        %801 = vmatprep.subr.mxu0 0.0
        %802 = vmatpush1.msra.mxu0 0.0
        %803 = vmatprep.subr.mxu0 0.0
        %804 = vmatpush1.msra.mxu0 0.0
        %805 = vmatprep.subr.mxu0 0.0
        %806 = vmatpush1.msra.mxu0 0.0
        %807 = vmatprep.subr.mxu0 0.0
        %808 = vmatpush1.msra.mxu0 0.0
        %809 = vmatprep.subr.mxu0 0.0
        %810 = vmatpush1.msra.mxu0 %v544
        %811 = vmatprep.subr.mxu0 0.0
        %812 = vmatpush2.msra.mxu0 0.0
        %813 = vmatprep.subr.mxu0 0.0
        %814 = vmatpush2.msra.mxu0 0.0
        %815 = vmatprep.subr.mxu0 0.0
        %816 = vmatpush2.msra.mxu0 0.0
        %817 = vmatprep.subr.mxu0 0.0
        %818 = vmatpush2.msra.mxu0 0.0
        %819 = vmatprep.subr.mxu0 0.0
        %820 = vmatpush2.msra.mxu0 0.0
        %821 = vmatprep.subr.mxu0 0.0
        %822 = vmatpush2.msra.mxu0 0.0
        %823 = vmatprep.subr.mxu0 0.0
        %824 = vmatpush2.msra.mxu0 0.0
        %825 = vmatprep.subr.mxu0 0.0
        %826 = vmatpush2.msra.mxu0 0.0
        %827 = vmatprep.subr.mxu0 0.0
        %828 = vmatpush2.msra.mxu0 0.0
        %829 = vmatprep.subr.mxu0 0.0
        %830 = vmatpush2.msra.mxu0 0.0
        %831 = vmatprep.subr.mxu0 0.0
        %832 = vmatpush2.msra.mxu0 0.0
        %833 = vmatprep.subr.mxu0 0.0
        %834 = vmatpush2.msra.mxu0 0.0
        %835 = vmatprep.subr.mxu0 0.0
        %836 = vmatpush2.msra.mxu0 0.0
        %837 = vmatprep.subr.mxu0 0.0
        %838 = vmatpush2.msra.mxu0 0.0
        %839 = vmatprep.subr.mxu0 0.0
        %840 = vmatpush2.msra.mxu0 0.0
        %841 = vmatprep.subr.mxu0 0.0
        %842 = vmatpush2.msra.mxu0 0.0
        %843 = vmatprep.mubr.f32.mxu0 0.0
        %844 = vmatmul.mubr.f32.gmra.mxu0 %v777
        %v845 = vpop.f32.mrf.mxu0
        %v846 = vadd.f32 %v313, %v845
        %v847 = vpop.f32.mrf.mxu0
        %848 = vdwg.mxu0
        %v849 = vsel %vm560, %v630, -inf
        %850 = vmax.xlane.f32.xlu0 %v849
        %v851 = vpop.xlane.xlu0 %850
        %v852 = vsel %vm560, %v702, -inf
        %853 = vmax.xlane.f32.xlu0 %v852
        %v854 = vpop.xlane.xlu0 %853
        %v855 = vsel %vm560, %v774, -inf
        %856 = vmax.xlane.f32.xlu0 %v855
        %v857 = vpop.xlane.xlu0 %856
        %v858 = vsel %vm560, %v846, -inf
        %859 = vmax.xlane.f32.xlu0 %v858
        %v860 = vpop.xlane.xlu0 %859
        %v861 = vsub.f32 %v630, %v851
        %v862 = vsub.f32 %v702, %v854
        %v863 = vsub.f32 %v774, %v857
        %v864 = vsub.f32 %v846, %v860
        %v865 = vmul.f32 %v861, 1.442695
        %v866 = vpow.pop %v865
        %v867 = vmul.f32 %v862, 1.442695
        %v868 = vpow.pop %v867
        %v869 = vmul.f32 %v863, 1.442695
        %v870 = vpow.pop %v869
        %v871 = vmul.f32 %v864, 1.442695
        %v872 = vpow.pop %v871
        %v873 = vsel %vm560, %v866, 0.0
        %874 = vadd.xlane.f32.xlu0 %v873
        %v875 = vpop.xlane.xlu0 %874
        %v876 = vsel %vm560, %v868, 0.0
        %877 = vadd.xlane.f32.xlu0 %v876
        %v878 = vpop.xlane.xlu0 %877
        %v879 = vsel %vm560, %v870, 0.0
        %880 = vadd.xlane.f32.xlu0 %v879
        %v881 = vpop.xlane.xlu0 %880
        %v882 = vsel %vm560, %v872, 0.0
        %883 = vadd.xlane.f32.xlu0 %v882
        %v884 = vpop.xlane.xlu0 %883
        %v885 = vrcp.pop %v875
        %v886 = vrcp.pop %v878
        %v887 = vrcp.pop %v881
        %v888 = vrcp.pop %v884
        %v889 = vmul.f32 %v866, %v885
        %v890 = vmul.f32 %v868, %v886
        %v891 = vmul.f32 %v870, %v887
        %v892 = vmul.f32 %v872, %v888
        %893 = vrot.lane.b32.xlu0 %v410, 64
        %v894 = vpop.permute.xlu0 %893
        %895 = vrot.lane.b32.xlu0 %v415, 64
        %v896 = vpop.permute.xlu0 %895
        %897 = vrot.lane.b32.xlu0 %v417, 64
        %v898 = vpop.permute.xlu0 %897
        %899 = vrot.lane.b32.xlu0 %v419, 64
        %v900 = vpop.permute.xlu0 %899
        %905 = vxpose.xlu0.b32.start [1/16] %v894, 128
        %906 = vxpose.xlu0.b32.cont [2/16] 0.0, 128
        %907 = vxpose.xlu0.b32.cont [3/16] 0.0, 128
        %908 = vxpose.xlu0.b32.cont [4/16] 0.0, 128
        %909 = vxpose.xlu0.b32.cont [5/16] 0.0, 128
        %910 = vxpose.xlu0.b32.cont [6/16] 0.0, 128
        %911 = vxpose.xlu0.b32.cont [7/16] 0.0, 128
        %912 = vxpose.xlu0.b32.cont [8/16] 0.0, 128
        %913 = vxpose.xlu0.b32.cont [9/16] 0.0, 128
        %914 = vxpose.xlu0.b32.cont [10/16] 0.0, 128
        %915 = vxpose.xlu0.b32.cont [11/16] 0.0, 128
        %916 = vxpose.xlu0.b32.cont [12/16] 0.0, 128
        %917 = vxpose.xlu0.b32.cont [13/16] 0.0, 128
        %918 = vxpose.xlu0.b32.cont [14/16] 0.0, 128
        %919 = vxpose.xlu0.b32.cont [15/16] 0.0, 128
        %920 = vxpose.xlu0.b32.end [16/16] 0.0, 128
        %v921 = vpop.trf.xlu0
        %v922 = vpop.trf.xlu0
        %v923 = vpop.trf.xlu0
        %v924 = vpop.trf.xlu0
        %v925 = vpop.trf.xlu0
        %v926 = vpop.trf.xlu0
        %v927 = vpop.trf.xlu0
        %v928 = vpop.trf.xlu0
        %v929 = vpop.trf.xlu0
        %v930 = vpop.trf.xlu0
        %v931 = vpop.trf.xlu0
        %v932 = vpop.trf.xlu0
        %v933 = vpop.trf.xlu0
        %v934 = vpop.trf.xlu0
        %v935 = vpop.trf.xlu0
        %v936 = vpop.trf.xlu0
        %937 = vxpose.xlu0.b32.start [1/16] %v896, 128
        %938 = vxpose.xlu0.b32.cont [2/16] 0.0, 128
        %939 = vxpose.xlu0.b32.cont [3/16] 0.0, 128
        %940 = vxpose.xlu0.b32.cont [4/16] 0.0, 128
        %941 = vxpose.xlu0.b32.cont [5/16] 0.0, 128
        %942 = vxpose.xlu0.b32.cont [6/16] 0.0, 128
        %943 = vxpose.xlu0.b32.cont [7/16] 0.0, 128
        %944 = vxpose.xlu0.b32.cont [8/16] 0.0, 128
        %945 = vxpose.xlu0.b32.cont [9/16] 0.0, 128
        %946 = vxpose.xlu0.b32.cont [10/16] 0.0, 128
        %947 = vxpose.xlu0.b32.cont [11/16] 0.0, 128
        %948 = vxpose.xlu0.b32.cont [12/16] 0.0, 128
        %949 = vxpose.xlu0.b32.cont [13/16] 0.0, 128
        %950 = vxpose.xlu0.b32.cont [14/16] 0.0, 128
        %951 = vxpose.xlu0.b32.cont [15/16] 0.0, 128
        %952 = vxpose.xlu0.b32.end [16/16] 0.0, 128
        %v953 = vpop.trf.xlu0
        %v954 = vpop.trf.xlu0
        %v955 = vpop.trf.xlu0
        %v956 = vpop.trf.xlu0
        %v957 = vpop.trf.xlu0
        %v958 = vpop.trf.xlu0
        %v959 = vpop.trf.xlu0
        %v960 = vpop.trf.xlu0
        %v961 = vpop.trf.xlu0
        %v962 = vpop.trf.xlu0
        %v963 = vpop.trf.xlu0
        %v964 = vpop.trf.xlu0
        %v965 = vpop.trf.xlu0
        %v966 = vpop.trf.xlu0
        %v967 = vpop.trf.xlu0
        %v968 = vpop.trf.xlu0
        %969 = vxpose.xlu0.b32.start [1/16] %v898, 128
        %970 = vxpose.xlu0.b32.cont [2/16] 0.0, 128
        %971 = vxpose.xlu0.b32.cont [3/16] 0.0, 128
        %972 = vxpose.xlu0.b32.cont [4/16] 0.0, 128
        %973 = vxpose.xlu0.b32.cont [5/16] 0.0, 128
        %974 = vxpose.xlu0.b32.cont [6/16] 0.0, 128
        %975 = vxpose.xlu0.b32.cont [7/16] 0.0, 128
        %976 = vxpose.xlu0.b32.cont [8/16] 0.0, 128
        %977 = vxpose.xlu0.b32.cont [9/16] 0.0, 128
        %978 = vxpose.xlu0.b32.cont [10/16] 0.0, 128
        %979 = vxpose.xlu0.b32.cont [11/16] 0.0, 128
        %980 = vxpose.xlu0.b32.cont [12/16] 0.0, 128
        %981 = vxpose.xlu0.b32.cont [13/16] 0.0, 128
        %982 = vxpose.xlu0.b32.cont [14/16] 0.0, 128
        %983 = vxpose.xlu0.b32.cont [15/16] 0.0, 128
        %984 = vxpose.xlu0.b32.end [16/16] 0.0, 128
        %v985 = vpop.trf.xlu0
        %v986 = vpop.trf.xlu0
        %v987 = vpop.trf.xlu0
        %v988 = vpop.trf.xlu0
        %v989 = vpop.trf.xlu0
        %v990 = vpop.trf.xlu0
        %v991 = vpop.trf.xlu0
        %v992 = vpop.trf.xlu0
        %v993 = vpop.trf.xlu0
        %v994 = vpop.trf.xlu0
        %v995 = vpop.trf.xlu0
        %v996 = vpop.trf.xlu0
        %v997 = vpop.trf.xlu0
        %v998 = vpop.trf.xlu0
        %v999 = vpop.trf.xlu0
        %v1000 = vpop.trf.xlu0
        %1001 = vxpose.xlu0.b32.start [1/16] %v900, 128
        %1002 = vxpose.xlu0.b32.cont [2/16] 0.0, 128
        %1003 = vxpose.xlu0.b32.cont [3/16] 0.0, 128
        %1004 = vxpose.xlu0.b32.cont [4/16] 0.0, 128
        %1005 = vxpose.xlu0.b32.cont [5/16] 0.0, 128
        %1006 = vxpose.xlu0.b32.cont [6/16] 0.0, 128
        %1007 = vxpose.xlu0.b32.cont [7/16] 0.0, 128
        %1008 = vxpose.xlu0.b32.cont [8/16] 0.0, 128
        %1009 = vxpose.xlu0.b32.cont [9/16] 0.0, 128
        %1010 = vxpose.xlu0.b32.cont [10/16] 0.0, 128
        %1011 = vxpose.xlu0.b32.cont [11/16] 0.0, 128
        %1012 = vxpose.xlu0.b32.cont [12/16] 0.0, 128
        %1013 = vxpose.xlu0.b32.cont [13/16] 0.0, 128
        %1014 = vxpose.xlu0.b32.cont [14/16] 0.0, 128
        %1015 = vxpose.xlu0.b32.cont [15/16] 0.0, 128
        %1016 = vxpose.xlu0.b32.end [16/16] 0.0, 128
        %v1017 = vpop.trf.xlu0
        %v1018 = vpop.trf.xlu0
        %v1019 = vpop.trf.xlu0
        %v1020 = vpop.trf.xlu0
        %v1021 = vpop.trf.xlu0
        %v1022 = vpop.trf.xlu0
        %v1023 = vpop.trf.xlu0
        %v1024 = vpop.trf.xlu0
        %v1025 = vpop.trf.xlu0
        %v1026 = vpop.trf.xlu0
        %v1027 = vpop.trf.xlu0
        %v1028 = vpop.trf.xlu0
        %v1029 = vpop.trf.xlu0
        %v1030 = vpop.trf.xlu0
        %v1031 = vpop.trf.xlu0
        %v1032 = vpop.trf.xlu0
        %v1034 = vsel %vm560, %v921, 0
        %v1037 = vsel %vm560, %v889, 0
        %1039 = vmatprep.subr.mxu0 0.0
        %1040 = vmatpush1.xpose.msra.mxu0 0.0
        %1041 = vmatprep.subr.mxu0 0.0
        %1042 = vmatpush1.xpose.msra.mxu0 0.0
        %1043 = vmatprep.subr.mxu0 0.0
        %1044 = vmatpush1.xpose.msra.mxu0 0.0
        %1045 = vmatprep.subr.mxu0 0.0
        %1046 = vmatpush1.xpose.msra.mxu0 0.0
        %1047 = vmatprep.subr.mxu0 0.0
        %1048 = vmatpush1.xpose.msra.mxu0 0.0
        %1049 = vmatprep.subr.mxu0 0.0
        %1050 = vmatpush1.xpose.msra.mxu0 0.0
        %1051 = vmatprep.subr.mxu0 0.0
        %1052 = vmatpush1.xpose.msra.mxu0 0.0
        %1053 = vmatprep.subr.mxu0 0.0
        %1054 = vmatpush1.xpose.msra.mxu0 0.0
        %1055 = vmatprep.subr.mxu0 0.0
        %1056 = vmatpush1.xpose.msra.mxu0 0.0
        %1057 = vmatprep.subr.mxu0 0.0
        %1058 = vmatpush1.xpose.msra.mxu0 0.0
        %1059 = vmatprep.subr.mxu0 0.0
        %1060 = vmatpush1.xpose.msra.mxu0 0.0
        %1061 = vmatprep.subr.mxu0 0.0
        %1062 = vmatpush1.xpose.msra.mxu0 0.0
        %1063 = vmatprep.subr.mxu0 0.0
        %1064 = vmatpush1.xpose.msra.mxu0 0.0
        %1065 = vmatprep.subr.mxu0 0.0
        %1066 = vmatpush1.xpose.msra.mxu0 0.0
        %1067 = vmatprep.subr.mxu0 0.0
        %1068 = vmatpush1.xpose.msra.mxu0 0.0
        %1069 = vmatprep.subr.mxu0 0.0
        %1070 = vmatpush1.xpose.msra.mxu0 %v1037
        %1071 = vmatprep.subr.mxu0 0.0
        %1072 = vmatpush2.xpose.msra.mxu0 0.0
        %1073 = vmatprep.subr.mxu0 0.0
        %1074 = vmatpush2.xpose.msra.mxu0 0.0
        %1075 = vmatprep.subr.mxu0 0.0
        %1076 = vmatpush2.xpose.msra.mxu0 0.0
        %1077 = vmatprep.subr.mxu0 0.0
        %1078 = vmatpush2.xpose.msra.mxu0 0.0
        %1079 = vmatprep.subr.mxu0 0.0
        %1080 = vmatpush2.xpose.msra.mxu0 0.0
        %1081 = vmatprep.subr.mxu0 0.0
        %1082 = vmatpush2.xpose.msra.mxu0 0.0
        %1083 = vmatprep.subr.mxu0 0.0
        %1084 = vmatpush2.xpose.msra.mxu0 0.0
        %1085 = vmatprep.subr.mxu0 0.0
        %1086 = vmatpush2.xpose.msra.mxu0 0.0
        %1087 = vmatprep.subr.mxu0 0.0
        %1088 = vmatpush2.xpose.msra.mxu0 0.0
        %1089 = vmatprep.subr.mxu0 0.0
        %1090 = vmatpush2.xpose.msra.mxu0 0.0
        %1091 = vmatprep.subr.mxu0 0.0
        %1092 = vmatpush2.xpose.msra.mxu0 0.0
        %1093 = vmatprep.subr.mxu0 0.0
        %1094 = vmatpush2.xpose.msra.mxu0 0.0
        %1095 = vmatprep.subr.mxu0 0.0
        %1096 = vmatpush2.xpose.msra.mxu0 0.0
        %1097 = vmatprep.subr.mxu0 0.0
        %1098 = vmatpush2.xpose.msra.mxu0 0.0
        %1099 = vmatprep.subr.mxu0 0.0
        %1100 = vmatpush2.xpose.msra.mxu0 0.0
        %1101 = vmatprep.subr.mxu0 0.0
        %1102 = vmatpush2.xpose.msra.mxu0 0.0
        %1103 = vmatprep.mubr.f32.mxu0 0.0
        %1104 = vmatmul.mubr.f32.gmra.mxu0 %v1034
        %v1105 = vpop.f32.mrf.mxu0
        %v1106 = vadd.f32 0.0, %v1105
        %v1107 = vpop.f32.mrf.mxu0
        %1108 = vdwg.mxu0
        %v1110 = vsel %vm560, %v953, 0
        %v1113 = vsel %vm560, %v890, 0
        %1115 = vmatprep.subr.mxu0 0.0
        %1116 = vmatpush1.xpose.msra.mxu0 0.0
        %1117 = vmatprep.subr.mxu0 0.0
        %1118 = vmatpush1.xpose.msra.mxu0 0.0
        %1119 = vmatprep.subr.mxu0 0.0
        %1120 = vmatpush1.xpose.msra.mxu0 0.0
        %1121 = vmatprep.subr.mxu0 0.0
        %1122 = vmatpush1.xpose.msra.mxu0 0.0
        %1123 = vmatprep.subr.mxu0 0.0
        %1124 = vmatpush1.xpose.msra.mxu0 0.0
        %1125 = vmatprep.subr.mxu0 0.0
        %1126 = vmatpush1.xpose.msra.mxu0 0.0
        %1127 = vmatprep.subr.mxu0 0.0
        %1128 = vmatpush1.xpose.msra.mxu0 0.0
        %1129 = vmatprep.subr.mxu0 0.0
        %1130 = vmatpush1.xpose.msra.mxu0 0.0
        %1131 = vmatprep.subr.mxu0 0.0
        %1132 = vmatpush1.xpose.msra.mxu0 0.0
        %1133 = vmatprep.subr.mxu0 0.0
        %1134 = vmatpush1.xpose.msra.mxu0 0.0
        %1135 = vmatprep.subr.mxu0 0.0
        %1136 = vmatpush1.xpose.msra.mxu0 0.0
        %1137 = vmatprep.subr.mxu0 0.0
        %1138 = vmatpush1.xpose.msra.mxu0 0.0
        %1139 = vmatprep.subr.mxu0 0.0
        %1140 = vmatpush1.xpose.msra.mxu0 0.0
        %1141 = vmatprep.subr.mxu0 0.0
        %1142 = vmatpush1.xpose.msra.mxu0 0.0
        %1143 = vmatprep.subr.mxu0 0.0
        %1144 = vmatpush1.xpose.msra.mxu0 0.0
        %1145 = vmatprep.subr.mxu0 0.0
        %1146 = vmatpush1.xpose.msra.mxu0 %v1113
        %1147 = vmatprep.subr.mxu0 0.0
        %1148 = vmatpush2.xpose.msra.mxu0 0.0
        %1149 = vmatprep.subr.mxu0 0.0
        %1150 = vmatpush2.xpose.msra.mxu0 0.0
        %1151 = vmatprep.subr.mxu0 0.0
        %1152 = vmatpush2.xpose.msra.mxu0 0.0
        %1153 = vmatprep.subr.mxu0 0.0
        %1154 = vmatpush2.xpose.msra.mxu0 0.0
        %1155 = vmatprep.subr.mxu0 0.0
        %1156 = vmatpush2.xpose.msra.mxu0 0.0
        %1157 = vmatprep.subr.mxu0 0.0
        %1158 = vmatpush2.xpose.msra.mxu0 0.0
        %1159 = vmatprep.subr.mxu0 0.0
        %1160 = vmatpush2.xpose.msra.mxu0 0.0
        %1161 = vmatprep.subr.mxu0 0.0
        %1162 = vmatpush2.xpose.msra.mxu0 0.0
        %1163 = vmatprep.subr.mxu0 0.0
        %1164 = vmatpush2.xpose.msra.mxu0 0.0
        %1165 = vmatprep.subr.mxu0 0.0
        %1166 = vmatpush2.xpose.msra.mxu0 0.0
        %1167 = vmatprep.subr.mxu0 0.0
        %1168 = vmatpush2.xpose.msra.mxu0 0.0
        %1169 = vmatprep.subr.mxu0 0.0
        %1170 = vmatpush2.xpose.msra.mxu0 0.0
        %1171 = vmatprep.subr.mxu0 0.0
        %1172 = vmatpush2.xpose.msra.mxu0 0.0
        %1173 = vmatprep.subr.mxu0 0.0
        %1174 = vmatpush2.xpose.msra.mxu0 0.0
        %1175 = vmatprep.subr.mxu0 0.0
        %1176 = vmatpush2.xpose.msra.mxu0 0.0
        %1177 = vmatprep.subr.mxu0 0.0
        %1178 = vmatpush2.xpose.msra.mxu0 0.0
        %1179 = vmatprep.mubr.f32.mxu0 0.0
        %1180 = vmatmul.mubr.f32.gmra.mxu0 %v1110
        %v1181 = vpop.f32.mrf.mxu0
        %v1182 = vadd.f32 0.0, %v1181
        %v1183 = vpop.f32.mrf.mxu0
        %1184 = vdwg.mxu0
        %v1186 = vsel %vm560, %v985, 0
        %v1189 = vsel %vm560, %v891, 0
        %1191 = vmatprep.subr.mxu0 0.0
        %1192 = vmatpush1.xpose.msra.mxu0 0.0
        %1193 = vmatprep.subr.mxu0 0.0
        %1194 = vmatpush1.xpose.msra.mxu0 0.0
        %1195 = vmatprep.subr.mxu0 0.0
        %1196 = vmatpush1.xpose.msra.mxu0 0.0
        %1197 = vmatprep.subr.mxu0 0.0
        %1198 = vmatpush1.xpose.msra.mxu0 0.0
        %1199 = vmatprep.subr.mxu0 0.0
        %1200 = vmatpush1.xpose.msra.mxu0 0.0
        %1201 = vmatprep.subr.mxu0 0.0
        %1202 = vmatpush1.xpose.msra.mxu0 0.0
        %1203 = vmatprep.subr.mxu0 0.0
        %1204 = vmatpush1.xpose.msra.mxu0 0.0
        %1205 = vmatprep.subr.mxu0 0.0
        %1206 = vmatpush1.xpose.msra.mxu0 0.0
        %1207 = vmatprep.subr.mxu0 0.0
        %1208 = vmatpush1.xpose.msra.mxu0 0.0
        %1209 = vmatprep.subr.mxu0 0.0
        %1210 = vmatpush1.xpose.msra.mxu0 0.0
        %1211 = vmatprep.subr.mxu0 0.0
        %1212 = vmatpush1.xpose.msra.mxu0 0.0
        %1213 = vmatprep.subr.mxu0 0.0
        %1214 = vmatpush1.xpose.msra.mxu0 0.0
        %1215 = vmatprep.subr.mxu0 0.0
        %1216 = vmatpush1.xpose.msra.mxu0 0.0
        %1217 = vmatprep.subr.mxu0 0.0
        %1218 = vmatpush1.xpose.msra.mxu0 0.0
        %1219 = vmatprep.subr.mxu0 0.0
        %1220 = vmatpush1.xpose.msra.mxu0 0.0
        %1221 = vmatprep.subr.mxu0 0.0
        %1222 = vmatpush1.xpose.msra.mxu0 %v1189
        %1223 = vmatprep.subr.mxu0 0.0
        %1224 = vmatpush2.xpose.msra.mxu0 0.0
        %1225 = vmatprep.subr.mxu0 0.0
        %1226 = vmatpush2.xpose.msra.mxu0 0.0
        %1227 = vmatprep.subr.mxu0 0.0
        %1228 = vmatpush2.xpose.msra.mxu0 0.0
        %1229 = vmatprep.subr.mxu0 0.0
        %1230 = vmatpush2.xpose.msra.mxu0 0.0
        %1231 = vmatprep.subr.mxu0 0.0
        %1232 = vmatpush2.xpose.msra.mxu0 0.0
        %1233 = vmatprep.subr.mxu0 0.0
        %1234 = vmatpush2.xpose.msra.mxu0 0.0
        %1235 = vmatprep.subr.mxu0 0.0
        %1236 = vmatpush2.xpose.msra.mxu0 0.0
        %1237 = vmatprep.subr.mxu0 0.0
        %1238 = vmatpush2.xpose.msra.mxu0 0.0
        %1239 = vmatprep.subr.mxu0 0.0
        %1240 = vmatpush2.xpose.msra.mxu0 0.0
        %1241 = vmatprep.subr.mxu0 0.0
        %1242 = vmatpush2.xpose.msra.mxu0 0.0
        %1243 = vmatprep.subr.mxu0 0.0
        %1244 = vmatpush2.xpose.msra.mxu0 0.0
        %1245 = vmatprep.subr.mxu0 0.0
        %1246 = vmatpush2.xpose.msra.mxu0 0.0
        %1247 = vmatprep.subr.mxu0 0.0
        %1248 = vmatpush2.xpose.msra.mxu0 0.0
        %1249 = vmatprep.subr.mxu0 0.0
        %1250 = vmatpush2.xpose.msra.mxu0 0.0
        %1251 = vmatprep.subr.mxu0 0.0
        %1252 = vmatpush2.xpose.msra.mxu0 0.0
        %1253 = vmatprep.subr.mxu0 0.0
        %1254 = vmatpush2.xpose.msra.mxu0 0.0
        %1255 = vmatprep.mubr.f32.mxu0 0.0
        %1256 = vmatmul.mubr.f32.gmra.mxu0 %v1186
        %v1257 = vpop.f32.mrf.mxu0
        %v1258 = vadd.f32 0.0, %v1257
        %v1259 = vpop.f32.mrf.mxu0
        %1260 = vdwg.mxu0
        %v1262 = vsel %vm560, %v1017, 0
        %v1265 = vsel %vm560, %v892, 0
        %1267 = vmatprep.subr.mxu0 0.0
        %1268 = vmatpush1.xpose.msra.mxu0 0.0
        %1269 = vmatprep.subr.mxu0 0.0
        %1270 = vmatpush1.xpose.msra.mxu0 0.0
        %1271 = vmatprep.subr.mxu0 0.0
        %1272 = vmatpush1.xpose.msra.mxu0 0.0
        %1273 = vmatprep.subr.mxu0 0.0
        %1274 = vmatpush1.xpose.msra.mxu0 0.0
        %1275 = vmatprep.subr.mxu0 0.0
        %1276 = vmatpush1.xpose.msra.mxu0 0.0
        %1277 = vmatprep.subr.mxu0 0.0
        %1278 = vmatpush1.xpose.msra.mxu0 0.0
        %1279 = vmatprep.subr.mxu0 0.0
        %1280 = vmatpush1.xpose.msra.mxu0 0.0
        %1281 = vmatprep.subr.mxu0 0.0
        %1282 = vmatpush1.xpose.msra.mxu0 0.0
        %1283 = vmatprep.subr.mxu0 0.0
        %1284 = vmatpush1.xpose.msra.mxu0 0.0
        %1285 = vmatprep.subr.mxu0 0.0
        %1286 = vmatpush1.xpose.msra.mxu0 0.0
        %1287 = vmatprep.subr.mxu0 0.0
        %1288 = vmatpush1.xpose.msra.mxu0 0.0
        %1289 = vmatprep.subr.mxu0 0.0
        %1290 = vmatpush1.xpose.msra.mxu0 0.0
        %1291 = vmatprep.subr.mxu0 0.0
        %1292 = vmatpush1.xpose.msra.mxu0 0.0
        %1293 = vmatprep.subr.mxu0 0.0
        %1294 = vmatpush1.xpose.msra.mxu0 0.0
        %1295 = vmatprep.subr.mxu0 0.0
        %1296 = vmatpush1.xpose.msra.mxu0 0.0
        %1297 = vmatprep.subr.mxu0 0.0
        %1298 = vmatpush1.xpose.msra.mxu0 %v1265
        %1299 = vmatprep.subr.mxu0 0.0
        %1300 = vmatpush2.xpose.msra.mxu0 0.0
        %1301 = vmatprep.subr.mxu0 0.0
        %1302 = vmatpush2.xpose.msra.mxu0 0.0
        %1303 = vmatprep.subr.mxu0 0.0
        %1304 = vmatpush2.xpose.msra.mxu0 0.0
        %1305 = vmatprep.subr.mxu0 0.0
        %1306 = vmatpush2.xpose.msra.mxu0 0.0
        %1307 = vmatprep.subr.mxu0 0.0
        %1308 = vmatpush2.xpose.msra.mxu0 0.0
        %1309 = vmatprep.subr.mxu0 0.0
        %1310 = vmatpush2.xpose.msra.mxu0 0.0
        %1311 = vmatprep.subr.mxu0 0.0
        %1312 = vmatpush2.xpose.msra.mxu0 0.0
        %1313 = vmatprep.subr.mxu0 0.0
        %1314 = vmatpush2.xpose.msra.mxu0 0.0
        %1315 = vmatprep.subr.mxu0 0.0
        %1316 = vmatpush2.xpose.msra.mxu0 0.0
        %1317 = vmatprep.subr.mxu0 0.0
        %1318 = vmatpush2.xpose.msra.mxu0 0.0
        %1319 = vmatprep.subr.mxu0 0.0
        %1320 = vmatpush2.xpose.msra.mxu0 0.0
        %1321 = vmatprep.subr.mxu0 0.0
        %1322 = vmatpush2.xpose.msra.mxu0 0.0
        %1323 = vmatprep.subr.mxu0 0.0
        %1324 = vmatpush2.xpose.msra.mxu0 0.0
        %1325 = vmatprep.subr.mxu0 0.0
        %1326 = vmatpush2.xpose.msra.mxu0 0.0
        %1327 = vmatprep.subr.mxu0 0.0
        %1328 = vmatpush2.xpose.msra.mxu0 0.0
        %1329 = vmatprep.subr.mxu0 0.0
        %1330 = vmatpush2.xpose.msra.mxu0 0.0
        %1331 = vmatprep.mubr.f32.mxu0 0.0
        %1332 = vmatmul.mubr.f32.gmra.mxu0 %v1262
        %v1333 = vpop.f32.mrf.mxu0
        %v1334 = vadd.f32 0.0, %v1333
        %v1335 = vpop.f32.mrf.mxu0
        %1336 = vdwg.mxu0
        %1337 = vxpose.xlu0.b32.start [1/16] %v1106, 128
        %1338 = vxpose.xlu0.b32.cont [2/16] 0.0, 128
        %1339 = vxpose.xlu0.b32.cont [3/16] 0.0, 128
        %1340 = vxpose.xlu0.b32.cont [4/16] 0.0, 128
        %1341 = vxpose.xlu0.b32.cont [5/16] 0.0, 128
        %1342 = vxpose.xlu0.b32.cont [6/16] 0.0, 128
        %1343 = vxpose.xlu0.b32.cont [7/16] 0.0, 128
        %1344 = vxpose.xlu0.b32.cont [8/16] 0.0, 128
        %1345 = vxpose.xlu0.b32.cont [9/16] 0.0, 128
        %1346 = vxpose.xlu0.b32.cont [10/16] 0.0, 128
        %1347 = vxpose.xlu0.b32.cont [11/16] 0.0, 128
        %1348 = vxpose.xlu0.b32.cont [12/16] 0.0, 128
        %1349 = vxpose.xlu0.b32.cont [13/16] 0.0, 128
        %1350 = vxpose.xlu0.b32.cont [14/16] 0.0, 128
        %1351 = vxpose.xlu0.b32.cont [15/16] 0.0, 128
        %1352 = vxpose.xlu0.b32.end [16/16] 0.0, 128
        %v1353 = vpop.trf.xlu0
        %v1354 = vpop.trf.xlu0
        %v1355 = vpop.trf.xlu0
        %v1356 = vpop.trf.xlu0
        %v1357 = vpop.trf.xlu0
        %v1358 = vpop.trf.xlu0
        %v1359 = vpop.trf.xlu0
        %v1360 = vpop.trf.xlu0
        %v1361 = vpop.trf.xlu0
        %v1362 = vpop.trf.xlu0
        %v1363 = vpop.trf.xlu0
        %v1364 = vpop.trf.xlu0
        %v1365 = vpop.trf.xlu0
        %v1366 = vpop.trf.xlu0
        %v1367 = vpop.trf.xlu0
        %v1368 = vpop.trf.xlu0
        %1369 = vxpose.xlu0.b32.start [1/16] %v1182, 128
        %1370 = vxpose.xlu0.b32.cont [2/16] 0.0, 128
        %1371 = vxpose.xlu0.b32.cont [3/16] 0.0, 128
        %1372 = vxpose.xlu0.b32.cont [4/16] 0.0, 128
        %1373 = vxpose.xlu0.b32.cont [5/16] 0.0, 128
        %1374 = vxpose.xlu0.b32.cont [6/16] 0.0, 128
        %1375 = vxpose.xlu0.b32.cont [7/16] 0.0, 128
        %1376 = vxpose.xlu0.b32.cont [8/16] 0.0, 128
        %1377 = vxpose.xlu0.b32.cont [9/16] 0.0, 128
        %1378 = vxpose.xlu0.b32.cont [10/16] 0.0, 128
        %1379 = vxpose.xlu0.b32.cont [11/16] 0.0, 128
        %1380 = vxpose.xlu0.b32.cont [12/16] 0.0, 128
        %1381 = vxpose.xlu0.b32.cont [13/16] 0.0, 128
        %1382 = vxpose.xlu0.b32.cont [14/16] 0.0, 128
        %1383 = vxpose.xlu0.b32.cont [15/16] 0.0, 128
        %1384 = vxpose.xlu0.b32.end [16/16] 0.0, 128
        %v1385 = vpop.trf.xlu0
        %v1386 = vpop.trf.xlu0
        %v1387 = vpop.trf.xlu0
        %v1388 = vpop.trf.xlu0
        %v1389 = vpop.trf.xlu0
        %v1390 = vpop.trf.xlu0
        %v1391 = vpop.trf.xlu0
        %v1392 = vpop.trf.xlu0
        %v1393 = vpop.trf.xlu0
        %v1394 = vpop.trf.xlu0
        %v1395 = vpop.trf.xlu0
        %v1396 = vpop.trf.xlu0
        %v1397 = vpop.trf.xlu0
        %v1398 = vpop.trf.xlu0
        %v1399 = vpop.trf.xlu0
        %v1400 = vpop.trf.xlu0
        %1401 = vxpose.xlu0.b32.start [1/16] %v1258, 128
        %1402 = vxpose.xlu0.b32.cont [2/16] 0.0, 128
        %1403 = vxpose.xlu0.b32.cont [3/16] 0.0, 128
        %1404 = vxpose.xlu0.b32.cont [4/16] 0.0, 128
        %1405 = vxpose.xlu0.b32.cont [5/16] 0.0, 128
        %1406 = vxpose.xlu0.b32.cont [6/16] 0.0, 128
        %1407 = vxpose.xlu0.b32.cont [7/16] 0.0, 128
        %1408 = vxpose.xlu0.b32.cont [8/16] 0.0, 128
        %1409 = vxpose.xlu0.b32.cont [9/16] 0.0, 128
        %1410 = vxpose.xlu0.b32.cont [10/16] 0.0, 128
        %1411 = vxpose.xlu0.b32.cont [11/16] 0.0, 128
        %1412 = vxpose.xlu0.b32.cont [12/16] 0.0, 128
        %1413 = vxpose.xlu0.b32.cont [13/16] 0.0, 128
        %1414 = vxpose.xlu0.b32.cont [14/16] 0.0, 128
        %1415 = vxpose.xlu0.b32.cont [15/16] 0.0, 128
        %1416 = vxpose.xlu0.b32.end [16/16] 0.0, 128
        %v1417 = vpop.trf.xlu0
        %v1418 = vpop.trf.xlu0
        %v1419 = vpop.trf.xlu0
        %v1420 = vpop.trf.xlu0
        %v1421 = vpop.trf.xlu0
        %v1422 = vpop.trf.xlu0
        %v1423 = vpop.trf.xlu0
        %v1424 = vpop.trf.xlu0
        %v1425 = vpop.trf.xlu0
        %v1426 = vpop.trf.xlu0
        %v1427 = vpop.trf.xlu0
        %v1428 = vpop.trf.xlu0
        %v1429 = vpop.trf.xlu0
        %v1430 = vpop.trf.xlu0
        %v1431 = vpop.trf.xlu0
        %v1432 = vpop.trf.xlu0
        %1433 = vxpose.xlu0.b32.start [1/16] %v1334, 128
        %1434 = vxpose.xlu0.b32.cont [2/16] 0.0, 128
        %1435 = vxpose.xlu0.b32.cont [3/16] 0.0, 128
        %1436 = vxpose.xlu0.b32.cont [4/16] 0.0, 128
        %1437 = vxpose.xlu0.b32.cont [5/16] 0.0, 128
        %1438 = vxpose.xlu0.b32.cont [6/16] 0.0, 128
        %1439 = vxpose.xlu0.b32.cont [7/16] 0.0, 128
        %1440 = vxpose.xlu0.b32.cont [8/16] 0.0, 128
        %1441 = vxpose.xlu0.b32.cont [9/16] 0.0, 128
        %1442 = vxpose.xlu0.b32.cont [10/16] 0.0, 128
        %1443 = vxpose.xlu0.b32.cont [11/16] 0.0, 128
        %1444 = vxpose.xlu0.b32.cont [12/16] 0.0, 128
        %1445 = vxpose.xlu0.b32.cont [13/16] 0.0, 128
        %1446 = vxpose.xlu0.b32.cont [14/16] 0.0, 128
        %1447 = vxpose.xlu0.b32.cont [15/16] 0.0, 128
        %1448 = vxpose.xlu0.b32.end [16/16] 0.0, 128
        %v1449 = vpop.trf.xlu0
        %v1450 = vpop.trf.xlu0
        %v1451 = vpop.trf.xlu0
        %v1452 = vpop.trf.xlu0
        %v1453 = vpop.trf.xlu0
        %v1454 = vpop.trf.xlu0
        %v1455 = vpop.trf.xlu0
        %v1456 = vpop.trf.xlu0
        %v1457 = vpop.trf.xlu0
        %v1458 = vpop.trf.xlu0
        %v1459 = vpop.trf.xlu0
        %v1460 = vpop.trf.xlu0
        %v1461 = vpop.trf.xlu0
        %v1462 = vpop.trf.xlu0
        %v1463 = vpop.trf.xlu0
        %v1464 = vpop.trf.xlu0
        %v1465 = vcombine.low %v1353, %v1417
        %v1466 = vcombine.high %v1353, %v1417
        %v1468 = vunpack.c.l.s4 1983009808
        %v1469 = vunpack.c.0.s8 %v1468
        %v1470 = vlaneseq
        %v1471 = vshrl.u32 %v1470, 7
        %v1472 = vsub.s32 %v1469, %v1471
        %v1473 = vrot.slane %v1465, %v1472
        %v1475 = vunpack.c.l.s4 1983009808
        %v1476 = vunpack.c.0.s8 %v1475
        %v1477 = vlaneseq
        %v1478 = vshrl.u32 %v1477, 7
        %v1479 = vsub.s32 %v1476, %v1478
        %v1480 = vrot.slane %v1466, %v1479
        %v1481 = vcombine.low %v1385, %v1449
        %v1482 = vcombine.high %v1385, %v1449
        %v1484 = vunpack.c.l.s4 1983009808
        %v1485 = vunpack.c.0.s8 %v1484
        %v1486 = vlaneseq
        %v1487 = vshrl.u32 %v1486, 7
        %v1488 = vsub.s32 %v1485, %v1487
        %v1489 = vrot.slane %v1481, %v1488
        %v1491 = vunpack.c.l.s4 1983009808
        %v1492 = vunpack.c.0.s8 %v1491
        %v1493 = vlaneseq
        %v1494 = vshrl.u32 %v1493, 7
        %v1495 = vsub.s32 %v1492, %v1494
        %v1496 = vrot.slane %v1482, %v1495
        %v1497 = vcombine.low %v1473, %v1489
        %v1498 = vcombine.high %v1473, %v1489
        %v1500 = vunpack.c.l.s4 1934713408
        %v1501 = vunpack.c.0.s8 %v1500
        %v1502 = vlaneseq
        %v1503 = vshrl.u32 %v1502, 7
        %v1504 = vsub.s32 %v1501, %v1503
        %v1505 = vrot.slane %v1497, %v1504
        %v1507 = vunpack.c.l.s4 1934713408
        %v1508 = vunpack.c.0.s8 %v1507
        %v1509 = vlaneseq
        %v1510 = vshrl.u32 %v1509, 7
        %v1511 = vsub.s32 %v1508, %v1510
        %v1512 = vrot.slane %v1498, %v1511
        %v1513 = vcombine.low %v1480, %v1496
        %v1514 = vcombine.high %v1480, %v1496
        %v1516 = vunpack.c.l.s4 1934713408
        %v1517 = vunpack.c.0.s8 %v1516
        %v1518 = vlaneseq
        %v1519 = vshrl.u32 %v1518, 7
        %v1520 = vsub.s32 %v1517, %v1519
        %v1521 = vrot.slane %v1513, %v1520
        %v1523 = vunpack.c.l.s4 1934713408
        %v1524 = vunpack.c.0.s8 %v1523
        %v1525 = vlaneseq
        %v1526 = vshrl.u32 %v1525, 7
        %v1527 = vsub.s32 %v1524, %v1526
        %v1528 = vrot.slane %v1514, %v1527
        %v1529 = vcombine.high %v1505, 0.0
        %v1530 = vcombine.high %v1512, 0.0
        %v1531 = vcombine.high %v1521, 0.0
        %v1532 = vcombine.high %v1528, 0.0
        %v1533 = vcombine.low %v1505, %v1512
        %v1535 = vunpack.c.l.s4 1983009808
        %v1536 = vunpack.c.0.s8 %v1535
        %v1537 = vlaneseq
        %v1538 = vshrl.u32 %v1537, 7
        %v1539 = vsub.s32 %v1536, %v1538
        %v1540 = vrot.slane %v1533, %v1539
        %v1541 = vcombine.low %v1529, %v1530
        %v1543 = vunpack.c.l.s4 1983009808
        %v1544 = vunpack.c.0.s8 %v1543
        %v1545 = vlaneseq
        %v1546 = vshrl.u32 %v1545, 7
        %v1547 = vsub.s32 %v1544, %v1546
        %v1548 = vrot.slane %v1541, %v1547
        %v1549 = vcombine.low %v1521, %v1528
        %v1551 = vunpack.c.l.s4 1983009808
        %v1552 = vunpack.c.0.s8 %v1551
        %v1553 = vlaneseq
        %v1554 = vshrl.u32 %v1553, 7
        %v1555 = vsub.s32 %v1552, %v1554
        %v1556 = vrot.slane %v1549, %v1555
        %v1557 = vcombine.low %v1531, %v1532
        %v1559 = vunpack.c.l.s4 1983009808
        %v1560 = vunpack.c.0.s8 %v1559
        %v1561 = vlaneseq
        %v1562 = vshrl.u32 %v1561, 7
        %v1563 = vsub.s32 %v1560, %v1562
        %v1564 = vrot.slane %v1557, %v1563
        %v1565 = vcombine.low %v1540, %v1548
        %v1566 = vcombine.high %v1540, %v1548
        %v1568 = vunpack.c.l.s4 1934713408
        %v1569 = vunpack.c.0.s8 %v1568
        %v1570 = vlaneseq
        %v1571 = vshrl.u32 %v1570, 7
        %v1572 = vsub.s32 %v1569, %v1571
        %v1573 = vrot.slane %v1565, %v1572
        %v1575 = vunpack.c.l.s4 1934713408
        %v1576 = vunpack.c.0.s8 %v1575
        %v1577 = vlaneseq
        %v1578 = vshrl.u32 %v1577, 7
        %v1579 = vsub.s32 %v1576, %v1578
        %v1580 = vrot.slane %v1566, %v1579
        %v1581 = vcombine.low %v1556, %v1564
        %v1582 = vcombine.high %v1556, %v1564
        %v1584 = vunpack.c.l.s4 1934713408
        %v1585 = vunpack.c.0.s8 %v1584
        %v1586 = vlaneseq
        %v1587 = vshrl.u32 %v1586, 7
        %v1588 = vsub.s32 %v1585, %v1587
        %v1589 = vrot.slane %v1581, %v1588
        %v1591 = vunpack.c.l.s4 1934713408
        %v1592 = vunpack.c.0.s8 %v1591
        %v1593 = vlaneseq
        %v1594 = vshrl.u32 %v1593, 7
        %v1595 = vsub.s32 %v1592, %v1594
        %v1596 = vrot.slane %v1582, %v1595
        %v1597 = vcombine.low %v1573, %v1589
        %v1598 = vcombine.high %v1573, %v1589
        %v1599 = vcombine.low %v1580, %v1596
        %v1600 = vcombine.high %v1580, %v1596
        %1602 = vrot.lane.b32.xlu0 %v1598, 8
        %v1603 = vpop.permute.xlu0 %1602
        %1606 = vrot.lane.b32.xlu0 %v1599, 16
        %v1607 = vpop.permute.xlu0 %1606
        %1610 = vrot.lane.b32.xlu0 %v1600, 24
        %v1611 = vpop.permute.xlu0 %1610
        %v1613 = vsel %vm560, %v1597, %v1603
        %vm1614 = vcmask 130048
        %v1615 = vsel %vm1614, %v1613, %v1607
        %vm1616 = vcmask 195584
        %v1617 = vsel %vm1616, %v1615, %v1611
        %v1618 = vld [vmem:[#allocation2] sm:$0xff]
        %v1619 = vld [vmem:[#allocation2 + $0x8] sm:$0xff]
        %v1620 = vld [vmem:[#allocation2 + $0x10] sm:$0xff]
        %v1621 = vld [vmem:[#allocation2 + $0x18] sm:$0xff]
        %vm1622 = vcmask 261120
        %v1624 = vsel %vm1622, %v1617, 0
        %1626 = vmatprep.subr.mxu0 0.0
        %1627 = vmatpush1.msra.mxu0 0.0
        %1628 = vmatprep.subr.mxu0 0.0
        %1629 = vmatpush1.msra.mxu0 0.0
        %1630 = vmatprep.subr.mxu0 0.0
        %1631 = vmatpush1.msra.mxu0 0.0
        %1632 = vmatprep.subr.mxu0 0.0
        %1633 = vmatpush1.msra.mxu0 0.0
        %1634 = vmatprep.subr.mxu0 0.0
        %1635 = vmatpush1.msra.mxu0 0.0
        %1636 = vmatprep.subr.mxu0 0.0
        %1637 = vmatpush1.msra.mxu0 0.0
        %1638 = vmatprep.subr.mxu0 0.0
        %1639 = vmatpush1.msra.mxu0 0.0
        %1640 = vmatprep.subr.mxu0 0.0
        %1641 = vmatpush1.msra.mxu0 0.0
        %1642 = vmatprep.subr.mxu0 0.0
        %1643 = vmatpush1.msra.mxu0 0.0
        %1644 = vmatprep.subr.mxu0 0.0
        %1645 = vmatpush1.msra.mxu0 0.0
        %1646 = vmatprep.subr.mxu0 0.0
        %1647 = vmatpush1.msra.mxu0 0.0
        %1648 = vmatprep.subr.mxu0 0.0
        %1649 = vmatpush1.msra.mxu0 0.0
        %1650 = vmatprep.subr.mxu0 0.0
        %1651 = vmatpush1.msra.mxu0 %v1621
        %1652 = vmatprep.subr.mxu0 0.0
        %1653 = vmatpush1.msra.mxu0 %v1620
        %1654 = vmatprep.subr.mxu0 0.0
        %1655 = vmatpush1.msra.mxu0 %v1619
        %1656 = vmatprep.subr.mxu0 0.0
        %1657 = vmatpush1.msra.mxu0 %v1618
        %1658 = vmatprep.subr.mxu0 0.0
        %1659 = vmatpush2.msra.mxu0 0.0
        %1660 = vmatprep.subr.mxu0 0.0
        %1661 = vmatpush2.msra.mxu0 0.0
        %1662 = vmatprep.subr.mxu0 0.0
        %1663 = vmatpush2.msra.mxu0 0.0
        %1664 = vmatprep.subr.mxu0 0.0
        %1665 = vmatpush2.msra.mxu0 0.0
        %1666 = vmatprep.subr.mxu0 0.0
        %1667 = vmatpush2.msra.mxu0 0.0
        %1668 = vmatprep.subr.mxu0 0.0
        %1669 = vmatpush2.msra.mxu0 0.0
        %1670 = vmatprep.subr.mxu0 0.0
        %1671 = vmatpush2.msra.mxu0 0.0
        %1672 = vmatprep.subr.mxu0 0.0
        %1673 = vmatpush2.msra.mxu0 0.0
        %1674 = vmatprep.subr.mxu0 0.0
        %1675 = vmatpush2.msra.mxu0 0.0
        %1676 = vmatprep.subr.mxu0 0.0
        %1677 = vmatpush2.msra.mxu0 0.0
        %1678 = vmatprep.subr.mxu0 0.0
        %1679 = vmatpush2.msra.mxu0 0.0
        %1680 = vmatprep.subr.mxu0 0.0
        %1681 = vmatpush2.msra.mxu0 0.0
        %1682 = vmatprep.subr.mxu0 0.0
        %1683 = vmatpush2.msra.mxu0 0.0
        %1684 = vmatprep.subr.mxu0 0.0
        %1685 = vmatpush2.msra.mxu0 0.0
        %1686 = vmatprep.subr.mxu0 0.0
        %1687 = vmatpush2.msra.mxu0 0.0
        %1688 = vmatprep.subr.mxu0 0.0
        %1689 = vmatpush2.msra.mxu0 0.0
        %1690 = vmatprep.mubr.f32.mxu0 0.0
        %1691 = vmatmul.mubr.f32.gmra.mxu0 %v1624
        %v1692 = vpop.f32.mrf.mxu0
        %v1693 = vadd.f32 0.0, %v1692
        %v1694 = vpop.f32.mrf.mxu0
        %1695 = vdwg.mxu0
        %v1696 = vadd.f32 %v309, %v1693
        %v1697 = vmul.f32 %v1696, %v1696
        %1698 = vadd.xlane.f32.xlu0 %v1697
        %v1699 = vpop.xlane.xlu0 %1698
        %v1700 = vmul.f32 %v1699, 0.03125
        %v1701 = vadd.f32 %v1700, 1e-06
        %v1702 = vrsqrt.pop %v1701
        %v1703 = vmul.f32 %v1696, %v1702
        %v1704 = vlaneseq
        %v1705 = vshrl.u32 %v1704, 7
        %v1706 = vsub.s32 2, %v1705
        %v1707 = vrot.slane %v314, %v1706
        %v1708 = vmul.f32 %v1703, %v1707
        %v1709 = vld [vmem:[%s5] sm:$0xff]
        %v1710 = vld [vmem:[%s5 + $0x8] sm:$0xff]
        %v1711 = vld [vmem:[%s5 + $0x10] sm:$0xff]
        %v1712 = vld [vmem:[%s5 + $0x18] sm:$0xff]
        %v1713 = vld [vmem:[%s5 + $0x20] sm:$0xff]
        %v1714 = vld [vmem:[%s5 + $0x28] sm:$0xff]
        %v1715 = vld [vmem:[%s5 + $0x30] sm:$0xff]
        %v1716 = vld [vmem:[%s5 + $0x38] sm:$0xff]
        %v1717 = vld [vmem:[%s5 + $0x40] sm:$0xff]
        %v1718 = vld [vmem:[%s5 + $0x48] sm:$0xff]
        %v1719 = vld [vmem:[%s5 + $0x50] sm:$0xff]
        %v1720 = vld [vmem:[%s5 + $0x58] sm:$0xff]
        %v1721 = vld [vmem:[%s5 + $0x60] sm:$0xff]
        %v1722 = vld [vmem:[%s5 + $0x68] sm:$0xff]
        %v1723 = vld [vmem:[%s5 + $0x70] sm:$0xff]
        %v1724 = vld [vmem:[%s5 + $0x78] sm:$0xff]
        %1725 = vmatprep.subr.mxu0 0.0
        %1726 = vmatpush1.msra.mxu0 %v1724
        %1727 = vmatprep.subr.mxu0 0.0
        %1728 = vmatpush1.msra.mxu0 %v1723
        %1729 = vmatprep.subr.mxu0 0.0
        %1730 = vmatpush1.msra.mxu0 %v1722
        %1731 = vmatprep.subr.mxu0 0.0
        %1732 = vmatpush1.msra.mxu0 %v1721
        %1733 = vmatprep.subr.mxu0 0.0
        %1734 = vmatpush1.msra.mxu0 %v1720
        %1735 = vmatprep.subr.mxu0 0.0
        %1736 = vmatpush1.msra.mxu0 %v1719
        %1737 = vmatprep.subr.mxu0 0.0
        %1738 = vmatpush1.msra.mxu0 %v1718
        %1739 = vmatprep.subr.mxu0 0.0
        %1740 = vmatpush1.msra.mxu0 %v1717
        %1741 = vmatprep.subr.mxu0 0.0
        %1742 = vmatpush1.msra.mxu0 %v1716
        %1743 = vmatprep.subr.mxu0 0.0
        %1744 = vmatpush1.msra.mxu0 %v1715
        %1745 = vmatprep.subr.mxu0 0.0
        %1746 = vmatpush1.msra.mxu0 %v1714
        %1747 = vmatprep.subr.mxu0 0.0
        %1748 = vmatpush1.msra.mxu0 %v1713
        %1749 = vmatprep.subr.mxu0 0.0
        %1750 = vmatpush1.msra.mxu0 %v1712
        %1751 = vmatprep.subr.mxu0 0.0
        %1752 = vmatpush1.msra.mxu0 %v1711
        %1753 = vmatprep.subr.mxu0 0.0
        %1754 = vmatpush1.msra.mxu0 %v1710
        %1755 = vmatprep.subr.mxu0 0.0
        %1756 = vmatpush1.msra.mxu0 %v1709
        %1757 = vmatprep.subr.mxu0 0.0
        %1758 = vmatpush2.msra.mxu0 0.0
        %1759 = vmatprep.subr.mxu0 0.0
        %1760 = vmatpush2.msra.mxu0 0.0
        %1761 = vmatprep.subr.mxu0 0.0
        %1762 = vmatpush2.msra.mxu0 0.0
        %1763 = vmatprep.subr.mxu0 0.0
        %1764 = vmatpush2.msra.mxu0 0.0
        %1765 = vmatprep.subr.mxu0 0.0
        %1766 = vmatpush2.msra.mxu0 0.0
        %1767 = vmatprep.subr.mxu0 0.0
        %1768 = vmatpush2.msra.mxu0 0.0
        %1769 = vmatprep.subr.mxu0 0.0
        %1770 = vmatpush2.msra.mxu0 0.0
        %1771 = vmatprep.subr.mxu0 0.0
        %1772 = vmatpush2.msra.mxu0 0.0
        %1773 = vmatprep.subr.mxu0 0.0
        %1774 = vmatpush2.msra.mxu0 0.0
        %1775 = vmatprep.subr.mxu0 0.0
        %1776 = vmatpush2.msra.mxu0 0.0
        %1777 = vmatprep.subr.mxu0 0.0
        %1778 = vmatpush2.msra.mxu0 0.0
        %1779 = vmatprep.subr.mxu0 0.0
        %1780 = vmatpush2.msra.mxu0 0.0
        %1781 = vmatprep.subr.mxu0 0.0
        %1782 = vmatpush2.msra.mxu0 0.0
        %1783 = vmatprep.subr.mxu0 0.0
        %1784 = vmatpush2.msra.mxu0 0.0
        %1785 = vmatprep.subr.mxu0 0.0
        %1786 = vmatpush2.msra.mxu0 0.0
        %1787 = vmatprep.subr.mxu0 0.0
        %1788 = vmatpush2.msra.mxu0 0.0
        %1789 = vmatprep.mubr.f32.mxu0 0.0
        %1790 = vmatmul.mubr.f32.gmra.mxu0 %v1708
        %v1791 = vpop.f32.mrf.mxu0
        %v1792 = vadd.f32 0.0, %v1791
        %v1793 = vpop.f32.mrf.mxu0
        %1794 = vdwg.mxu0
        %v1795 = vmax.f32 %v1792, 0.0
        %v1796 = vld [vmem:[%s6] sm:$0xff]
        %v1797 = vld [vmem:[%s6 + $0x8] sm:$0xff]
        %v1798 = vld [vmem:[%s6 + $0x10] sm:$0xff]
        %v1799 = vld [vmem:[%s6 + $0x18] sm:$0xff]
        %v1800 = vld [vmem:[%s6 + $0x20] sm:$0xff]
        %v1801 = vld [vmem:[%s6 + $0x28] sm:$0xff]
        %v1802 = vld [vmem:[%s6 + $0x30] sm:$0xff]
        %v1803 = vld [vmem:[%s6 + $0x38] sm:$0xff]
        %v1804 = vld [vmem:[%s6 + $0x40] sm:$0xff]
        %v1805 = vld [vmem:[%s6 + $0x48] sm:$0xff]
        %v1806 = vld [vmem:[%s6 + $0x50] sm:$0xff]
        %v1807 = vld [vmem:[%s6 + $0x58] sm:$0xff]
        %v1808 = vld [vmem:[%s6 + $0x60] sm:$0xff]
        %v1809 = vld [vmem:[%s6 + $0x68] sm:$0xff]
        %v1810 = vld [vmem:[%s6 + $0x70] sm:$0xff]
        %v1811 = vld [vmem:[%s6 + $0x78] sm:$0xff]
        %1812 = vmatprep.subr.mxu0 0.0
        %1813 = vmatpush1.msra.mxu0 %v1811
        %1814 = vmatprep.subr.mxu0 0.0
        %1815 = vmatpush1.msra.mxu0 %v1810
        %1816 = vmatprep.subr.mxu0 0.0
        %1817 = vmatpush1.msra.mxu0 %v1809
        %1818 = vmatprep.subr.mxu0 0.0
        %1819 = vmatpush1.msra.mxu0 %v1808
        %1820 = vmatprep.subr.mxu0 0.0
        %1821 = vmatpush1.msra.mxu0 %v1807
        %1822 = vmatprep.subr.mxu0 0.0
        %1823 = vmatpush1.msra.mxu0 %v1806
        %1824 = vmatprep.subr.mxu0 0.0
        %1825 = vmatpush1.msra.mxu0 %v1805
        %1826 = vmatprep.subr.mxu0 0.0
        %1827 = vmatpush1.msra.mxu0 %v1804
        %1828 = vmatprep.subr.mxu0 0.0
        %1829 = vmatpush1.msra.mxu0 %v1803
        %1830 = vmatprep.subr.mxu0 0.0
        %1831 = vmatpush1.msra.mxu0 %v1802
        %1832 = vmatprep.subr.mxu0 0.0
        %1833 = vmatpush1.msra.mxu0 %v1801
        %1834 = vmatprep.subr.mxu0 0.0
        %1835 = vmatpush1.msra.mxu0 %v1800
        %1836 = vmatprep.subr.mxu0 0.0
        %1837 = vmatpush1.msra.mxu0 %v1799
        %1838 = vmatprep.subr.mxu0 0.0
        %1839 = vmatpush1.msra.mxu0 %v1798
        %1840 = vmatprep.subr.mxu0 0.0
        %1841 = vmatpush1.msra.mxu0 %v1797
        %1842 = vmatprep.subr.mxu0 0.0
        %1843 = vmatpush1.msra.mxu0 %v1796
        %1844 = vmatprep.subr.mxu0 0.0
        %1845 = vmatpush2.msra.mxu0 0.0
        %1846 = vmatprep.subr.mxu0 0.0
        %1847 = vmatpush2.msra.mxu0 0.0
        %1848 = vmatprep.subr.mxu0 0.0
        %1849 = vmatpush2.msra.mxu0 0.0
        %1850 = vmatprep.subr.mxu0 0.0
        %1851 = vmatpush2.msra.mxu0 0.0
        %1852 = vmatprep.subr.mxu0 0.0
        %1853 = vmatpush2.msra.mxu0 0.0
        %1854 = vmatprep.subr.mxu0 0.0
        %1855 = vmatpush2.msra.mxu0 0.0
        %1856 = vmatprep.subr.mxu0 0.0
        %1857 = vmatpush2.msra.mxu0 0.0
        %1858 = vmatprep.subr.mxu0 0.0
        %1859 = vmatpush2.msra.mxu0 0.0
        %1860 = vmatprep.subr.mxu0 0.0
        %1861 = vmatpush2.msra.mxu0 0.0
        %1862 = vmatprep.subr.mxu0 0.0
        %1863 = vmatpush2.msra.mxu0 0.0
        %1864 = vmatprep.subr.mxu0 0.0
        %1865 = vmatpush2.msra.mxu0 0.0
        %1866 = vmatprep.subr.mxu0 0.0
        %1867 = vmatpush2.msra.mxu0 0.0
        %1868 = vmatprep.subr.mxu0 0.0
        %1869 = vmatpush2.msra.mxu0 0.0
        %1870 = vmatprep.subr.mxu0 0.0
        %1871 = vmatpush2.msra.mxu0 0.0
        %1872 = vmatprep.subr.mxu0 0.0
        %1873 = vmatpush2.msra.mxu0 0.0
        %1874 = vmatprep.subr.mxu0 0.0
        %1875 = vmatpush2.msra.mxu0 0.0
        %1876 = vmatprep.mubr.f32.mxu0 0.0
        %1877 = vmatmul.mubr.f32.gmra.mxu0 %v1795
        %v1878 = vpop.f32.mrf.mxu0
        %v1879 = vadd.f32 0.0, %v1878
        %v1880 = vpop.f32.mrf.mxu0
        %1881 = vdwg.mxu0
        %v1882 = vadd.f32 %v1696, %v1879
        %v1883 = vmul.f32 %v1882, %v1882
        %1884 = vadd.xlane.f32.xlu0 %v1883
        %v1885 = vpop.xlane.xlu0 %1884
        %v1886 = vmul.f32 %v1885, 0.03125
        %v1887 = vadd.f32 %v1886, 1e-06
        %v1888 = vrsqrt.pop %v1887
        %v1889 = vmul.f32 %v1882, %v1888
        %v1890 = vlaneseq
        %v1891 = vshrl.u32 %v1890, 7
        %v1892 = vsub.s32 1, %v1891
        %v1893 = vrot.slane %v314, %v1892
        %v1894 = vmul.f32 %v1889, %v1893
        %s1895 = scalar_lea.vmem %s3, 128
        %v1896 = vld [vmem:[%s1895] sm:$0xff]
        %v1897 = vld [vmem:[%s1895 + $0x8] sm:$0xff]
        %v1898 = vld [vmem:[%s1895 + $0x10] sm:$0xff]
        %v1899 = vld [vmem:[%s1895 + $0x18] sm:$0xff]
        %v1900 = vld [vmem:[%s1895 + $0x20] sm:$0xff]
        %v1901 = vld [vmem:[%s1895 + $0x28] sm:$0xff]
        %v1902 = vld [vmem:[%s1895 + $0x30] sm:$0xff]
        %v1903 = vld [vmem:[%s1895 + $0x38] sm:$0xff]
        %v1904 = vld [vmem:[%s1895 + $0x40] sm:$0xff]
        %v1905 = vld [vmem:[%s1895 + $0x48] sm:$0xff]
        %v1906 = vld [vmem:[%s1895 + $0x50] sm:$0xff]
        %v1907 = vld [vmem:[%s1895 + $0x58] sm:$0xff]
        %v1908 = vld [vmem:[%s1895 + $0x60] sm:$0xff]
        %v1909 = vld [vmem:[%s1895 + $0x68] sm:$0xff]
        %v1910 = vld [vmem:[%s1895 + $0x70] sm:$0xff]
        %v1911 = vld [vmem:[%s1895 + $0x78] sm:$0xff]
        %1912 = vmatprep.subr.mxu0 0.0
        %1913 = vmatpush1.msra.mxu0 %v1911
        %1914 = vmatprep.subr.mxu0 0.0
        %1915 = vmatpush1.msra.mxu0 %v1910
        %1916 = vmatprep.subr.mxu0 0.0
        %1917 = vmatpush1.msra.mxu0 %v1909
        %1918 = vmatprep.subr.mxu0 0.0
        %1919 = vmatpush1.msra.mxu0 %v1908
        %1920 = vmatprep.subr.mxu0 0.0
        %1921 = vmatpush1.msra.mxu0 %v1907
        %1922 = vmatprep.subr.mxu0 0.0
        %1923 = vmatpush1.msra.mxu0 %v1906
        %1924 = vmatprep.subr.mxu0 0.0
        %1925 = vmatpush1.msra.mxu0 %v1905
        %1926 = vmatprep.subr.mxu0 0.0
        %1927 = vmatpush1.msra.mxu0 %v1904
        %1928 = vmatprep.subr.mxu0 0.0
        %1929 = vmatpush1.msra.mxu0 %v1903
        %1930 = vmatprep.subr.mxu0 0.0
        %1931 = vmatpush1.msra.mxu0 %v1902
        %1932 = vmatprep.subr.mxu0 0.0
        %1933 = vmatpush1.msra.mxu0 %v1901
        %1934 = vmatprep.subr.mxu0 0.0
        %1935 = vmatpush1.msra.mxu0 %v1900
        %1936 = vmatprep.subr.mxu0 0.0
        %1937 = vmatpush1.msra.mxu0 %v1899
        %1938 = vmatprep.subr.mxu0 0.0
        %1939 = vmatpush1.msra.mxu0 %v1898
        %1940 = vmatprep.subr.mxu0 0.0
        %1941 = vmatpush1.msra.mxu0 %v1897
        %1942 = vmatprep.subr.mxu0 0.0
        %1943 = vmatpush1.msra.mxu0 %v1896
        %1944 = vmatprep.subr.mxu0 0.0
        %1945 = vmatpush2.msra.mxu0 0.0
        %1946 = vmatprep.subr.mxu0 0.0
        %1947 = vmatpush2.msra.mxu0 0.0
        %1948 = vmatprep.subr.mxu0 0.0
        %1949 = vmatpush2.msra.mxu0 0.0
        %1950 = vmatprep.subr.mxu0 0.0
        %1951 = vmatpush2.msra.mxu0 0.0
        %1952 = vmatprep.subr.mxu0 0.0
        %1953 = vmatpush2.msra.mxu0 0.0
        %1954 = vmatprep.subr.mxu0 0.0
        %1955 = vmatpush2.msra.mxu0 0.0
        %1956 = vmatprep.subr.mxu0 0.0
        %1957 = vmatpush2.msra.mxu0 0.0
        %1958 = vmatprep.subr.mxu0 0.0
        %1959 = vmatpush2.msra.mxu0 0.0
        %1960 = vmatprep.subr.mxu0 0.0
        %1961 = vmatpush2.msra.mxu0 0.0
        %1962 = vmatprep.subr.mxu0 0.0
        %1963 = vmatpush2.msra.mxu0 0.0
        %1964 = vmatprep.subr.mxu0 0.0
        %1965 = vmatpush2.msra.mxu0 0.0
        %1966 = vmatprep.subr.mxu0 0.0
        %1967 = vmatpush2.msra.mxu0 0.0
        %1968 = vmatprep.subr.mxu0 0.0
        %1969 = vmatpush2.msra.mxu0 0.0
        %1970 = vmatprep.subr.mxu0 0.0
        %1971 = vmatpush2.msra.mxu0 0.0
        %1972 = vmatprep.subr.mxu0 0.0
        %1973 = vmatpush2.msra.mxu0 0.0
        %1974 = vmatprep.subr.mxu0 0.0
        %1975 = vmatpush2.msra.mxu0 0.0
        %1976 = vmatprep.mubr.f32.mxu0 0.0
        %1977 = vmatmul.mubr.f32.gmra.mxu0 %v1894
        %v1978 = vpop.f32.mrf.mxu0
        %v1979 = vadd.f32 0.0, %v1978
        %v1980 = vpop.f32.mrf.mxu0
        %1981 = vdwg.mxu0
        %1983 = vrot.lane.b32.xlu0 %v1979, 120
        %v1984 = vpop.permute.xlu0 %1983
        %1985 = vrot.lane.b32.xlu0 %v1979, 112
        %v1986 = vpop.permute.xlu0 %1985
        %1987 = vrot.lane.b32.xlu0 %v1979, 104
        %v1988 = vpop.permute.xlu0 %1987
        %1989 = vrot.lane.b32.xlu0 %v1979, 96
        %v1990 = vpop.permute.xlu0 %1989
        %1991 = vrot.lane.b32.xlu0 %v1984, 96
        %v1992 = vpop.permute.xlu0 %1991
        %1993 = vrot.lane.b32.xlu0 %v1986, 96
        %v1994 = vpop.permute.xlu0 %1993
        %1995 = vrot.lane.b32.xlu0 %v1988, 96
        %v1996 = vpop.permute.xlu0 %1995
        %2001 = vxpose.xlu0.b32.start [1/16] %v1990, 128
        %2002 = vxpose.xlu0.b32.cont [2/16] 0.0, 128
        %2003 = vxpose.xlu0.b32.cont [3/16] 0.0, 128
        %2004 = vxpose.xlu0.b32.cont [4/16] 0.0, 128
        %2005 = vxpose.xlu0.b32.cont [5/16] 0.0, 128
        %2006 = vxpose.xlu0.b32.cont [6/16] 0.0, 128
        %2007 = vxpose.xlu0.b32.cont [7/16] 0.0, 128
        %2008 = vxpose.xlu0.b32.cont [8/16] 0.0, 128
        %2009 = vxpose.xlu0.b32.cont [9/16] 0.0, 128
        %2010 = vxpose.xlu0.b32.cont [10/16] 0.0, 128
        %2011 = vxpose.xlu0.b32.cont [11/16] 0.0, 128
        %2012 = vxpose.xlu0.b32.cont [12/16] 0.0, 128
        %2013 = vxpose.xlu0.b32.cont [13/16] 0.0, 128
        %2014 = vxpose.xlu0.b32.cont [14/16] 0.0, 128
        %2015 = vxpose.xlu0.b32.cont [15/16] 0.0, 128
        %2016 = vxpose.xlu0.b32.end [16/16] 0.0, 128
        %v2017 = vpop.trf.xlu0
        %v2018 = vpop.trf.xlu0
        %v2019 = vpop.trf.xlu0
        %v2020 = vpop.trf.xlu0
        %v2021 = vpop.trf.xlu0
        %v2022 = vpop.trf.xlu0
        %v2023 = vpop.trf.xlu0
        %v2024 = vpop.trf.xlu0
        %v2025 = vpop.trf.xlu0
        %v2026 = vpop.trf.xlu0
        %v2027 = vpop.trf.xlu0
        %v2028 = vpop.trf.xlu0
        %v2029 = vpop.trf.xlu0
        %v2030 = vpop.trf.xlu0
        %v2031 = vpop.trf.xlu0
        %v2032 = vpop.trf.xlu0
        %2033 = vxpose.xlu0.b32.start [1/16] %v1992, 128
        %2034 = vxpose.xlu0.b32.cont [2/16] 0.0, 128
        %2035 = vxpose.xlu0.b32.cont [3/16] 0.0, 128
        %2036 = vxpose.xlu0.b32.cont [4/16] 0.0, 128
        %2037 = vxpose.xlu0.b32.cont [5/16] 0.0, 128
        %2038 = vxpose.xlu0.b32.cont [6/16] 0.0, 128
        %2039 = vxpose.xlu0.b32.cont [7/16] 0.0, 128
        %2040 = vxpose.xlu0.b32.cont [8/16] 0.0, 128
        %2041 = vxpose.xlu0.b32.cont [9/16] 0.0, 128
        %2042 = vxpose.xlu0.b32.cont [10/16] 0.0, 128
        %2043 = vxpose.xlu0.b32.cont [11/16] 0.0, 128
        %2044 = vxpose.xlu0.b32.cont [12/16] 0.0, 128
        %2045 = vxpose.xlu0.b32.cont [13/16] 0.0, 128
        %2046 = vxpose.xlu0.b32.cont [14/16] 0.0, 128
        %2047 = vxpose.xlu0.b32.cont [15/16] 0.0, 128
        %2048 = vxpose.xlu0.b32.end [16/16] 0.0, 128
        %v2049 = vpop.trf.xlu0
        %v2050 = vpop.trf.xlu0
        %v2051 = vpop.trf.xlu0
        %v2052 = vpop.trf.xlu0
        %v2053 = vpop.trf.xlu0
        %v2054 = vpop.trf.xlu0
        %v2055 = vpop.trf.xlu0
        %v2056 = vpop.trf.xlu0
        %v2057 = vpop.trf.xlu0
        %v2058 = vpop.trf.xlu0
        %v2059 = vpop.trf.xlu0
        %v2060 = vpop.trf.xlu0
        %v2061 = vpop.trf.xlu0
        %v2062 = vpop.trf.xlu0
        %v2063 = vpop.trf.xlu0
        %v2064 = vpop.trf.xlu0
        %2065 = vxpose.xlu0.b32.start [1/16] %v1994, 128
        %2066 = vxpose.xlu0.b32.cont [2/16] 0.0, 128
        %2067 = vxpose.xlu0.b32.cont [3/16] 0.0, 128
        %2068 = vxpose.xlu0.b32.cont [4/16] 0.0, 128
        %2069 = vxpose.xlu0.b32.cont [5/16] 0.0, 128
        %2070 = vxpose.xlu0.b32.cont [6/16] 0.0, 128
        %2071 = vxpose.xlu0.b32.cont [7/16] 0.0, 128
        %2072 = vxpose.xlu0.b32.cont [8/16] 0.0, 128
        %2073 = vxpose.xlu0.b32.cont [9/16] 0.0, 128
        %2074 = vxpose.xlu0.b32.cont [10/16] 0.0, 128
        %2075 = vxpose.xlu0.b32.cont [11/16] 0.0, 128
        %2076 = vxpose.xlu0.b32.cont [12/16] 0.0, 128
        %2077 = vxpose.xlu0.b32.cont [13/16] 0.0, 128
        %2078 = vxpose.xlu0.b32.cont [14/16] 0.0, 128
        %2079 = vxpose.xlu0.b32.cont [15/16] 0.0, 128
        %2080 = vxpose.xlu0.b32.end [16/16] 0.0, 128
        %v2081 = vpop.trf.xlu0
        %v2082 = vpop.trf.xlu0
        %v2083 = vpop.trf.xlu0
        %v2084 = vpop.trf.xlu0
        %v2085 = vpop.trf.xlu0
        %v2086 = vpop.trf.xlu0
        %v2087 = vpop.trf.xlu0
        %v2088 = vpop.trf.xlu0
        %v2089 = vpop.trf.xlu0
        %v2090 = vpop.trf.xlu0
        %v2091 = vpop.trf.xlu0
        %v2092 = vpop.trf.xlu0
        %v2093 = vpop.trf.xlu0
        %v2094 = vpop.trf.xlu0
        %v2095 = vpop.trf.xlu0
        %v2096 = vpop.trf.xlu0
        %2097 = vxpose.xlu0.b32.start [1/16] %v1996, 128
        %2098 = vxpose.xlu0.b32.cont [2/16] 0.0, 128
        %2099 = vxpose.xlu0.b32.cont [3/16] 0.0, 128
        %2100 = vxpose.xlu0.b32.cont [4/16] 0.0, 128
        %2101 = vxpose.xlu0.b32.cont [5/16] 0.0, 128
        %2102 = vxpose.xlu0.b32.cont [6/16] 0.0, 128
        %2103 = vxpose.xlu0.b32.cont [7/16] 0.0, 128
        %2104 = vxpose.xlu0.b32.cont [8/16] 0.0, 128
        %2105 = vxpose.xlu0.b32.cont [9/16] 0.0, 128
        %2106 = vxpose.xlu0.b32.cont [10/16] 0.0, 128
        %2107 = vxpose.xlu0.b32.cont [11/16] 0.0, 128
        %2108 = vxpose.xlu0.b32.cont [12/16] 0.0, 128
        %2109 = vxpose.xlu0.b32.cont [13/16] 0.0, 128
        %2110 = vxpose.xlu0.b32.cont [14/16] 0.0, 128
        %2111 = vxpose.xlu0.b32.cont [15/16] 0.0, 128
        %2112 = vxpose.xlu0.b32.end [16/16] 0.0, 128
        %v2113 = vpop.trf.xlu0
        %v2114 = vpop.trf.xlu0
        %v2115 = vpop.trf.xlu0
        %v2116 = vpop.trf.xlu0
        %v2117 = vpop.trf.xlu0
        %v2118 = vpop.trf.xlu0
        %v2119 = vpop.trf.xlu0
        %v2120 = vpop.trf.xlu0
        %v2121 = vpop.trf.xlu0
        %v2122 = vpop.trf.xlu0
        %v2123 = vpop.trf.xlu0
        %v2124 = vpop.trf.xlu0
        %v2125 = vpop.trf.xlu0
        %v2126 = vpop.trf.xlu0
        %v2127 = vpop.trf.xlu0
        %v2128 = vpop.trf.xlu0
        %v2129 = vsel %vm560, %v1979, 0
        %2131 = vmatprep.subr.mxu0 0.0
        %2132 = vmatpush1.msra.mxu0 0.0
        %2133 = vmatprep.subr.mxu0 0.0
        %2134 = vmatpush1.msra.mxu0 0.0
        %2135 = vmatprep.subr.mxu0 0.0
        %2136 = vmatpush1.msra.mxu0 0.0
        %2137 = vmatprep.subr.mxu0 0.0
        %2138 = vmatpush1.msra.mxu0 0.0
        %2139 = vmatprep.subr.mxu0 0.0
        %2140 = vmatpush1.msra.mxu0 0.0
        %2141 = vmatprep.subr.mxu0 0.0
        %2142 = vmatpush1.msra.mxu0 0.0
        %2143 = vmatprep.subr.mxu0 0.0
        %2144 = vmatpush1.msra.mxu0 0.0
        %2145 = vmatprep.subr.mxu0 0.0
        %2146 = vmatpush1.msra.mxu0 0.0
        %2147 = vmatprep.subr.mxu0 0.0
        %2148 = vmatpush1.msra.mxu0 0.0
        %2149 = vmatprep.subr.mxu0 0.0
        %2150 = vmatpush1.msra.mxu0 0.0
        %2151 = vmatprep.subr.mxu0 0.0
        %2152 = vmatpush1.msra.mxu0 0.0
        %2153 = vmatprep.subr.mxu0 0.0
        %2154 = vmatpush1.msra.mxu0 0.0
        %2155 = vmatprep.subr.mxu0 0.0
        %2156 = vmatpush1.msra.mxu0 0.0
        %2157 = vmatprep.subr.mxu0 0.0
        %2158 = vmatpush1.msra.mxu0 0.0
        %2159 = vmatprep.subr.mxu0 0.0
        %2160 = vmatpush1.msra.mxu0 0.0
        %2161 = vmatprep.subr.mxu0 0.0
        %2162 = vmatpush1.msra.mxu0 %v2017
        %2163 = vmatprep.subr.mxu0 0.0
        %2164 = vmatpush2.msra.mxu0 0.0
        %2165 = vmatprep.subr.mxu0 0.0
        %2166 = vmatpush2.msra.mxu0 0.0
        %2167 = vmatprep.subr.mxu0 0.0
        %2168 = vmatpush2.msra.mxu0 0.0
        %2169 = vmatprep.subr.mxu0 0.0
        %2170 = vmatpush2.msra.mxu0 0.0
        %2171 = vmatprep.subr.mxu0 0.0
        %2172 = vmatpush2.msra.mxu0 0.0
        %2173 = vmatprep.subr.mxu0 0.0
        %2174 = vmatpush2.msra.mxu0 0.0
        %2175 = vmatprep.subr.mxu0 0.0
        %2176 = vmatpush2.msra.mxu0 0.0
        %2177 = vmatprep.subr.mxu0 0.0
        %2178 = vmatpush2.msra.mxu0 0.0
        %2179 = vmatprep.subr.mxu0 0.0
        %2180 = vmatpush2.msra.mxu0 0.0
        %2181 = vmatprep.subr.mxu0 0.0
        %2182 = vmatpush2.msra.mxu0 0.0
        %2183 = vmatprep.subr.mxu0 0.0
        %2184 = vmatpush2.msra.mxu0 0.0
        %2185 = vmatprep.subr.mxu0 0.0
        %2186 = vmatpush2.msra.mxu0 0.0
        %2187 = vmatprep.subr.mxu0 0.0
        %2188 = vmatpush2.msra.mxu0 0.0
        %2189 = vmatprep.subr.mxu0 0.0
        %2190 = vmatpush2.msra.mxu0 0.0
        %2191 = vmatprep.subr.mxu0 0.0
        %2192 = vmatpush2.msra.mxu0 0.0
        %2193 = vmatprep.subr.mxu0 0.0
        %2194 = vmatpush2.msra.mxu0 0.0
        %2195 = vmatprep.mubr.f32.mxu0 0.0
        %2196 = vmatmul.mubr.f32.gmra.mxu0 %v2129
        %v2197 = vpop.f32.mrf.mxu0
        %v2198 = vadd.f32 %v310, %v2197
        %v2199 = vpop.f32.mrf.mxu0
        %2200 = vdwg.mxu0
        %v2201 = vsel %vm560, %v1984, 0
        %2203 = vmatprep.subr.mxu0 0.0
        %2204 = vmatpush1.msra.mxu0 0.0
        %2205 = vmatprep.subr.mxu0 0.0
        %2206 = vmatpush1.msra.mxu0 0.0
        %2207 = vmatprep.subr.mxu0 0.0
        %2208 = vmatpush1.msra.mxu0 0.0
        %2209 = vmatprep.subr.mxu0 0.0
        %2210 = vmatpush1.msra.mxu0 0.0
        %2211 = vmatprep.subr.mxu0 0.0
        %2212 = vmatpush1.msra.mxu0 0.0
        %2213 = vmatprep.subr.mxu0 0.0
        %2214 = vmatpush1.msra.mxu0 0.0
        %2215 = vmatprep.subr.mxu0 0.0
        %2216 = vmatpush1.msra.mxu0 0.0
        %2217 = vmatprep.subr.mxu0 0.0
        %2218 = vmatpush1.msra.mxu0 0.0
        %2219 = vmatprep.subr.mxu0 0.0
        %2220 = vmatpush1.msra.mxu0 0.0
        %2221 = vmatprep.subr.mxu0 0.0
        %2222 = vmatpush1.msra.mxu0 0.0
        %2223 = vmatprep.subr.mxu0 0.0
        %2224 = vmatpush1.msra.mxu0 0.0
        %2225 = vmatprep.subr.mxu0 0.0
        %2226 = vmatpush1.msra.mxu0 0.0
        %2227 = vmatprep.subr.mxu0 0.0
        %2228 = vmatpush1.msra.mxu0 0.0
        %2229 = vmatprep.subr.mxu0 0.0
        %2230 = vmatpush1.msra.mxu0 0.0
        %2231 = vmatprep.subr.mxu0 0.0
        %2232 = vmatpush1.msra.mxu0 0.0
        %2233 = vmatprep.subr.mxu0 0.0
        %2234 = vmatpush1.msra.mxu0 %v2049
        %2235 = vmatprep.subr.mxu0 0.0
        %2236 = vmatpush2.msra.mxu0 0.0
        %2237 = vmatprep.subr.mxu0 0.0
        %2238 = vmatpush2.msra.mxu0 0.0
        %2239 = vmatprep.subr.mxu0 0.0
        %2240 = vmatpush2.msra.mxu0 0.0
        %2241 = vmatprep.subr.mxu0 0.0
        %2242 = vmatpush2.msra.mxu0 0.0
        %2243 = vmatprep.subr.mxu0 0.0
        %2244 = vmatpush2.msra.mxu0 0.0
        %2245 = vmatprep.subr.mxu0 0.0
        %2246 = vmatpush2.msra.mxu0 0.0
        %2247 = vmatprep.subr.mxu0 0.0
        %2248 = vmatpush2.msra.mxu0 0.0
        %2249 = vmatprep.subr.mxu0 0.0
        %2250 = vmatpush2.msra.mxu0 0.0
        %2251 = vmatprep.subr.mxu0 0.0
        %2252 = vmatpush2.msra.mxu0 0.0
        %2253 = vmatprep.subr.mxu0 0.0
        %2254 = vmatpush2.msra.mxu0 0.0
        %2255 = vmatprep.subr.mxu0 0.0
        %2256 = vmatpush2.msra.mxu0 0.0
        %2257 = vmatprep.subr.mxu0 0.0
        %2258 = vmatpush2.msra.mxu0 0.0
        %2259 = vmatprep.subr.mxu0 0.0
        %2260 = vmatpush2.msra.mxu0 0.0
        %2261 = vmatprep.subr.mxu0 0.0
        %2262 = vmatpush2.msra.mxu0 0.0
        %2263 = vmatprep.subr.mxu0 0.0
        %2264 = vmatpush2.msra.mxu0 0.0
        %2265 = vmatprep.subr.mxu0 0.0
        %2266 = vmatpush2.msra.mxu0 0.0
        %2267 = vmatprep.mubr.f32.mxu0 0.0
        %2268 = vmatmul.mubr.f32.gmra.mxu0 %v2201
        %v2269 = vpop.f32.mrf.mxu0
        %v2270 = vadd.f32 %v311, %v2269
        %v2271 = vpop.f32.mrf.mxu0
        %2272 = vdwg.mxu0
        %v2273 = vsel %vm560, %v1986, 0
        %2275 = vmatprep.subr.mxu0 0.0
        %2276 = vmatpush1.msra.mxu0 0.0
        %2277 = vmatprep.subr.mxu0 0.0
        %2278 = vmatpush1.msra.mxu0 0.0
        %2279 = vmatprep.subr.mxu0 0.0
        %2280 = vmatpush1.msra.mxu0 0.0
        %2281 = vmatprep.subr.mxu0 0.0
        %2282 = vmatpush1.msra.mxu0 0.0
        %2283 = vmatprep.subr.mxu0 0.0
        %2284 = vmatpush1.msra.mxu0 0.0
        %2285 = vmatprep.subr.mxu0 0.0
        %2286 = vmatpush1.msra.mxu0 0.0
        %2287 = vmatprep.subr.mxu0 0.0
        %2288 = vmatpush1.msra.mxu0 0.0
        %2289 = vmatprep.subr.mxu0 0.0
        %2290 = vmatpush1.msra.mxu0 0.0
        %2291 = vmatprep.subr.mxu0 0.0
        %2292 = vmatpush1.msra.mxu0 0.0
        %2293 = vmatprep.subr.mxu0 0.0
        %2294 = vmatpush1.msra.mxu0 0.0
        %2295 = vmatprep.subr.mxu0 0.0
        %2296 = vmatpush1.msra.mxu0 0.0
        %2297 = vmatprep.subr.mxu0 0.0
        %2298 = vmatpush1.msra.mxu0 0.0
        %2299 = vmatprep.subr.mxu0 0.0
        %2300 = vmatpush1.msra.mxu0 0.0
        %2301 = vmatprep.subr.mxu0 0.0
        %2302 = vmatpush1.msra.mxu0 0.0
        %2303 = vmatprep.subr.mxu0 0.0
        %2304 = vmatpush1.msra.mxu0 0.0
        %2305 = vmatprep.subr.mxu0 0.0
        %2306 = vmatpush1.msra.mxu0 %v2081
        %2307 = vmatprep.subr.mxu0 0.0
        %2308 = vmatpush2.msra.mxu0 0.0
        %2309 = vmatprep.subr.mxu0 0.0
        %2310 = vmatpush2.msra.mxu0 0.0
        %2311 = vmatprep.subr.mxu0 0.0
        %2312 = vmatpush2.msra.mxu0 0.0
        %2313 = vmatprep.subr.mxu0 0.0
        %2314 = vmatpush2.msra.mxu0 0.0
        %2315 = vmatprep.subr.mxu0 0.0
        %2316 = vmatpush2.msra.mxu0 0.0
        %2317 = vmatprep.subr.mxu0 0.0
        %2318 = vmatpush2.msra.mxu0 0.0
        %2319 = vmatprep.subr.mxu0 0.0
        %2320 = vmatpush2.msra.mxu0 0.0
        %2321 = vmatprep.subr.mxu0 0.0
        %2322 = vmatpush2.msra.mxu0 0.0
        %2323 = vmatprep.subr.mxu0 0.0
        %2324 = vmatpush2.msra.mxu0 0.0
        %2325 = vmatprep.subr.mxu0 0.0
        %2326 = vmatpush2.msra.mxu0 0.0
        %2327 = vmatprep.subr.mxu0 0.0
        %2328 = vmatpush2.msra.mxu0 0.0
        %2329 = vmatprep.subr.mxu0 0.0
        %2330 = vmatpush2.msra.mxu0 0.0
        %2331 = vmatprep.subr.mxu0 0.0
        %2332 = vmatpush2.msra.mxu0 0.0
        %2333 = vmatprep.subr.mxu0 0.0
        %2334 = vmatpush2.msra.mxu0 0.0
        %2335 = vmatprep.subr.mxu0 0.0
        %2336 = vmatpush2.msra.mxu0 0.0
        %2337 = vmatprep.subr.mxu0 0.0
        %2338 = vmatpush2.msra.mxu0 0.0
        %2339 = vmatprep.mubr.f32.mxu0 0.0
        %2340 = vmatmul.mubr.f32.gmra.mxu0 %v2273
        %v2341 = vpop.f32.mrf.mxu0
        %v2342 = vadd.f32 %v312, %v2341
        %v2343 = vpop.f32.mrf.mxu0
        %2344 = vdwg.mxu0
        %v2345 = vsel %vm560, %v1988, 0
        %2347 = vmatprep.subr.mxu0 0.0
        %2348 = vmatpush1.msra.mxu0 0.0
        %2349 = vmatprep.subr.mxu0 0.0
        %2350 = vmatpush1.msra.mxu0 0.0
        %2351 = vmatprep.subr.mxu0 0.0
        %2352 = vmatpush1.msra.mxu0 0.0
        %2353 = vmatprep.subr.mxu0 0.0
        %2354 = vmatpush1.msra.mxu0 0.0
        %2355 = vmatprep.subr.mxu0 0.0
        %2356 = vmatpush1.msra.mxu0 0.0
        %2357 = vmatprep.subr.mxu0 0.0
        %2358 = vmatpush1.msra.mxu0 0.0
        %2359 = vmatprep.subr.mxu0 0.0
        %2360 = vmatpush1.msra.mxu0 0.0
        %2361 = vmatprep.subr.mxu0 0.0
        %2362 = vmatpush1.msra.mxu0 0.0
        %2363 = vmatprep.subr.mxu0 0.0
        %2364 = vmatpush1.msra.mxu0 0.0
        %2365 = vmatprep.subr.mxu0 0.0
        %2366 = vmatpush1.msra.mxu0 0.0
        %2367 = vmatprep.subr.mxu0 0.0
        %2368 = vmatpush1.msra.mxu0 0.0
        %2369 = vmatprep.subr.mxu0 0.0
        %2370 = vmatpush1.msra.mxu0 0.0
        %2371 = vmatprep.subr.mxu0 0.0
        %2372 = vmatpush1.msra.mxu0 0.0
        %2373 = vmatprep.subr.mxu0 0.0
        %2374 = vmatpush1.msra.mxu0 0.0
        %2375 = vmatprep.subr.mxu0 0.0
        %2376 = vmatpush1.msra.mxu0 0.0
        %2377 = vmatprep.subr.mxu0 0.0
        %2378 = vmatpush1.msra.mxu0 %v2113
        %2379 = vmatprep.subr.mxu0 0.0
        %2380 = vmatpush2.msra.mxu0 0.0
        %2381 = vmatprep.subr.mxu0 0.0
        %2382 = vmatpush2.msra.mxu0 0.0
        %2383 = vmatprep.subr.mxu0 0.0
        %2384 = vmatpush2.msra.mxu0 0.0
        %2385 = vmatprep.subr.mxu0 0.0
        %2386 = vmatpush2.msra.mxu0 0.0
        %2387 = vmatprep.subr.mxu0 0.0
        %2388 = vmatpush2.msra.mxu0 0.0
        %2389 = vmatprep.subr.mxu0 0.0
        %2390 = vmatpush2.msra.mxu0 0.0
        %2391 = vmatprep.subr.mxu0 0.0
        %2392 = vmatpush2.msra.mxu0 0.0
        %2393 = vmatprep.subr.mxu0 0.0
        %2394 = vmatpush2.msra.mxu0 0.0
        %2395 = vmatprep.subr.mxu0 0.0
        %2396 = vmatpush2.msra.mxu0 0.0
        %2397 = vmatprep.subr.mxu0 0.0
        %2398 = vmatpush2.msra.mxu0 0.0
        %2399 = vmatprep.subr.mxu0 0.0
        %2400 = vmatpush2.msra.mxu0 0.0
        %2401 = vmatprep.subr.mxu0 0.0
        %2402 = vmatpush2.msra.mxu0 0.0
        %2403 = vmatprep.subr.mxu0 0.0
        %2404 = vmatpush2.msra.mxu0 0.0
        %2405 = vmatprep.subr.mxu0 0.0
        %2406 = vmatpush2.msra.mxu0 0.0
        %2407 = vmatprep.subr.mxu0 0.0
        %2408 = vmatpush2.msra.mxu0 0.0
        %2409 = vmatprep.subr.mxu0 0.0
        %2410 = vmatpush2.msra.mxu0 0.0
        %2411 = vmatprep.mubr.f32.mxu0 0.0
        %2412 = vmatmul.mubr.f32.gmra.mxu0 %v2345
        %v2413 = vpop.f32.mrf.mxu0
        %v2414 = vadd.f32 %v313, %v2413
        %v2415 = vpop.f32.mrf.mxu0
        %2416 = vdwg.mxu0
        %v2417 = vsel %vm560, %v2198, -inf
        %2418 = vmax.xlane.f32.xlu0 %v2417
        %v2419 = vpop.xlane.xlu0 %2418
        %v2420 = vsel %vm560, %v2270, -inf
        %2421 = vmax.xlane.f32.xlu0 %v2420
        %v2422 = vpop.xlane.xlu0 %2421
        %v2423 = vsel %vm560, %v2342, -inf
        %2424 = vmax.xlane.f32.xlu0 %v2423
        %v2425 = vpop.xlane.xlu0 %2424
        %v2426 = vsel %vm560, %v2414, -inf
        %2427 = vmax.xlane.f32.xlu0 %v2426
        %v2428 = vpop.xlane.xlu0 %2427
        %v2429 = vsub.f32 %v2198, %v2419
        %v2430 = vsub.f32 %v2270, %v2422
        %v2431 = vsub.f32 %v2342, %v2425
        %v2432 = vsub.f32 %v2414, %v2428
        %v2433 = vmul.f32 %v2429, 1.442695
        %v2434 = vpow.pop %v2433
        %v2435 = vmul.f32 %v2430, 1.442695
        %v2436 = vpow.pop %v2435
        %v2437 = vmul.f32 %v2431, 1.442695
        %v2438 = vpow.pop %v2437
        %v2439 = vmul.f32 %v2432, 1.442695
        %v2440 = vpow.pop %v2439
        %v2441 = vsel %vm560, %v2434, 0.0
        %2442 = vadd.xlane.f32.xlu0 %v2441
        %v2443 = vpop.xlane.xlu0 %2442
        %v2444 = vsel %vm560, %v2436, 0.0
        %2445 = vadd.xlane.f32.xlu0 %v2444
        %v2446 = vpop.xlane.xlu0 %2445
        %v2447 = vsel %vm560, %v2438, 0.0
        %2448 = vadd.xlane.f32.xlu0 %v2447
        %v2449 = vpop.xlane.xlu0 %2448
        %v2450 = vsel %vm560, %v2440, 0.0
        %2451 = vadd.xlane.f32.xlu0 %v2450
        %v2452 = vpop.xlane.xlu0 %2451
        %v2453 = vrcp.pop %v2443
        %v2454 = vrcp.pop %v2446
        %v2455 = vrcp.pop %v2449
        %v2456 = vrcp.pop %v2452
        %v2457 = vmul.f32 %v2434, %v2453
        %v2458 = vmul.f32 %v2436, %v2454
        %v2459 = vmul.f32 %v2438, %v2455
        %v2460 = vmul.f32 %v2440, %v2456
        %2461 = vrot.lane.b32.xlu0 %v1979, 64
        %v2462 = vpop.permute.xlu0 %2461
        %2463 = vrot.lane.b32.xlu0 %v1984, 64
        %v2464 = vpop.permute.xlu0 %2463
        %2465 = vrot.lane.b32.xlu0 %v1986, 64
        %v2466 = vpop.permute.xlu0 %2465
        %2467 = vrot.lane.b32.xlu0 %v1988, 64
        %v2468 = vpop.permute.xlu0 %2467
        %2473 = vxpose.xlu0.b32.start [1/16] %v2462, 128
        %2474 = vxpose.xlu0.b32.cont [2/16] 0.0, 128
        %2475 = vxpose.xlu0.b32.cont [3/16] 0.0, 128
        %2476 = vxpose.xlu0.b32.cont [4/16] 0.0, 128
        %2477 = vxpose.xlu0.b32.cont [5/16] 0.0, 128
        %2478 = vxpose.xlu0.b32.cont [6/16] 0.0, 128
        %2479 = vxpose.xlu0.b32.cont [7/16] 0.0, 128
        %2480 = vxpose.xlu0.b32.cont [8/16] 0.0, 128
        %2481 = vxpose.xlu0.b32.cont [9/16] 0.0, 128
        %2482 = vxpose.xlu0.b32.cont [10/16] 0.0, 128
        %2483 = vxpose.xlu0.b32.cont [11/16] 0.0, 128
        %2484 = vxpose.xlu0.b32.cont [12/16] 0.0, 128
        %2485 = vxpose.xlu0.b32.cont [13/16] 0.0, 128
        %2486 = vxpose.xlu0.b32.cont [14/16] 0.0, 128
        %2487 = vxpose.xlu0.b32.cont [15/16] 0.0, 128
        %2488 = vxpose.xlu0.b32.end [16/16] 0.0, 128
        %v2489 = vpop.trf.xlu0
        %v2490 = vpop.trf.xlu0
        %v2491 = vpop.trf.xlu0
        %v2492 = vpop.trf.xlu0
        %v2493 = vpop.trf.xlu0
        %v2494 = vpop.trf.xlu0
        %v2495 = vpop.trf.xlu0
        %v2496 = vpop.trf.xlu0
        %v2497 = vpop.trf.xlu0
        %v2498 = vpop.trf.xlu0
        %v2499 = vpop.trf.xlu0
        %v2500 = vpop.trf.xlu0
        %v2501 = vpop.trf.xlu0
        %v2502 = vpop.trf.xlu0
        %v2503 = vpop.trf.xlu0
        %v2504 = vpop.trf.xlu0
        %2505 = vxpose.xlu0.b32.start [1/16] %v2464, 128
        %2506 = vxpose.xlu0.b32.cont [2/16] 0.0, 128
        %2507 = vxpose.xlu0.b32.cont [3/16] 0.0, 128
        %2508 = vxpose.xlu0.b32.cont [4/16] 0.0, 128
        %2509 = vxpose.xlu0.b32.cont [5/16] 0.0, 128
        %2510 = vxpose.xlu0.b32.cont [6/16] 0.0, 128
        %2511 = vxpose.xlu0.b32.cont [7/16] 0.0, 128
        %2512 = vxpose.xlu0.b32.cont [8/16] 0.0, 128
        %2513 = vxpose.xlu0.b32.cont [9/16] 0.0, 128
        %2514 = vxpose.xlu0.b32.cont [10/16] 0.0, 128
        %2515 = vxpose.xlu0.b32.cont [11/16] 0.0, 128
        %2516 = vxpose.xlu0.b32.cont [12/16] 0.0, 128
        %2517 = vxpose.xlu0.b32.cont [13/16] 0.0, 128
        %2518 = vxpose.xlu0.b32.cont [14/16] 0.0, 128
        %2519 = vxpose.xlu0.b32.cont [15/16] 0.0, 128
        %2520 = vxpose.xlu0.b32.end [16/16] 0.0, 128
        %v2521 = vpop.trf.xlu0
        %v2522 = vpop.trf.xlu0
        %v2523 = vpop.trf.xlu0
        %v2524 = vpop.trf.xlu0
        %v2525 = vpop.trf.xlu0
        %v2526 = vpop.trf.xlu0
        %v2527 = vpop.trf.xlu0
        %v2528 = vpop.trf.xlu0
        %v2529 = vpop.trf.xlu0
        %v2530 = vpop.trf.xlu0
        %v2531 = vpop.trf.xlu0
        %v2532 = vpop.trf.xlu0
        %v2533 = vpop.trf.xlu0
        %v2534 = vpop.trf.xlu0
        %v2535 = vpop.trf.xlu0
        %v2536 = vpop.trf.xlu0
        %2537 = vxpose.xlu0.b32.start [1/16] %v2466, 128
        %2538 = vxpose.xlu0.b32.cont [2/16] 0.0, 128
        %2539 = vxpose.xlu0.b32.cont [3/16] 0.0, 128
        %2540 = vxpose.xlu0.b32.cont [4/16] 0.0, 128
        %2541 = vxpose.xlu0.b32.cont [5/16] 0.0, 128
        %2542 = vxpose.xlu0.b32.cont [6/16] 0.0, 128
        %2543 = vxpose.xlu0.b32.cont [7/16] 0.0, 128
        %2544 = vxpose.xlu0.b32.cont [8/16] 0.0, 128
        %2545 = vxpose.xlu0.b32.cont [9/16] 0.0, 128
        %2546 = vxpose.xlu0.b32.cont [10/16] 0.0, 128
        %2547 = vxpose.xlu0.b32.cont [11/16] 0.0, 128
        %2548 = vxpose.xlu0.b32.cont [12/16] 0.0, 128
        %2549 = vxpose.xlu0.b32.cont [13/16] 0.0, 128
        %2550 = vxpose.xlu0.b32.cont [14/16] 0.0, 128
        %2551 = vxpose.xlu0.b32.cont [15/16] 0.0, 128
        %2552 = vxpose.xlu0.b32.end [16/16] 0.0, 128
        %v2553 = vpop.trf.xlu0
        %v2554 = vpop.trf.xlu0
        %v2555 = vpop.trf.xlu0
        %v2556 = vpop.trf.xlu0
        %v2557 = vpop.trf.xlu0
        %v2558 = vpop.trf.xlu0
        %v2559 = vpop.trf.xlu0
        %v2560 = vpop.trf.xlu0
        %v2561 = vpop.trf.xlu0
        %v2562 = vpop.trf.xlu0
        %v2563 = vpop.trf.xlu0
        %v2564 = vpop.trf.xlu0
        %v2565 = vpop.trf.xlu0
        %v2566 = vpop.trf.xlu0
        %v2567 = vpop.trf.xlu0
        %v2568 = vpop.trf.xlu0
        %2569 = vxpose.xlu0.b32.start [1/16] %v2468, 128
        %2570 = vxpose.xlu0.b32.cont [2/16] 0.0, 128
        %2571 = vxpose.xlu0.b32.cont [3/16] 0.0, 128
        %2572 = vxpose.xlu0.b32.cont [4/16] 0.0, 128
        %2573 = vxpose.xlu0.b32.cont [5/16] 0.0, 128
        %2574 = vxpose.xlu0.b32.cont [6/16] 0.0, 128
        %2575 = vxpose.xlu0.b32.cont [7/16] 0.0, 128
        %2576 = vxpose.xlu0.b32.cont [8/16] 0.0, 128
        %2577 = vxpose.xlu0.b32.cont [9/16] 0.0, 128
        %2578 = vxpose.xlu0.b32.cont [10/16] 0.0, 128
        %2579 = vxpose.xlu0.b32.cont [11/16] 0.0, 128
        %2580 = vxpose.xlu0.b32.cont [12/16] 0.0, 128
        %2581 = vxpose.xlu0.b32.cont [13/16] 0.0, 128
        %2582 = vxpose.xlu0.b32.cont [14/16] 0.0, 128
        %2583 = vxpose.xlu0.b32.cont [15/16] 0.0, 128
        %2584 = vxpose.xlu0.b32.end [16/16] 0.0, 128
        %v2585 = vpop.trf.xlu0
        %v2586 = vpop.trf.xlu0
        %v2587 = vpop.trf.xlu0
        %v2588 = vpop.trf.xlu0
        %v2589 = vpop.trf.xlu0
        %v2590 = vpop.trf.xlu0
        %v2591 = vpop.trf.xlu0
        %v2592 = vpop.trf.xlu0
        %v2593 = vpop.trf.xlu0
        %v2594 = vpop.trf.xlu0
        %v2595 = vpop.trf.xlu0
        %v2596 = vpop.trf.xlu0
        %v2597 = vpop.trf.xlu0
        %v2598 = vpop.trf.xlu0
        %v2599 = vpop.trf.xlu0
        %v2600 = vpop.trf.xlu0
        %v2602 = vsel %vm560, %v2489, 0
        %v2605 = vsel %vm560, %v2457, 0
        %2607 = vmatprep.subr.mxu0 0.0
        %2608 = vmatpush1.xpose.msra.mxu0 0.0
        %2609 = vmatprep.subr.mxu0 0.0
        %2610 = vmatpush1.xpose.msra.mxu0 0.0
        %2611 = vmatprep.subr.mxu0 0.0
        %2612 = vmatpush1.xpose.msra.mxu0 0.0
        %2613 = vmatprep.subr.mxu0 0.0
        %2614 = vmatpush1.xpose.msra.mxu0 0.0
        %2615 = vmatprep.subr.mxu0 0.0
        %2616 = vmatpush1.xpose.msra.mxu0 0.0
        %2617 = vmatprep.subr.mxu0 0.0
        %2618 = vmatpush1.xpose.msra.mxu0 0.0
        %2619 = vmatprep.subr.mxu0 0.0
        %2620 = vmatpush1.xpose.msra.mxu0 0.0
        %2621 = vmatprep.subr.mxu0 0.0
        %2622 = vmatpush1.xpose.msra.mxu0 0.0
        %2623 = vmatprep.subr.mxu0 0.0
        %2624 = vmatpush1.xpose.msra.mxu0 0.0
        %2625 = vmatprep.subr.mxu0 0.0
        %2626 = vmatpush1.xpose.msra.mxu0 0.0
        %2627 = vmatprep.subr.mxu0 0.0
        %2628 = vmatpush1.xpose.msra.mxu0 0.0
        %2629 = vmatprep.subr.mxu0 0.0
        %2630 = vmatpush1.xpose.msra.mxu0 0.0
        %2631 = vmatprep.subr.mxu0 0.0
        %2632 = vmatpush1.xpose.msra.mxu0 0.0
        %2633 = vmatprep.subr.mxu0 0.0
        %2634 = vmatpush1.xpose.msra.mxu0 0.0
        %2635 = vmatprep.subr.mxu0 0.0
        %2636 = vmatpush1.xpose.msra.mxu0 0.0
        %2637 = vmatprep.subr.mxu0 0.0
        %2638 = vmatpush1.xpose.msra.mxu0 %v2605
        %2639 = vmatprep.subr.mxu0 0.0
        %2640 = vmatpush2.xpose.msra.mxu0 0.0
        %2641 = vmatprep.subr.mxu0 0.0
        %2642 = vmatpush2.xpose.msra.mxu0 0.0
        %2643 = vmatprep.subr.mxu0 0.0
        %2644 = vmatpush2.xpose.msra.mxu0 0.0
        %2645 = vmatprep.subr.mxu0 0.0
        %2646 = vmatpush2.xpose.msra.mxu0 0.0
        %2647 = vmatprep.subr.mxu0 0.0
        %2648 = vmatpush2.xpose.msra.mxu0 0.0
        %2649 = vmatprep.subr.mxu0 0.0
        %2650 = vmatpush2.xpose.msra.mxu0 0.0
        %2651 = vmatprep.subr.mxu0 0.0
        %2652 = vmatpush2.xpose.msra.mxu0 0.0
        %2653 = vmatprep.subr.mxu0 0.0
        %2654 = vmatpush2.xpose.msra.mxu0 0.0
        %2655 = vmatprep.subr.mxu0 0.0
        %2656 = vmatpush2.xpose.msra.mxu0 0.0
        %2657 = vmatprep.subr.mxu0 0.0
        %2658 = vmatpush2.xpose.msra.mxu0 0.0
        %2659 = vmatprep.subr.mxu0 0.0
        %2660 = vmatpush2.xpose.msra.mxu0 0.0
        %2661 = vmatprep.subr.mxu0 0.0
        %2662 = vmatpush2.xpose.msra.mxu0 0.0
        %2663 = vmatprep.subr.mxu0 0.0
        %2664 = vmatpush2.xpose.msra.mxu0 0.0
        %2665 = vmatprep.subr.mxu0 0.0
        %2666 = vmatpush2.xpose.msra.mxu0 0.0
        %2667 = vmatprep.subr.mxu0 0.0
        %2668 = vmatpush2.xpose.msra.mxu0 0.0
        %2669 = vmatprep.subr.mxu0 0.0
        %2670 = vmatpush2.xpose.msra.mxu0 0.0
        %2671 = vmatprep.mubr.f32.mxu0 0.0
        %2672 = vmatmul.mubr.f32.gmra.mxu0 %v2602
        %v2673 = vpop.f32.mrf.mxu0
        %v2674 = vadd.f32 0.0, %v2673
        %v2675 = vpop.f32.mrf.mxu0
        %2676 = vdwg.mxu0
        %v2678 = vsel %vm560, %v2521, 0
        %v2681 = vsel %vm560, %v2458, 0
        %2683 = vmatprep.subr.mxu0 0.0
        %2684 = vmatpush1.xpose.msra.mxu0 0.0
        %2685 = vmatprep.subr.mxu0 0.0
        %2686 = vmatpush1.xpose.msra.mxu0 0.0
        %2687 = vmatprep.subr.mxu0 0.0
        %2688 = vmatpush1.xpose.msra.mxu0 0.0
        %2689 = vmatprep.subr.mxu0 0.0
        %2690 = vmatpush1.xpose.msra.mxu0 0.0
        %2691 = vmatprep.subr.mxu0 0.0
        %2692 = vmatpush1.xpose.msra.mxu0 0.0
        %2693 = vmatprep.subr.mxu0 0.0
        %2694 = vmatpush1.xpose.msra.mxu0 0.0
        %2695 = vmatprep.subr.mxu0 0.0
        %2696 = vmatpush1.xpose.msra.mxu0 0.0
        %2697 = vmatprep.subr.mxu0 0.0
        %2698 = vmatpush1.xpose.msra.mxu0 0.0
        %2699 = vmatprep.subr.mxu0 0.0
        %2700 = vmatpush1.xpose.msra.mxu0 0.0
        %2701 = vmatprep.subr.mxu0 0.0
        %2702 = vmatpush1.xpose.msra.mxu0 0.0
        %2703 = vmatprep.subr.mxu0 0.0
        %2704 = vmatpush1.xpose.msra.mxu0 0.0
        %2705 = vmatprep.subr.mxu0 0.0
        %2706 = vmatpush1.xpose.msra.mxu0 0.0
        %2707 = vmatprep.subr.mxu0 0.0
        %2708 = vmatpush1.xpose.msra.mxu0 0.0
        %2709 = vmatprep.subr.mxu0 0.0
        %2710 = vmatpush1.xpose.msra.mxu0 0.0
        %2711 = vmatprep.subr.mxu0 0.0
        %2712 = vmatpush1.xpose.msra.mxu0 0.0
        %2713 = vmatprep.subr.mxu0 0.0
        %2714 = vmatpush1.xpose.msra.mxu0 %v2681
        %2715 = vmatprep.subr.mxu0 0.0
        %2716 = vmatpush2.xpose.msra.mxu0 0.0
        %2717 = vmatprep.subr.mxu0 0.0
        %2718 = vmatpush2.xpose.msra.mxu0 0.0
        %2719 = vmatprep.subr.mxu0 0.0
        %2720 = vmatpush2.xpose.msra.mxu0 0.0
        %2721 = vmatprep.subr.mxu0 0.0
        %2722 = vmatpush2.xpose.msra.mxu0 0.0
        %2723 = vmatprep.subr.mxu0 0.0
        %2724 = vmatpush2.xpose.msra.mxu0 0.0
        %2725 = vmatprep.subr.mxu0 0.0
        %2726 = vmatpush2.xpose.msra.mxu0 0.0
        %2727 = vmatprep.subr.mxu0 0.0
        %2728 = vmatpush2.xpose.msra.mxu0 0.0
        %2729 = vmatprep.subr.mxu0 0.0
        %2730 = vmatpush2.xpose.msra.mxu0 0.0
        %2731 = vmatprep.subr.mxu0 0.0
        %2732 = vmatpush2.xpose.msra.mxu0 0.0
        %2733 = vmatprep.subr.mxu0 0.0
        %2734 = vmatpush2.xpose.msra.mxu0 0.0
        %2735 = vmatprep.subr.mxu0 0.0
        %2736 = vmatpush2.xpose.msra.mxu0 0.0
        %2737 = vmatprep.subr.mxu0 0.0
        %2738 = vmatpush2.xpose.msra.mxu0 0.0
        %2739 = vmatprep.subr.mxu0 0.0
        %2740 = vmatpush2.xpose.msra.mxu0 0.0
        %2741 = vmatprep.subr.mxu0 0.0
        %2742 = vmatpush2.xpose.msra.mxu0 0.0
        %2743 = vmatprep.subr.mxu0 0.0
        %2744 = vmatpush2.xpose.msra.mxu0 0.0
        %2745 = vmatprep.subr.mxu0 0.0
        %2746 = vmatpush2.xpose.msra.mxu0 0.0
        %2747 = vmatprep.mubr.f32.mxu0 0.0
        %2748 = vmatmul.mubr.f32.gmra.mxu0 %v2678
        %v2749 = vpop.f32.mrf.mxu0
        %v2750 = vadd.f32 0.0, %v2749
        %v2751 = vpop.f32.mrf.mxu0
        %2752 = vdwg.mxu0
        %v2754 = vsel %vm560, %v2553, 0
        %v2757 = vsel %vm560, %v2459, 0
        %2759 = vmatprep.subr.mxu0 0.0
        %2760 = vmatpush1.xpose.msra.mxu0 0.0
        %2761 = vmatprep.subr.mxu0 0.0
        %2762 = vmatpush1.xpose.msra.mxu0 0.0
        %2763 = vmatprep.subr.mxu0 0.0
        %2764 = vmatpush1.xpose.msra.mxu0 0.0
        %2765 = vmatprep.subr.mxu0 0.0
        %2766 = vmatpush1.xpose.msra.mxu0 0.0
        %2767 = vmatprep.subr.mxu0 0.0
        %2768 = vmatpush1.xpose.msra.mxu0 0.0
        %2769 = vmatprep.subr.mxu0 0.0
        %2770 = vmatpush1.xpose.msra.mxu0 0.0
        %2771 = vmatprep.subr.mxu0 0.0
        %2772 = vmatpush1.xpose.msra.mxu0 0.0
        %2773 = vmatprep.subr.mxu0 0.0
        %2774 = vmatpush1.xpose.msra.mxu0 0.0
        %2775 = vmatprep.subr.mxu0 0.0
        %2776 = vmatpush1.xpose.msra.mxu0 0.0
        %2777 = vmatprep.subr.mxu0 0.0
        %2778 = vmatpush1.xpose.msra.mxu0 0.0
        %2779 = vmatprep.subr.mxu0 0.0
        %2780 = vmatpush1.xpose.msra.mxu0 0.0
        %2781 = vmatprep.subr.mxu0 0.0
        %2782 = vmatpush1.xpose.msra.mxu0 0.0
        %2783 = vmatprep.subr.mxu0 0.0
        %2784 = vmatpush1.xpose.msra.mxu0 0.0
        %2785 = vmatprep.subr.mxu0 0.0
        %2786 = vmatpush1.xpose.msra.mxu0 0.0
        %2787 = vmatprep.subr.mxu0 0.0
        %2788 = vmatpush1.xpose.msra.mxu0 0.0
        %2789 = vmatprep.subr.mxu0 0.0
        %2790 = vmatpush1.xpose.msra.mxu0 %v2757
        %2791 = vmatprep.subr.mxu0 0.0
        %2792 = vmatpush2.xpose.msra.mxu0 0.0
        %2793 = vmatprep.subr.mxu0 0.0
        %2794 = vmatpush2.xpose.msra.mxu0 0.0
        %2795 = vmatprep.subr.mxu0 0.0
        %2796 = vmatpush2.xpose.msra.mxu0 0.0
        %2797 = vmatprep.subr.mxu0 0.0
        %2798 = vmatpush2.xpose.msra.mxu0 0.0
        %2799 = vmatprep.subr.mxu0 0.0
        %2800 = vmatpush2.xpose.msra.mxu0 0.0
        %2801 = vmatprep.subr.mxu0 0.0
        %2802 = vmatpush2.xpose.msra.mxu0 0.0
        %2803 = vmatprep.subr.mxu0 0.0
        %2804 = vmatpush2.xpose.msra.mxu0 0.0
        %2805 = vmatprep.subr.mxu0 0.0
        %2806 = vmatpush2.xpose.msra.mxu0 0.0
        %2807 = vmatprep.subr.mxu0 0.0
        %2808 = vmatpush2.xpose.msra.mxu0 0.0
        %2809 = vmatprep.subr.mxu0 0.0
        %2810 = vmatpush2.xpose.msra.mxu0 0.0
        %2811 = vmatprep.subr.mxu0 0.0
        %2812 = vmatpush2.xpose.msra.mxu0 0.0
        %2813 = vmatprep.subr.mxu0 0.0
        %2814 = vmatpush2.xpose.msra.mxu0 0.0
        %2815 = vmatprep.subr.mxu0 0.0
        %2816 = vmatpush2.xpose.msra.mxu0 0.0
        %2817 = vmatprep.subr.mxu0 0.0
        %2818 = vmatpush2.xpose.msra.mxu0 0.0
        %2819 = vmatprep.subr.mxu0 0.0
        %2820 = vmatpush2.xpose.msra.mxu0 0.0
        %2821 = vmatprep.subr.mxu0 0.0
        %2822 = vmatpush2.xpose.msra.mxu0 0.0
        %2823 = vmatprep.mubr.f32.mxu0 0.0
        %2824 = vmatmul.mubr.f32.gmra.mxu0 %v2754
        %v2825 = vpop.f32.mrf.mxu0
        %v2826 = vadd.f32 0.0, %v2825
        %v2827 = vpop.f32.mrf.mxu0
        %2828 = vdwg.mxu0
        %v2830 = vsel %vm560, %v2585, 0
        %v2833 = vsel %vm560, %v2460, 0
        %2835 = vmatprep.subr.mxu0 0.0
        %2836 = vmatpush1.xpose.msra.mxu0 0.0
        %2837 = vmatprep.subr.mxu0 0.0
        %2838 = vmatpush1.xpose.msra.mxu0 0.0
        %2839 = vmatprep.subr.mxu0 0.0
        %2840 = vmatpush1.xpose.msra.mxu0 0.0
        %2841 = vmatprep.subr.mxu0 0.0
        %2842 = vmatpush1.xpose.msra.mxu0 0.0
        %2843 = vmatprep.subr.mxu0 0.0
        %2844 = vmatpush1.xpose.msra.mxu0 0.0
        %2845 = vmatprep.subr.mxu0 0.0
        %2846 = vmatpush1.xpose.msra.mxu0 0.0
        %2847 = vmatprep.subr.mxu0 0.0
        %2848 = vmatpush1.xpose.msra.mxu0 0.0
        %2849 = vmatprep.subr.mxu0 0.0
        %2850 = vmatpush1.xpose.msra.mxu0 0.0
        %2851 = vmatprep.subr.mxu0 0.0
        %2852 = vmatpush1.xpose.msra.mxu0 0.0
        %2853 = vmatprep.subr.mxu0 0.0
        %2854 = vmatpush1.xpose.msra.mxu0 0.0
        %2855 = vmatprep.subr.mxu0 0.0
        %2856 = vmatpush1.xpose.msra.mxu0 0.0
        %2857 = vmatprep.subr.mxu0 0.0
        %2858 = vmatpush1.xpose.msra.mxu0 0.0
        %2859 = vmatprep.subr.mxu0 0.0
        %2860 = vmatpush1.xpose.msra.mxu0 0.0
        %2861 = vmatprep.subr.mxu0 0.0
        %2862 = vmatpush1.xpose.msra.mxu0 0.0
        %2863 = vmatprep.subr.mxu0 0.0
        %2864 = vmatpush1.xpose.msra.mxu0 0.0
        %2865 = vmatprep.subr.mxu0 0.0
        %2866 = vmatpush1.xpose.msra.mxu0 %v2833
        %2867 = vmatprep.subr.mxu0 0.0
        %2868 = vmatpush2.xpose.msra.mxu0 0.0
        %2869 = vmatprep.subr.mxu0 0.0
        %2870 = vmatpush2.xpose.msra.mxu0 0.0
        %2871 = vmatprep.subr.mxu0 0.0
        %2872 = vmatpush2.xpose.msra.mxu0 0.0
        %2873 = vmatprep.subr.mxu0 0.0
        %2874 = vmatpush2.xpose.msra.mxu0 0.0
        %2875 = vmatprep.subr.mxu0 0.0
        %2876 = vmatpush2.xpose.msra.mxu0 0.0
        %2877 = vmatprep.subr.mxu0 0.0
        %2878 = vmatpush2.xpose.msra.mxu0 0.0
        %2879 = vmatprep.subr.mxu0 0.0
        %2880 = vmatpush2.xpose.msra.mxu0 0.0
        %2881 = vmatprep.subr.mxu0 0.0
        %2882 = vmatpush2.xpose.msra.mxu0 0.0
        %2883 = vmatprep.subr.mxu0 0.0
        %2884 = vmatpush2.xpose.msra.mxu0 0.0
        %2885 = vmatprep.subr.mxu0 0.0
        %2886 = vmatpush2.xpose.msra.mxu0 0.0
        %2887 = vmatprep.subr.mxu0 0.0
        %2888 = vmatpush2.xpose.msra.mxu0 0.0
        %2889 = vmatprep.subr.mxu0 0.0
        %2890 = vmatpush2.xpose.msra.mxu0 0.0
        %2891 = vmatprep.subr.mxu0 0.0
        %2892 = vmatpush2.xpose.msra.mxu0 0.0
        %2893 = vmatprep.subr.mxu0 0.0
        %2894 = vmatpush2.xpose.msra.mxu0 0.0
        %2895 = vmatprep.subr.mxu0 0.0
        %2896 = vmatpush2.xpose.msra.mxu0 0.0
        %2897 = vmatprep.subr.mxu0 0.0
        %2898 = vmatpush2.xpose.msra.mxu0 0.0
        %2899 = vmatprep.mubr.f32.mxu0 0.0
        %2900 = vmatmul.mubr.f32.gmra.mxu0 %v2830
        %v2901 = vpop.f32.mrf.mxu0
        %v2902 = vadd.f32 0.0, %v2901
        %v2903 = vpop.f32.mrf.mxu0
        %2904 = vdwg.mxu0
        %2905 = vxpose.xlu0.b32.start [1/16] %v2674, 128
        %2906 = vxpose.xlu0.b32.cont [2/16] 0.0, 128
        %2907 = vxpose.xlu0.b32.cont [3/16] 0.0, 128
        %2908 = vxpose.xlu0.b32.cont [4/16] 0.0, 128
        %2909 = vxpose.xlu0.b32.cont [5/16] 0.0, 128
        %2910 = vxpose.xlu0.b32.cont [6/16] 0.0, 128
        %2911 = vxpose.xlu0.b32.cont [7/16] 0.0, 128
        %2912 = vxpose.xlu0.b32.cont [8/16] 0.0, 128
        %2913 = vxpose.xlu0.b32.cont [9/16] 0.0, 128
        %2914 = vxpose.xlu0.b32.cont [10/16] 0.0, 128
        %2915 = vxpose.xlu0.b32.cont [11/16] 0.0, 128
        %2916 = vxpose.xlu0.b32.cont [12/16] 0.0, 128
        %2917 = vxpose.xlu0.b32.cont [13/16] 0.0, 128
        %2918 = vxpose.xlu0.b32.cont [14/16] 0.0, 128
        %2919 = vxpose.xlu0.b32.cont [15/16] 0.0, 128
        %2920 = vxpose.xlu0.b32.end [16/16] 0.0, 128
        %v2921 = vpop.trf.xlu0
        %v2922 = vpop.trf.xlu0
        %v2923 = vpop.trf.xlu0
        %v2924 = vpop.trf.xlu0
        %v2925 = vpop.trf.xlu0
        %v2926 = vpop.trf.xlu0
        %v2927 = vpop.trf.xlu0
        %v2928 = vpop.trf.xlu0
        %v2929 = vpop.trf.xlu0
        %v2930 = vpop.trf.xlu0
        %v2931 = vpop.trf.xlu0
        %v2932 = vpop.trf.xlu0
        %v2933 = vpop.trf.xlu0
        %v2934 = vpop.trf.xlu0
        %v2935 = vpop.trf.xlu0
        %v2936 = vpop.trf.xlu0
        %2937 = vxpose.xlu0.b32.start [1/16] %v2750, 128
        %2938 = vxpose.xlu0.b32.cont [2/16] 0.0, 128
        %2939 = vxpose.xlu0.b32.cont [3/16] 0.0, 128
        %2940 = vxpose.xlu0.b32.cont [4/16] 0.0, 128
        %2941 = vxpose.xlu0.b32.cont [5/16] 0.0, 128
        %2942 = vxpose.xlu0.b32.cont [6/16] 0.0, 128
        %2943 = vxpose.xlu0.b32.cont [7/16] 0.0, 128
        %2944 = vxpose.xlu0.b32.cont [8/16] 0.0, 128
        %2945 = vxpose.xlu0.b32.cont [9/16] 0.0, 128
        %2946 = vxpose.xlu0.b32.cont [10/16] 0.0, 128
        %2947 = vxpose.xlu0.b32.cont [11/16] 0.0, 128
        %2948 = vxpose.xlu0.b32.cont [12/16] 0.0, 128
        %2949 = vxpose.xlu0.b32.cont [13/16] 0.0, 128
        %2950 = vxpose.xlu0.b32.cont [14/16] 0.0, 128
        %2951 = vxpose.xlu0.b32.cont [15/16] 0.0, 128
        %2952 = vxpose.xlu0.b32.end [16/16] 0.0, 128
        %v2953 = vpop.trf.xlu0
        %v2954 = vpop.trf.xlu0
        %v2955 = vpop.trf.xlu0
        %v2956 = vpop.trf.xlu0
        %v2957 = vpop.trf.xlu0
        %v2958 = vpop.trf.xlu0
        %v2959 = vpop.trf.xlu0
        %v2960 = vpop.trf.xlu0
        %v2961 = vpop.trf.xlu0
        %v2962 = vpop.trf.xlu0
        %v2963 = vpop.trf.xlu0
        %v2964 = vpop.trf.xlu0
        %v2965 = vpop.trf.xlu0
        %v2966 = vpop.trf.xlu0
        %v2967 = vpop.trf.xlu0
        %v2968 = vpop.trf.xlu0
        %2969 = vxpose.xlu0.b32.start [1/16] %v2826, 128
        %2970 = vxpose.xlu0.b32.cont [2/16] 0.0, 128
        %2971 = vxpose.xlu0.b32.cont [3/16] 0.0, 128
        %2972 = vxpose.xlu0.b32.cont [4/16] 0.0, 128
        %2973 = vxpose.xlu0.b32.cont [5/16] 0.0, 128
        %2974 = vxpose.xlu0.b32.cont [6/16] 0.0, 128
        %2975 = vxpose.xlu0.b32.cont [7/16] 0.0, 128
        %2976 = vxpose.xlu0.b32.cont [8/16] 0.0, 128
        %2977 = vxpose.xlu0.b32.cont [9/16] 0.0, 128
        %2978 = vxpose.xlu0.b32.cont [10/16] 0.0, 128
        %2979 = vxpose.xlu0.b32.cont [11/16] 0.0, 128
        %2980 = vxpose.xlu0.b32.cont [12/16] 0.0, 128
        %2981 = vxpose.xlu0.b32.cont [13/16] 0.0, 128
        %2982 = vxpose.xlu0.b32.cont [14/16] 0.0, 128
        %2983 = vxpose.xlu0.b32.cont [15/16] 0.0, 128
        %2984 = vxpose.xlu0.b32.end [16/16] 0.0, 128
        %v2985 = vpop.trf.xlu0
        %v2986 = vpop.trf.xlu0
        %v2987 = vpop.trf.xlu0
        %v2988 = vpop.trf.xlu0
        %v2989 = vpop.trf.xlu0
        %v2990 = vpop.trf.xlu0
        %v2991 = vpop.trf.xlu0
        %v2992 = vpop.trf.xlu0
        %v2993 = vpop.trf.xlu0
        %v2994 = vpop.trf.xlu0
        %v2995 = vpop.trf.xlu0
        %v2996 = vpop.trf.xlu0
        %v2997 = vpop.trf.xlu0
        %v2998 = vpop.trf.xlu0
        %v2999 = vpop.trf.xlu0
        %v3000 = vpop.trf.xlu0
        %3001 = vxpose.xlu0.b32.start [1/16] %v2902, 128
        %3002 = vxpose.xlu0.b32.cont [2/16] 0.0, 128
        %3003 = vxpose.xlu0.b32.cont [3/16] 0.0, 128
        %3004 = vxpose.xlu0.b32.cont [4/16] 0.0, 128
        %3005 = vxpose.xlu0.b32.cont [5/16] 0.0, 128
        %3006 = vxpose.xlu0.b32.cont [6/16] 0.0, 128
        %3007 = vxpose.xlu0.b32.cont [7/16] 0.0, 128
        %3008 = vxpose.xlu0.b32.cont [8/16] 0.0, 128
        %3009 = vxpose.xlu0.b32.cont [9/16] 0.0, 128
        %3010 = vxpose.xlu0.b32.cont [10/16] 0.0, 128
        %3011 = vxpose.xlu0.b32.cont [11/16] 0.0, 128
        %3012 = vxpose.xlu0.b32.cont [12/16] 0.0, 128
        %3013 = vxpose.xlu0.b32.cont [13/16] 0.0, 128
        %3014 = vxpose.xlu0.b32.cont [14/16] 0.0, 128
        %3015 = vxpose.xlu0.b32.cont [15/16] 0.0, 128
        %3016 = vxpose.xlu0.b32.end [16/16] 0.0, 128
        %v3017 = vpop.trf.xlu0
        %v3018 = vpop.trf.xlu0
        %v3019 = vpop.trf.xlu0
        %v3020 = vpop.trf.xlu0
        %v3021 = vpop.trf.xlu0
        %v3022 = vpop.trf.xlu0
        %v3023 = vpop.trf.xlu0
        %v3024 = vpop.trf.xlu0
        %v3025 = vpop.trf.xlu0
        %v3026 = vpop.trf.xlu0
        %v3027 = vpop.trf.xlu0
        %v3028 = vpop.trf.xlu0
        %v3029 = vpop.trf.xlu0
        %v3030 = vpop.trf.xlu0
        %v3031 = vpop.trf.xlu0
        %v3032 = vpop.trf.xlu0
        %v3033 = vcombine.low %v2921, %v2985
        %v3034 = vcombine.high %v2921, %v2985
        %v3036 = vunpack.c.l.s4 1983009808
        %v3037 = vunpack.c.0.s8 %v3036
        %v3038 = vlaneseq
        %v3039 = vshrl.u32 %v3038, 7
        %v3040 = vsub.s32 %v3037, %v3039
        %v3041 = vrot.slane %v3033, %v3040
        %v3043 = vunpack.c.l.s4 1983009808
        %v3044 = vunpack.c.0.s8 %v3043
        %v3045 = vlaneseq
        %v3046 = vshrl.u32 %v3045, 7
        %v3047 = vsub.s32 %v3044, %v3046
        %v3048 = vrot.slane %v3034, %v3047
        %v3049 = vcombine.low %v2953, %v3017
        %v3050 = vcombine.high %v2953, %v3017
        %v3052 = vunpack.c.l.s4 1983009808
        %v3053 = vunpack.c.0.s8 %v3052
        %v3054 = vlaneseq
        %v3055 = vshrl.u32 %v3054, 7
        %v3056 = vsub.s32 %v3053, %v3055
        %v3057 = vrot.slane %v3049, %v3056
        %v3059 = vunpack.c.l.s4 1983009808
        %v3060 = vunpack.c.0.s8 %v3059
        %v3061 = vlaneseq
        %v3062 = vshrl.u32 %v3061, 7
        %v3063 = vsub.s32 %v3060, %v3062
        %v3064 = vrot.slane %v3050, %v3063
        %v3065 = vcombine.low %v3041, %v3057
        %v3066 = vcombine.high %v3041, %v3057
        %v3068 = vunpack.c.l.s4 1934713408
        %v3069 = vunpack.c.0.s8 %v3068
        %v3070 = vlaneseq
        %v3071 = vshrl.u32 %v3070, 7
        %v3072 = vsub.s32 %v3069, %v3071
        %v3073 = vrot.slane %v3065, %v3072
        %v3075 = vunpack.c.l.s4 1934713408
        %v3076 = vunpack.c.0.s8 %v3075
        %v3077 = vlaneseq
        %v3078 = vshrl.u32 %v3077, 7
        %v3079 = vsub.s32 %v3076, %v3078
        %v3080 = vrot.slane %v3066, %v3079
        %v3081 = vcombine.low %v3048, %v3064
        %v3082 = vcombine.high %v3048, %v3064
        %v3084 = vunpack.c.l.s4 1934713408
        %v3085 = vunpack.c.0.s8 %v3084
        %v3086 = vlaneseq
        %v3087 = vshrl.u32 %v3086, 7
        %v3088 = vsub.s32 %v3085, %v3087
        %v3089 = vrot.slane %v3081, %v3088
        %v3091 = vunpack.c.l.s4 1934713408
        %v3092 = vunpack.c.0.s8 %v3091
        %v3093 = vlaneseq
        %v3094 = vshrl.u32 %v3093, 7
        %v3095 = vsub.s32 %v3092, %v3094
        %v3096 = vrot.slane %v3082, %v3095
        %v3097 = vcombine.high %v3073, 0.0
        %v3098 = vcombine.high %v3080, 0.0
        %v3099 = vcombine.high %v3089, 0.0
        %v3100 = vcombine.high %v3096, 0.0
        %v3101 = vcombine.low %v3073, %v3080
        %v3103 = vunpack.c.l.s4 1983009808
        %v3104 = vunpack.c.0.s8 %v3103
        %v3105 = vlaneseq
        %v3106 = vshrl.u32 %v3105, 7
        %v3107 = vsub.s32 %v3104, %v3106
        %v3108 = vrot.slane %v3101, %v3107
        %v3109 = vcombine.low %v3097, %v3098
        %v3111 = vunpack.c.l.s4 1983009808
        %v3112 = vunpack.c.0.s8 %v3111
        %v3113 = vlaneseq
        %v3114 = vshrl.u32 %v3113, 7
        %v3115 = vsub.s32 %v3112, %v3114
        %v3116 = vrot.slane %v3109, %v3115
        %v3117 = vcombine.low %v3089, %v3096
        %v3119 = vunpack.c.l.s4 1983009808
        %v3120 = vunpack.c.0.s8 %v3119
        %v3121 = vlaneseq
        %v3122 = vshrl.u32 %v3121, 7
        %v3123 = vsub.s32 %v3120, %v3122
        %v3124 = vrot.slane %v3117, %v3123
        %v3125 = vcombine.low %v3099, %v3100
        %v3127 = vunpack.c.l.s4 1983009808
        %v3128 = vunpack.c.0.s8 %v3127
        %v3129 = vlaneseq
        %v3130 = vshrl.u32 %v3129, 7
        %v3131 = vsub.s32 %v3128, %v3130
        %v3132 = vrot.slane %v3125, %v3131
        %v3133 = vcombine.low %v3108, %v3116
        %v3134 = vcombine.high %v3108, %v3116
        %v3136 = vunpack.c.l.s4 1934713408
        %v3137 = vunpack.c.0.s8 %v3136
        %v3138 = vlaneseq
        %v3139 = vshrl.u32 %v3138, 7
        %v3140 = vsub.s32 %v3137, %v3139
        %v3141 = vrot.slane %v3133, %v3140
        %v3143 = vunpack.c.l.s4 1934713408
        %v3144 = vunpack.c.0.s8 %v3143
        %v3145 = vlaneseq
        %v3146 = vshrl.u32 %v3145, 7
        %v3147 = vsub.s32 %v3144, %v3146
        %v3148 = vrot.slane %v3134, %v3147
        %v3149 = vcombine.low %v3124, %v3132
        %v3150 = vcombine.high %v3124, %v3132
        %v3152 = vunpack.c.l.s4 1934713408
        %v3153 = vunpack.c.0.s8 %v3152
        %v3154 = vlaneseq
        %v3155 = vshrl.u32 %v3154, 7
        %v3156 = vsub.s32 %v3153, %v3155
        %v3157 = vrot.slane %v3149, %v3156
        %v3159 = vunpack.c.l.s4 1934713408
        %v3160 = vunpack.c.0.s8 %v3159
        %v3161 = vlaneseq
        %v3162 = vshrl.u32 %v3161, 7
        %v3163 = vsub.s32 %v3160, %v3162
        %v3164 = vrot.slane %v3150, %v3163
        %v3165 = vcombine.low %v3141, %v3157
        %v3166 = vcombine.high %v3141, %v3157
        %v3167 = vcombine.low %v3148, %v3164
        %v3168 = vcombine.high %v3148, %v3164
        %3170 = vrot.lane.b32.xlu0 %v3166, 8
        %v3171 = vpop.permute.xlu0 %3170
        %3174 = vrot.lane.b32.xlu0 %v3167, 16
        %v3175 = vpop.permute.xlu0 %3174
        %3178 = vrot.lane.b32.xlu0 %v3168, 24
        %v3179 = vpop.permute.xlu0 %3178
        %v3181 = vsel %vm560, %v3165, %v3171
        %v3182 = vsel %vm1614, %v3181, %v3175
        %v3183 = vsel %vm1616, %v3182, %v3179
        %s3184 = scalar_lea.vmem [#allocation2], 32
        %v3185 = vld [vmem:[%s3184] sm:$0xff]
        %v3186 = vld [vmem:[%s3184 + $0x8] sm:$0xff]
        %v3187 = vld [vmem:[%s3184 + $0x10] sm:$0xff]
        %v3188 = vld [vmem:[%s3184 + $0x18] sm:$0xff]
        %v3190 = vsel %vm1622, %v3183, 0
        %3192 = vmatprep.subr.mxu0 0.0
        %3193 = vmatpush1.msra.mxu0 0.0
        %3194 = vmatprep.subr.mxu0 0.0
        %3195 = vmatpush1.msra.mxu0 0.0
        %3196 = vmatprep.subr.mxu0 0.0
        %3197 = vmatpush1.msra.mxu0 0.0
        %3198 = vmatprep.subr.mxu0 0.0
        %3199 = vmatpush1.msra.mxu0 0.0
        %3200 = vmatprep.subr.mxu0 0.0
        %3201 = vmatpush1.msra.mxu0 0.0
        %3202 = vmatprep.subr.mxu0 0.0
        %3203 = vmatpush1.msra.mxu0 0.0
        %3204 = vmatprep.subr.mxu0 0.0
        %3205 = vmatpush1.msra.mxu0 0.0
        %3206 = vmatprep.subr.mxu0 0.0
        %3207 = vmatpush1.msra.mxu0 0.0
        %3208 = vmatprep.subr.mxu0 0.0
        %3209 = vmatpush1.msra.mxu0 0.0
        %3210 = vmatprep.subr.mxu0 0.0
        %3211 = vmatpush1.msra.mxu0 0.0
        %3212 = vmatprep.subr.mxu0 0.0
        %3213 = vmatpush1.msra.mxu0 0.0
        %3214 = vmatprep.subr.mxu0 0.0
        %3215 = vmatpush1.msra.mxu0 0.0
        %3216 = vmatprep.subr.mxu0 0.0
        %3217 = vmatpush1.msra.mxu0 %v3188
        %3218 = vmatprep.subr.mxu0 0.0
        %3219 = vmatpush1.msra.mxu0 %v3187
        %3220 = vmatprep.subr.mxu0 0.0
        %3221 = vmatpush1.msra.mxu0 %v3186
        %3222 = vmatprep.subr.mxu0 0.0
        %3223 = vmatpush1.msra.mxu0 %v3185
        %3224 = vmatprep.subr.mxu0 0.0
        %3225 = vmatpush2.msra.mxu0 0.0
        %3226 = vmatprep.subr.mxu0 0.0
        %3227 = vmatpush2.msra.mxu0 0.0
        %3228 = vmatprep.subr.mxu0 0.0
        %3229 = vmatpush2.msra.mxu0 0.0
        %3230 = vmatprep.subr.mxu0 0.0
        %3231 = vmatpush2.msra.mxu0 0.0
        %3232 = vmatprep.subr.mxu0 0.0
        %3233 = vmatpush2.msra.mxu0 0.0
        %3234 = vmatprep.subr.mxu0 0.0
        %3235 = vmatpush2.msra.mxu0 0.0
        %3236 = vmatprep.subr.mxu0 0.0
        %3237 = vmatpush2.msra.mxu0 0.0
        %3238 = vmatprep.subr.mxu0 0.0
        %3239 = vmatpush2.msra.mxu0 0.0
        %3240 = vmatprep.subr.mxu0 0.0
        %3241 = vmatpush2.msra.mxu0 0.0
        %3242 = vmatprep.subr.mxu0 0.0
        %3243 = vmatpush2.msra.mxu0 0.0
        %3244 = vmatprep.subr.mxu0 0.0
        %3245 = vmatpush2.msra.mxu0 0.0
        %3246 = vmatprep.subr.mxu0 0.0
        %3247 = vmatpush2.msra.mxu0 0.0
        %3248 = vmatprep.subr.mxu0 0.0
        %3249 = vmatpush2.msra.mxu0 0.0
        %3250 = vmatprep.subr.mxu0 0.0
        %3251 = vmatpush2.msra.mxu0 0.0
        %3252 = vmatprep.subr.mxu0 0.0
        %3253 = vmatpush2.msra.mxu0 0.0
        %3254 = vmatprep.subr.mxu0 0.0
        %3255 = vmatpush2.msra.mxu0 0.0
        %3256 = vmatprep.mubr.f32.mxu0 0.0
        %3257 = vmatmul.mubr.f32.gmra.mxu0 %v3190
        %v3258 = vpop.f32.mrf.mxu0
        %v3259 = vadd.f32 0.0, %v3258
        %v3260 = vpop.f32.mrf.mxu0
        %3261 = vdwg.mxu0
        %v3262 = vadd.f32 %v1882, %v3259
        %v3263 = vmul.f32 %v3262, %v3262
        %3264 = vadd.xlane.f32.xlu0 %v3263
        %v3265 = vpop.xlane.xlu0 %3264
        %v3266 = vmul.f32 %v3265, 0.03125
        %v3267 = vadd.f32 %v3266, 1e-06
        %v3268 = vrsqrt.pop %v3267
        %v3269 = vmul.f32 %v3262, %v3268
        %v3270 = vlaneseq
        %v3271 = vshrl.u32 %v3270, 7
        %v3272 = vsub.s32 3, %v3271
        %v3273 = vrot.slane %v314, %v3272
        %v3274 = vmul.f32 %v3269, %v3273
        %s3275 = scalar_lea.vmem %s5, 128
        %v3276 = vld [vmem:[%s3275] sm:$0xff]
        %v3277 = vld [vmem:[%s3275 + $0x8] sm:$0xff]
        %v3278 = vld [vmem:[%s3275 + $0x10] sm:$0xff]
        %v3279 = vld [vmem:[%s3275 + $0x18] sm:$0xff]
        %v3280 = vld [vmem:[%s3275 + $0x20] sm:$0xff]
        %v3281 = vld [vmem:[%s3275 + $0x28] sm:$0xff]
        %v3282 = vld [vmem:[%s3275 + $0x30] sm:$0xff]
        %v3283 = vld [vmem:[%s3275 + $0x38] sm:$0xff]
        %v3284 = vld [vmem:[%s3275 + $0x40] sm:$0xff]
        %v3285 = vld [vmem:[%s3275 + $0x48] sm:$0xff]
        %v3286 = vld [vmem:[%s3275 + $0x50] sm:$0xff]
        %v3287 = vld [vmem:[%s3275 + $0x58] sm:$0xff]
        %v3288 = vld [vmem:[%s3275 + $0x60] sm:$0xff]
        %v3289 = vld [vmem:[%s3275 + $0x68] sm:$0xff]
        %v3290 = vld [vmem:[%s3275 + $0x70] sm:$0xff]
        %v3291 = vld [vmem:[%s3275 + $0x78] sm:$0xff]
        %3292 = vmatprep.subr.mxu0 0.0
        %3293 = vmatpush1.msra.mxu0 %v3291
        %3294 = vmatprep.subr.mxu0 0.0
        %3295 = vmatpush1.msra.mxu0 %v3290
        %3296 = vmatprep.subr.mxu0 0.0
        %3297 = vmatpush1.msra.mxu0 %v3289
        %3298 = vmatprep.subr.mxu0 0.0
        %3299 = vmatpush1.msra.mxu0 %v3288
        %3300 = vmatprep.subr.mxu0 0.0
        %3301 = vmatpush1.msra.mxu0 %v3287
        %3302 = vmatprep.subr.mxu0 0.0
        %3303 = vmatpush1.msra.mxu0 %v3286
        %3304 = vmatprep.subr.mxu0 0.0
        %3305 = vmatpush1.msra.mxu0 %v3285
        %3306 = vmatprep.subr.mxu0 0.0
        %3307 = vmatpush1.msra.mxu0 %v3284
        %3308 = vmatprep.subr.mxu0 0.0
        %3309 = vmatpush1.msra.mxu0 %v3283
        %3310 = vmatprep.subr.mxu0 0.0
        %3311 = vmatpush1.msra.mxu0 %v3282
        %3312 = vmatprep.subr.mxu0 0.0
        %3313 = vmatpush1.msra.mxu0 %v3281
        %3314 = vmatprep.subr.mxu0 0.0
        %3315 = vmatpush1.msra.mxu0 %v3280
        %3316 = vmatprep.subr.mxu0 0.0
        %3317 = vmatpush1.msra.mxu0 %v3279
        %3318 = vmatprep.subr.mxu0 0.0
        %3319 = vmatpush1.msra.mxu0 %v3278
        %3320 = vmatprep.subr.mxu0 0.0
        %3321 = vmatpush1.msra.mxu0 %v3277
        %3322 = vmatprep.subr.mxu0 0.0
        %3323 = vmatpush1.msra.mxu0 %v3276
        %3324 = vmatprep.subr.mxu0 0.0
        %3325 = vmatpush2.msra.mxu0 0.0
        %3326 = vmatprep.subr.mxu0 0.0
        %3327 = vmatpush2.msra.mxu0 0.0
        %3328 = vmatprep.subr.mxu0 0.0
        %3329 = vmatpush2.msra.mxu0 0.0
        %3330 = vmatprep.subr.mxu0 0.0
        %3331 = vmatpush2.msra.mxu0 0.0
        %3332 = vmatprep.subr.mxu0 0.0
        %3333 = vmatpush2.msra.mxu0 0.0
        %3334 = vmatprep.subr.mxu0 0.0
        %3335 = vmatpush2.msra.mxu0 0.0
        %3336 = vmatprep.subr.mxu0 0.0
        %3337 = vmatpush2.msra.mxu0 0.0
        %3338 = vmatprep.subr.mxu0 0.0
        %3339 = vmatpush2.msra.mxu0 0.0
        %3340 = vmatprep.subr.mxu0 0.0
        %3341 = vmatpush2.msra.mxu0 0.0
        %3342 = vmatprep.subr.mxu0 0.0
        %3343 = vmatpush2.msra.mxu0 0.0
        %3344 = vmatprep.subr.mxu0 0.0
        %3345 = vmatpush2.msra.mxu0 0.0
        %3346 = vmatprep.subr.mxu0 0.0
        %3347 = vmatpush2.msra.mxu0 0.0
        %3348 = vmatprep.subr.mxu0 0.0
        %3349 = vmatpush2.msra.mxu0 0.0
        %3350 = vmatprep.subr.mxu0 0.0
        %3351 = vmatpush2.msra.mxu0 0.0
        %3352 = vmatprep.subr.mxu0 0.0
        %3353 = vmatpush2.msra.mxu0 0.0
        %3354 = vmatprep.subr.mxu0 0.0
        %3355 = vmatpush2.msra.mxu0 0.0
        %3356 = vmatprep.mubr.f32.mxu0 0.0
        %3357 = vmatmul.mubr.f32.gmra.mxu0 %v3274
        %v3358 = vpop.f32.mrf.mxu0
        %v3359 = vadd.f32 0.0, %v3358
        %v3360 = vpop.f32.mrf.mxu0
        %3361 = vdwg.mxu0
        %v3362 = vmax.f32 %v3359, 0.0
        %s3363 = scalar_lea.vmem %s6, 128
        %v3364 = vld [vmem:[%s3363] sm:$0xff]
        %v3365 = vld [vmem:[%s3363 + $0x8] sm:$0xff]
        %v3366 = vld [vmem:[%s3363 + $0x10] sm:$0xff]
        %v3367 = vld [vmem:[%s3363 + $0x18] sm:$0xff]
        %v3368 = vld [vmem:[%s3363 + $0x20] sm:$0xff]
        %v3369 = vld [vmem:[%s3363 + $0x28] sm:$0xff]
        %v3370 = vld [vmem:[%s3363 + $0x30] sm:$0xff]
        %v3371 = vld [vmem:[%s3363 + $0x38] sm:$0xff]
        %v3372 = vld [vmem:[%s3363 + $0x40] sm:$0xff]
        %v3373 = vld [vmem:[%s3363 + $0x48] sm:$0xff]
        %v3374 = vld [vmem:[%s3363 + $0x50] sm:$0xff]
        %v3375 = vld [vmem:[%s3363 + $0x58] sm:$0xff]
        %v3376 = vld [vmem:[%s3363 + $0x60] sm:$0xff]
        %v3377 = vld [vmem:[%s3363 + $0x68] sm:$0xff]
        %v3378 = vld [vmem:[%s3363 + $0x70] sm:$0xff]
        %v3379 = vld [vmem:[%s3363 + $0x78] sm:$0xff]
        %3380 = vmatprep.subr.mxu0 0.0
        %3381 = vmatpush1.msra.mxu0 %v3379
        %3382 = vmatprep.subr.mxu0 0.0
        %3383 = vmatpush1.msra.mxu0 %v3378
        %3384 = vmatprep.subr.mxu0 0.0
        %3385 = vmatpush1.msra.mxu0 %v3377
        %3386 = vmatprep.subr.mxu0 0.0
        %3387 = vmatpush1.msra.mxu0 %v3376
        %3388 = vmatprep.subr.mxu0 0.0
        %3389 = vmatpush1.msra.mxu0 %v3375
        %3390 = vmatprep.subr.mxu0 0.0
        %3391 = vmatpush1.msra.mxu0 %v3374
        %3392 = vmatprep.subr.mxu0 0.0
        %3393 = vmatpush1.msra.mxu0 %v3373
        %3394 = vmatprep.subr.mxu0 0.0
        %3395 = vmatpush1.msra.mxu0 %v3372
        %3396 = vmatprep.subr.mxu0 0.0
        %3397 = vmatpush1.msra.mxu0 %v3371
        %3398 = vmatprep.subr.mxu0 0.0
        %3399 = vmatpush1.msra.mxu0 %v3370
        %3400 = vmatprep.subr.mxu0 0.0
        %3401 = vmatpush1.msra.mxu0 %v3369
        %3402 = vmatprep.subr.mxu0 0.0
        %3403 = vmatpush1.msra.mxu0 %v3368
        %3404 = vmatprep.subr.mxu0 0.0
        %3405 = vmatpush1.msra.mxu0 %v3367
        %3406 = vmatprep.subr.mxu0 0.0
        %3407 = vmatpush1.msra.mxu0 %v3366
        %3408 = vmatprep.subr.mxu0 0.0
        %3409 = vmatpush1.msra.mxu0 %v3365
        %3410 = vmatprep.subr.mxu0 0.0
        %3411 = vmatpush1.msra.mxu0 %v3364
        %3412 = vmatprep.subr.mxu0 0.0
        %3413 = vmatpush2.msra.mxu0 0.0
        %3414 = vmatprep.subr.mxu0 0.0
        %3415 = vmatpush2.msra.mxu0 0.0
        %3416 = vmatprep.subr.mxu0 0.0
        %3417 = vmatpush2.msra.mxu0 0.0
        %3418 = vmatprep.subr.mxu0 0.0
        %3419 = vmatpush2.msra.mxu0 0.0
        %3420 = vmatprep.subr.mxu0 0.0
        %3421 = vmatpush2.msra.mxu0 0.0
        %3422 = vmatprep.subr.mxu0 0.0
        %3423 = vmatpush2.msra.mxu0 0.0
        %3424 = vmatprep.subr.mxu0 0.0
        %3425 = vmatpush2.msra.mxu0 0.0
        %3426 = vmatprep.subr.mxu0 0.0
        %3427 = vmatpush2.msra.mxu0 0.0
        %3428 = vmatprep.subr.mxu0 0.0
        %3429 = vmatpush2.msra.mxu0 0.0
        %3430 = vmatprep.subr.mxu0 0.0
        %3431 = vmatpush2.msra.mxu0 0.0
        %3432 = vmatprep.subr.mxu0 0.0
        %3433 = vmatpush2.msra.mxu0 0.0
        %3434 = vmatprep.subr.mxu0 0.0
        %3435 = vmatpush2.msra.mxu0 0.0
        %3436 = vmatprep.subr.mxu0 0.0
        %3437 = vmatpush2.msra.mxu0 0.0
        %3438 = vmatprep.subr.mxu0 0.0
        %3439 = vmatpush2.msra.mxu0 0.0
        %3440 = vmatprep.subr.mxu0 0.0
        %3441 = vmatpush2.msra.mxu0 0.0
        %3442 = vmatprep.subr.mxu0 0.0
        %3443 = vmatpush2.msra.mxu0 0.0
        %3444 = vmatprep.mubr.f32.mxu0 0.0
        %3445 = vmatmul.mubr.f32.gmra.mxu0 %v3362
        %v3446 = vpop.f32.mrf.mxu0
        %v3447 = vadd.f32 0.0, %v3446
        %v3448 = vpop.f32.mrf.mxu0
        %3449 = vdwg.mxu0
        %v3450 = vadd.f32 %v3262, %v3447
        %v3451 = vmul.f32 %v3450, %v3450
        %3452 = vadd.xlane.f32.xlu0 %v3451
        %v3453 = vpop.xlane.xlu0 %3452
        %v3454 = vmul.f32 %v3453, 0.03125
        %v3455 = vadd.f32 %v3454, 1e-06
        %v3456 = vrsqrt.pop %v3455
        %v3457 = vmul.f32 %v3450, %v3456
        %v3458 = vlaneseq
        %v3459 = vshrl.u32 %v3458, 7
        %v3460 = vsub.s32 4, %v3459
        %v3461 = vrot.slane %v314, %v3460
        %v3462 = vmul.f32 %v3457, %v3461
        %3463 = vst [vmem:[%s308] sm:$0xff] %v3462
        %p3464 = scmp.lt.s32.totalorder %s19, 1
        %s3465 = scalar_select %p3464, %s19, 1
        %s3466 = smul.addr %s3465, 8
        %s3467 = scalar_lea.vmem %s7, %s3466
        // Predicated region
        $region53: #{t5_encoder_forward.1} parent=47 // pred_check
          %p3468 = pneg %p194
        $region54: #{t5_encoder_forward.1} parent=47 // pred_check_branch
          %3470 = sbr.rel (%p3468) target = $region56
        $region55: #{t5_encoder_forward.1} parent=47 // pred_region
          _
        $region56: #{t5_encoder_forward.1} parent=47 // pred_fallthru
          _
      $region48: #{t5_encoder_forward.1} parent=5 // pred_fallthru
        _
      %p3471 = scmp.le.s32.totalorder 2, %s14
      // Predicated region
      $region57: #{t5_encoder_forward.1} parent=5 // pred_check
        %p3472 = pneg %p3471
      $region58: #{t5_encoder_forward.1} parent=5 // pred_check_branch
        %3474 = sbr.rel (%p3472) target = $region60
      $region59: #{t5_encoder_forward.1} parent=5 // pred_region
        %s3475 = ssub.s32 %s14, 2
        // Predicated region
        $region61: #{t5_encoder_forward.1} parent=59 // pred_check
          %p3476 = pneg %p200
        $region62: #{t5_encoder_forward.1} parent=59 // pred_check_branch
          %3478 = sbr.rel (%p3476) target = $region64
        $region63: #{t5_encoder_forward.1} parent=59 // pred_region
          %p3479 = scmp.lt.s32.totalorder %s20, 1
          %s3480 = scalar_select %p3479, %s20, 1
          %s3481 = smul.addr %s3480, 8
          %s3482 = scalar_lea.vmem %s7, %s3481
        $region64: #{t5_encoder_forward.1} parent=59 // pred_fallthru
          _
      $region60: #{t5_encoder_forward.1} parent=5 // pred_fallthru
        _
    $region6: #{t5_encoder_forward.1} parent=1 // loop_footer
      %s18 = sadd.s32 1, %s14
    $region7: #{t5_encoder_forward.1} parent=1 // loop_footer_branch
      %13 = sbr.rel target = $region3
    $region8: #{t5_encoder_forward.1} parent=1 // loop_exit
      _
    %3483 = vsyncpa [#allocation3], 1
    %s3484 = scalar_lea.sflag [#allocation3], 1
    %3485 = vsyncpa %s3484, 1

</llo_original>
